<compile_context>
chip_gen: v7x
topology: tpu7x:2x2x1
jax: 0.10.0
libtpu: 0.0.40
codegen_flags: <defaults>
</compile_context>

<pallas_src>
import jax
import jax.numpy as jnp
from jax.experimental import pallas as pl
from jax.experimental.pallas import tpu as pltpu

BN_EPS = 1e-5
LANES = 128


def _round_up(x, m):
    return ((x + m - 1) // m) * m


# ---------------------------------------------------------------------------
# Pallas kernels / wrappers
# ---------------------------------------------------------------------------
def conv3x3_stats(xflat, w, H, W, out_dtype):
    """conv1 + fused per-image BN partial stats.

    xflat: (N, (H+3)*(W+2), Cp)  zero-padded input, wide-row flat layout
    w:     (9, Cp, Cp)           per-tap weight matrices
    -> y:  (N, H*(W+2), Cp)      conv output in wide-row layout (out_dtype)
       st: (N, 2, Cp)            per-image [sum, sum_sq] (junk cols masked)
    """
    N, HpWp, Cp = xflat.shape
    Wp = W + 2
    HWw = H * Wp

    def kernel(x_ref, w_ref, y_ref, st_ref, acc_ref):
        # 9 shifted-window MXU matmuls, accumulated in an f32 VMEM scratch.
        for t in range(9):
            ky, kx = divmod(t, 3)
            off = ky * Wp + kx
            patch = x_ref[0, off:off + HWw, :]            # contiguous rows
            contrib = jnp.dot(patch, w_ref[t],
                              preferred_element_type=jnp.float32)
            if t == 0:
                acc_ref[...] = contrib
            else:
                acc_ref[...] += contrib
        acc = acc_ref[...]
        y_ref[0] = acc.astype(y_ref.dtype)

        # Per-image BN partial stats over the valid columns only.
        col = jax.lax.broadcasted_iota(jnp.int32, (HWw, Cp), 0) % Wp
        macc = jnp.where(col < W, acc, 0.0)
        s = jnp.sum(macc, axis=0, keepdims=True)
        ss = jnp.sum(macc * acc, axis=0, keepdims=True)
        st_ref[0] = jnp.concatenate([s, ss], axis=0)

    return pl.pallas_call(
        kernel,
        out_shape=(jax.ShapeDtypeStruct((N, HWw, Cp), out_dtype),
                   jax.ShapeDtypeStruct((N, 2, Cp), jnp.float32)),
        grid_spec=pltpu.PrefetchScalarGridSpec(
            num_scalar_prefetch=0,
            grid=(N,),
            in_specs=[pl.BlockSpec((1, HpWp, Cp), lambda n: (n, 0, 0)),
                      pl.BlockSpec((9, Cp, Cp), lambda n: (0, 0, 0))],
            out_specs=[pl.BlockSpec((1, HWw, Cp), lambda n: (n, 0, 0)),
                       pl.BlockSpec((1, 2, Cp), lambda n: (n, 0, 0))],
            scratch_shapes=[pltpu.VMEM((HWw, Cp), jnp.float32)]),
        compiler_params=pltpu.CompilerParams(
            dimension_semantics=("parallel",)),
    )(xflat, w)


def bnrelu_conv3x3_stats(y1, st1, g1, b1, w, H, W, count, out_dtype):
    """Fused BN1+ReLU prologue -> conv2 -> per-image BN2 partial stats.

    y1:  (N, H*(W+2), Cp)  conv1 output in wide-row layout
    st1: (2, Cp) batch [sum, sum_sq] of y1;  g1/b1: (1, Cp) gamma/beta
    w:   (9, Cp, Cp) conv2 per-tap weights
    """
    N, HWw, Cp = y1.shape
    Wp = W + 2
    Hp = H + 3
    HpWp = Hp * Wp
    interior = Wp + 1                       # flat offset of (r=1, c=1)
    inv_count = 1.0 / count

    def kernel(y1_ref, st_ref, g_ref, b_ref, w_ref, y2_ref, st2_ref,
               h_scr, acc_ref):
        # BN1 scale/shift from batch stats, computed in-kernel (EUP rsqrt).
        st = st_ref[...]                                   # (2, Cp) f32
        mean = st[0:1, :] * inv_count
        var = jnp.maximum(st[1:2, :] * inv_count - mean * mean, 0.0)
        scale = g_ref[...] * jax.lax.rsqrt(var + BN_EPS)
        shift = b_ref[...] - mean * scale

        # Re-zero only the small halo strips of the padded scratch each step
        # (cheap, and safe when the batch axis is split across TensorCores).
        h_scr[0:interior, :] = jnp.zeros((interior, Cp), h_scr.dtype)
        h_scr[interior + HWw:, :] = jnp.zeros((HpWp - interior - HWw, Cp),
                                              h_scr.dtype)

        # Column mask: junk columns (x in {W, W+1}) must be zero so they act
        # as conv2's zero padding; the same mask is reused for the stats.
        col = jax.lax.broadcasted_iota(jnp.int32, (HWw, Cp), 0) % Wp
        valid = col < W

        # BN1 + ReLU on the unpadded y1, written into the scratch interior.
        h = jnp.maximum(y1_ref[0].astype(jnp.float32) * scale + shift, 0.0)
        h_scr[interior:interior + HWw, :] = jnp.where(valid, h, 0.0).astype(
            h_scr.dtype)

        # conv2: 9 contiguous shifted-window MXU matmuls from the scratch.
        for t in range(9):
            ky, kx = divmod(t, 3)
            off = ky * Wp + kx
            patch = h_scr[off:off + HWw, :]
            contrib = jnp.dot(patch, w_ref[t],
                              preferred_element_type=jnp.float32)
            if t == 0:
                acc_ref[...] = contrib
            else:
                acc_ref[...] += contrib
        acc = acc_ref[...]
        y2_ref[0] = acc.astype(y2_ref.dtype)

        macc = jnp.where(valid, acc, 0.0)
        s = jnp.sum(macc, axis=0, keepdims=True)
        ss = jnp.sum(macc * acc, axis=0, keepdims=True)
        st2_ref[0] = jnp.concatenate([s, ss], axis=0)

    return pl.pallas_call(
        kernel,
        out_shape=(jax.ShapeDtypeStruct((N, HWw, Cp), out_dtype),
                   jax.ShapeDtypeStruct((N, 2, Cp), jnp.float32)),
        grid_spec=pltpu.PrefetchScalarGridSpec(
            num_scalar_prefetch=0,
            grid=(N,),
            in_specs=[pl.BlockSpec((1, HWw, Cp), lambda n: (n, 0, 0)),
                      pl.BlockSpec((2, Cp), lambda n: (0, 0)),
                      pl.BlockSpec((1, Cp), lambda n: (0, 0)),
                      pl.BlockSpec((1, Cp), lambda n: (0, 0)),
                      pl.BlockSpec((9, Cp, Cp), lambda n: (0, 0, 0))],
            out_specs=[pl.BlockSpec((1, HWw, Cp), lambda n: (n, 0, 0)),
                       pl.BlockSpec((1, 2, Cp), lambda n: (n, 0, 0))],
            scratch_shapes=[pltpu.VMEM((HpWp, Cp), out_dtype),
                            pltpu.VMEM((HWw, Cp), jnp.float32)]),
        compiler_params=pltpu.CompilerParams(
            dimension_semantics=("parallel",)),
    )(y1, st1, g1, b1, w)


def bn_add_relu(xflat, y2, st2, gamma, beta, count, H, W):
    """BN2 (scale/shift from stats, in-kernel) + residual add + ReLU.

    The identity is sliced in-kernel from the already-padded input slab, so
    no separate XLA pass is needed to re-layout the residual.
    """
    N, HpWp, Cp = xflat.shape
    Wp = W + 2
    HWw = H * Wp
    interior = Wp + 1
    inv_count = 1.0 / count

    def kernel(x_ref, y_ref, st_ref, g_ref, b_ref, o_ref):
        st = st_ref[...]
        mean = st[0:1, :] * inv_count
        var = jnp.maximum(st[1:2, :] * inv_count - mean * mean, 0.0)
        scale = g_ref[...] * jax.lax.rsqrt(var + BN_EPS)
        shift = b_ref[...] - mean * scale
        identity = x_ref[0, interior:interior + HWw, :].astype(jnp.float32)
        o_ref[0] = jnp.maximum(
            y_ref[0].astype(jnp.float32) * scale + shift + identity, 0.0)

    return pl.pallas_call(
        kernel,
        out_shape=jax.ShapeDtypeStruct((N, HWw, Cp), jnp.float32),
        grid_spec=pltpu.PrefetchScalarGridSpec(
            num_scalar_prefetch=0,
            grid=(N,),
            in_specs=[pl.BlockSpec((1, HpWp, Cp), lambda n: (n, 0, 0)),
                      pl.BlockSpec((1, HWw, Cp), lambda n: (n, 0, 0)),
                      pl.BlockSpec((2, Cp), lambda n: (0, 0)),
                      pl.BlockSpec((1, Cp), lambda n: (0, 0)),
                      pl.BlockSpec((1, Cp), lambda n: (0, 0))],
            out_specs=pl.BlockSpec((1, HWw, Cp), lambda n: (n, 0, 0))),
        compiler_params=pltpu.CompilerParams(
            dimension_semantics=("parallel",)),
    )(xflat, y2, st2, gamma, beta)


# ---------------------------------------------------------------------------
# Glue (plain JAX): layout / padding helpers and the forward pass
# ---------------------------------------------------------------------------
def torch_weight_to_taps(w_oihw, cp):
    """(Cout, Cin, 3, 3) -> (9, Cp, Cp), tap t = ky*3+kx, zero-padded channels."""
    cout, cin, kh, kw = w_oihw.shape
    w = jnp.transpose(w_oihw, (2, 3, 1, 0)).reshape(kh * kw, cin, cout)
    return jnp.pad(w, ((0, 0), (0, cp - cin), (0, cp - cout)))


def pad_channels_vec(v, cp):
    return jnp.pad(v.astype(jnp.float32), (0, cp - v.shape[0])).reshape(1, cp)


def residual_block_forward(x_nchw, params, compute_dtype=jnp.float32):
    """Pallas ResidualBlock.forward (stride=1, no downsample), training-mode BN."""
    # TODO(synk): caller-provided NHWC would avoid these two XLA transposes
    # and the final channel slice; kept to match the PyTorch NCHW interface.
    x = jnp.transpose(x_nchw, (0, 2, 3, 1)).astype(jnp.float32)      # -> NHWC
    N, H, W, C = x.shape
    Cp = _round_up(C, LANES)                 # lane-dense channel padding
    Wp = W + 2
    Hp = H + 3                               # +1 top, +2 bottom (slice margin)
    count = N * H * W

    # One fused pad (channel + spatial), then a free reshape to the wide-row
    # flat layout (rows = padded (r, c) positions).
    xpad = jnp.pad(x, ((0, 0), (1, 2), (1, 1), (0, Cp - C)))
    xflat = xpad.reshape(N, Hp * Wp, Cp).astype(compute_dtype)

    w1 = torch_weight_to_taps(params["w1"], Cp).astype(compute_dtype)
    w2 = torch_weight_to_taps(params["w2"], Cp).astype(compute_dtype)
    g1 = pad_channels_vec(params["gamma1"], Cp)
    b1 = pad_channels_vec(params["beta1"], Cp)
    g2 = pad_channels_vec(params["gamma2"], Cp)
    b2 = pad_channels_vec(params["beta2"], Cp)

    # conv1 + fused per-image BN1 partial stats
    y1, st1p = conv3x3_stats(xflat, w1, H, W, compute_dtype)
    st1 = jnp.sum(st1p, axis=0)                                      # (2, Cp)

    # BN1+ReLU fused into conv2 prologue; conv2 + fused BN2 partial stats
    y2, st2p = bnrelu_conv3x3_stats(y1, st1, g1, b1, w2, H, W, count,
                                    compute_dtype)
    st2 = jnp.sum(st2p, axis=0)

    # BN2 + residual add + ReLU (identity sliced from xflat in-kernel)
    out = bn_add_relu(xflat, y2, st2, g2, b2, count, H, W)

    # Drop the 2 junk columns per row and the channel padding, back to NCHW.
    out = out.reshape(N, H, Wp, Cp)[:, :, :W, :C]
    return jnp.transpose(out, (0, 3, 1, 2))                          # -> NCHW


# ---------------------------------------------------------------------------
# Pure-JAX reference (for correctness check only)
# ---------------------------------------------------------------------------
def _ref_conv(x_nhwc, w_oihw):
    w_hwio = jnp.transpose(w_oihw, (2, 3, 1, 0))
    return jax.lax.conv_general_dilated(
        x_nhwc, w_hwio, window_strides=(1, 1), padding="SAME",
        dimension_numbers=("NHWC", "HWIO", "NHWC"),
        precision=jax.lax.Precision.HIGHEST)


def _ref_bn(y, gamma, beta, eps=BN_EPS):
    mean = jnp.mean(y, axis=(0, 1, 2))
    var = jnp.mean((y - mean) ** 2, axis=(0, 1, 2))
    return (y - mean) / jnp.sqrt(var + eps) * gamma + beta


def residual_block_reference(x_nchw, params):
    x = jnp.transpose(x_nchw, (0, 2, 3, 1)).astype(jnp.float32)
    h = jax.nn.relu(_ref_bn(_ref_conv(x, params["w1"]),
                            params["gamma1"], params["beta1"]))
    h = _ref_bn(_ref_conv(h, params["w2"]), params["gamma2"], params["beta2"])
    out = jax.nn.relu(h + x)
    return jnp.transpose(out, (0, 3, 1, 2))


# ---------------------------------------------------------------------------
# Main
# ---------------------------------------------------------------------------
if __name__ == "__main__":
    # Small shapes: batch=2, in_channels=out_channels=8, spatial=16x16.
    N, C, H, W = 2, 8, 16, 16
    key = jax.random.PRNGKey(0)
    k_x, k_w1, k_w2, k_g1, k_b1, k_g2, k_b2 = jax.random.split(key, 7)

    x = jax.random.normal(k_x, (N, C, H, W), dtype=jnp.float32)

    fan_in = C * 9
    w1 = jax.random.normal(k_w1, (C, C, 3, 3), jnp.float32) * (2.0 / fan_in) ** 0.5
    w2 = jax.random.normal(k_w2, (C, C, 3, 3), jnp.float32) * (2.0 / fan_in) ** 0.5
    params = {
        "w1": w1, "w2": w2,
        "gamma1": 1.0 + 0.1 * jax.random.normal(k_g1, (C,), jnp.float32),
        "beta1": 0.1 * jax.random.normal(k_b1, (C,), jnp.float32),
        "gamma2": 1.0 + 0.1 * jax.random.normal(k_g2, (C,), jnp.float32),
        "beta2": 0.1 * jax.random.normal(k_b2, (C,), jnp.float32),
    }

    # f32 compute for the correctness check; pass compute_dtype=jnp.bfloat16
    # on v6e/v7x for ~2x lower HBM traffic on the conv path (stats and matmul
    # accumulation stay f32).
    out = jax.block_until_ready(residual_block_forward(x, params))
    ref = jax.block_until_ready(residual_block_reference(x, params))

    assert out.shape == (N, C, H, W), out.shape
    err = float(jnp.max(jnp.abs(out - ref)))
    assert jnp.allclose(out, ref, rtol=1e-3, atol=1e-3), err

    print("KERNEL_OK")
</pallas_src>

<mosaic_0001>
module attributes {stable_mosaic.version = 11 : i64} {
  func.func @kernel(%arg0: i32, %arg1: memref<1x342x128xf32, #tpu.memory_space<vmem>>, %arg2: memref<9x128x128xf32, #tpu.memory_space<vmem>>, %arg3: memref<1x288x128xf32, #tpu.memory_space<vmem>>, %arg4: memref<1x2x128xf32, #tpu.memory_space<vmem>>, %arg5: memref<288x128xf32, #tpu.memory_space<vmem>>) attributes {dimension_semantics = [#tpu.dimension_semantics<parallel>], iteration_bounds = array<i64: 2>, scalar_prefetch = 0 : i64, scratch_operands = 1 : i64, tpu.core_type = #tpu.core_type<tc>, window_params = [{transform_indices = @transform_0, window_bounds = array<i64: 1, 342, 128>}, {pipeline_mode = #tpu.pipeline_mode<synchronous>, transform_indices = @transform_1, window_bounds = array<i64: 9, 128, 128>}, {transform_indices = @transform_2, window_bounds = array<i64: 1, 288, 128>}, {transform_indices = @transform_3, window_bounds = array<i64: 1, 2, 128>}]} {
    %c0 = arith.constant 0 : index
    %c0_0 = arith.constant 0 : index
    %c0_1 = arith.constant 0 : index
    %0 = vector.load %arg1[%c0, %c0_0, %c0_1] : memref<1x342x128xf32, #tpu.memory_space<vmem>>, vector<1x288x128xf32>
    %1 = vector.shape_cast %0 : vector<1x288x128xf32> to vector<288x128xf32>
    %c0_2 = arith.constant 0 : index
    %c0_3 = arith.constant 0 : index
    %c0_4 = arith.constant 0 : index
    %2 = vector.load %arg2[%c0_2, %c0_3, %c0_4] : memref<9x128x128xf32, #tpu.memory_space<vmem>>, vector<1x128x128xf32>
    %3 = vector.shape_cast %2 : vector<1x128x128xf32> to vector<128x128xf32>
    %cst = arith.constant dense<0.000000e+00> : vector<288x128xf32>
    %4 = tpu.matmul %1, %3, %cst {dimension_numbers = #tpu.dot_dimension_numbers<[1], [0], [0], [1], [0, 0, 1, 1], [], []>} : vector<288x128xf32>, vector<128x128xf32>, vector<288x128xf32> -> vector<288x128xf32>
    %c0_5 = arith.constant 0 : index
    %c0_6 = arith.constant 0 : index
    %5 = vector.load %arg5[%c0_5, %c0_6] : memref<288x128xf32, #tpu.memory_space<vmem>>, vector<288x128xf32>
    tpu.vector_store %arg5[%c0_5, %c0_6], %4 {strides = array<i32>} : memref<288x128xf32, #tpu.memory_space<vmem>>, vector<288x128xf32>,
    %c0_7 = arith.constant 0 : index
    %c1 = arith.constant 1 : index
    %c0_8 = arith.constant 0 : index
    %6 = vector.load %arg1[%c0_7, %c1, %c0_8] : memref<1x342x128xf32, #tpu.memory_space<vmem>>, vector<1x288x128xf32>
    %7 = vector.shape_cast %6 : vector<1x288x128xf32> to vector<288x128xf32>
    %c1_9 = arith.constant 1 : index
    %c0_10 = arith.constant 0 : index
    %c0_11 = arith.constant 0 : index
    %8 = vector.load %arg2[%c1_9, %c0_10, %c0_11] : memref<9x128x128xf32, #tpu.memory_space<vmem>>, vector<1x128x128xf32>
    %9 = vector.shape_cast %8 : vector<1x128x128xf32> to vector<128x128xf32>
    %cst_12 = arith.constant dense<0.000000e+00> : vector<288x128xf32>
    %10 = tpu.matmul %7, %9, %cst_12 {dimension_numbers = #tpu.dot_dimension_numbers<[1], [0], [0], [1], [0, 0, 1, 1], [], []>} : vector<288x128xf32>, vector<128x128xf32>, vector<288x128xf32> -> vector<288x128xf32>
    %c0_13 = arith.constant 0 : index
    %c0_14 = arith.constant 0 : index
    %11 = vector.load %arg5[%c0_13, %c0_14] : memref<288x128xf32, #tpu.memory_space<vmem>>, vector<288x128xf32>
    %12 = arith.addf %11, %10 : vector<288x128xf32>
    %c0_15 = arith.constant 0 : index
    %c0_16 = arith.constant 0 : index
    %13 = vector.load %arg5[%c0_15, %c0_16] : memref<288x128xf32, #tpu.memory_space<vmem>>, vector<288x128xf32>
    tpu.vector_store %arg5[%c0_15, %c0_16], %12 {strides = array<i32>} : memref<288x128xf32, #tpu.memory_space<vmem>>, vector<288x128xf32>,
    %c0_17 = arith.constant 0 : index
    %c2 = arith.constant 2 : index
    %c0_18 = arith.constant 0 : index
    %14 = vector.load %arg1[%c0_17, %c2, %c0_18] : memref<1x342x128xf32, #tpu.memory_space<vmem>>, vector<1x288x128xf32>
    %15 = vector.shape_cast %14 : vector<1x288x128xf32> to vector<288x128xf32>
    %c2_19 = arith.constant 2 : index
    %c0_20 = arith.constant 0 : index
    %c0_21 = arith.constant 0 : index
    %16 = vector.load %arg2[%c2_19, %c0_20, %c0_21] : memref<9x128x128xf32, #tpu.memory_space<vmem>>, vector<1x128x128xf32>
    %17 = vector.shape_cast %16 : vector<1x128x128xf32> to vector<128x128xf32>
    %cst_22 = arith.constant dense<0.000000e+00> : vector<288x128xf32>
    %18 = tpu.matmul %15, %17, %cst_22 {dimension_numbers = #tpu.dot_dimension_numbers<[1], [0], [0], [1], [0, 0, 1, 1], [], []>} : vector<288x128xf32>, vector<128x128xf32>, vector<288x128xf32> -> vector<288x128xf32>
    %c0_23 = arith.constant 0 : index
    %c0_24 = arith.constant 0 : index
    %19 = vector.load %arg5[%c0_23, %c0_24] : memref<288x128xf32, #tpu.memory_space<vmem>>, vector<288x128xf32>
    %20 = arith.addf %19, %18 : vector<288x128xf32>
    %c0_25 = arith.constant 0 : index
    %c0_26 = arith.constant 0 : index
    %21 = vector.load %arg5[%c0_25, %c0_26] : memref<288x128xf32, #tpu.memory_space<vmem>>, vector<288x128xf32>
    tpu.vector_store %arg5[%c0_25, %c0_26], %20 {strides = array<i32>} : memref<288x128xf32, #tpu.memory_space<vmem>>, vector<288x128xf32>,
    %c0_27 = arith.constant 0 : index
    %c18 = arith.constant 18 : index
    %c0_28 = arith.constant 0 : index
    %22 = vector.load %arg1[%c0_27, %c18, %c0_28] : memref<1x342x128xf32, #tpu.memory_space<vmem>>, vector<1x288x128xf32>
    %23 = vector.shape_cast %22 : vector<1x288x128xf32> to vector<288x128xf32>
    %c3 = arith.constant 3 : index
    %c0_29 = arith.constant 0 : index
    %c0_30 = arith.constant 0 : index
    %24 = vector.load %arg2[%c3, %c0_29, %c0_30] : memref<9x128x128xf32, #tpu.memory_space<vmem>>, vector<1x128x128xf32>
    %25 = vector.shape_cast %24 : vector<1x128x128xf32> to vector<128x128xf32>
    %cst_31 = arith.constant dense<0.000000e+00> : vector<288x128xf32>
    %26 = tpu.matmul %23, %25, %cst_31 {dimension_numbers = #tpu.dot_dimension_numbers<[1], [0], [0], [1], [0, 0, 1, 1], [], []>} : vector<288x128xf32>, vector<128x128xf32>, vector<288x128xf32> -> vector<288x128xf32>
    %c0_32 = arith.constant 0 : index
    %c0_33 = arith.constant 0 : index
    %27 = vector.load %arg5[%c0_32, %c0_33] : memref<288x128xf32, #tpu.memory_space<vmem>>, vector<288x128xf32>
    %28 = arith.addf %27, %26 : vector<288x128xf32>
    %c0_34 = arith.constant 0 : index
    %c0_35 = arith.constant 0 : index
    %29 = vector.load %arg5[%c0_34, %c0_35] : memref<288x128xf32, #tpu.memory_space<vmem>>, vector<288x128xf32>
    tpu.vector_store %arg5[%c0_34, %c0_35], %28 {strides = array<i32>} : memref<288x128xf32, #tpu.memory_space<vmem>>, vector<288x128xf32>,
    %c0_36 = arith.constant 0 : index
    %c19 = arith.constant 19 : index
    %c0_37 = arith.constant 0 : index
    %30 = vector.load %arg1[%c0_36, %c19, %c0_37] : memref<1x342x128xf32, #tpu.memory_space<vmem>>, vector<1x288x128xf32>
    %31 = vector.shape_cast %30 : vector<1x288x128xf32> to vector<288x128xf32>
    %c4 = arith.constant 4 : index
    %c0_38 = arith.constant 0 : index
    %c0_39 = arith.constant 0 : index
    %32 = vector.load %arg2[%c4, %c0_38, %c0_39] : memref<9x128x128xf32, #tpu.memory_space<vmem>>, vector<1x128x128xf32>
    %33 = vector.shape_cast %32 : vector<1x128x128xf32> to vector<128x128xf32>
    %cst_40 = arith.constant dense<0.000000e+00> : vector<288x128xf32>
    %34 = tpu.matmul %31, %33, %cst_40 {dimension_numbers = #tpu.dot_dimension_numbers<[1], [0], [0], [1], [0, 0, 1, 1], [], []>} : vector<288x128xf32>, vector<128x128xf32>, vector<288x128xf32> -> vector<288x128xf32>
    %c0_41 = arith.constant 0 : index
    %c0_42 = arith.constant 0 : index
    %35 = vector.load %arg5[%c0_41, %c0_42] : memref<288x128xf32, #tpu.memory_space<vmem>>, vector<288x128xf32>
    %36 = arith.addf %35, %34 : vector<288x128xf32>
    %c0_43 = arith.constant 0 : index
    %c0_44 = arith.constant 0 : index
    %37 = vector.load %arg5[%c0_43, %c0_44] : memref<288x128xf32, #tpu.memory_space<vmem>>, vector<288x128xf32>
    tpu.vector_store %arg5[%c0_43, %c0_44], %36 {strides = array<i32>} : memref<288x128xf32, #tpu.memory_space<vmem>>, vector<288x128xf32>,
    %c0_45 = arith.constant 0 : index
    %c20 = arith.constant 20 : index
    %c0_46 = arith.constant 0 : index
    %38 = vector.load %arg1[%c0_45, %c20, %c0_46] : memref<1x342x128xf32, #tpu.memory_space<vmem>>, vector<1x288x128xf32>
    %39 = vector.shape_cast %38 : vector<1x288x128xf32> to vector<288x128xf32>
    %c5 = arith.constant 5 : index
    %c0_47 = arith.constant 0 : index
    %c0_48 = arith.constant 0 : index
    %40 = vector.load %arg2[%c5, %c0_47, %c0_48] : memref<9x128x128xf32, #tpu.memory_space<vmem>>, vector<1x128x128xf32>
    %41 = vector.shape_cast %40 : vector<1x128x128xf32> to vector<128x128xf32>
    %cst_49 = arith.constant dense<0.000000e+00> : vector<288x128xf32>
    %42 = tpu.matmul %39, %41, %cst_49 {dimension_numbers = #tpu.dot_dimension_numbers<[1], [0], [0], [1], [0, 0, 1, 1], [], []>} : vector<288x128xf32>, vector<128x128xf32>, vector<288x128xf32> -> vector<288x128xf32>
    %c0_50 = arith.constant 0 : index
    %c0_51 = arith.constant 0 : index
    %43 = vector.load %arg5[%c0_50, %c0_51] : memref<288x128xf32, #tpu.memory_space<vmem>>, vector<288x128xf32>
    %44 = arith.addf %43, %42 : vector<288x128xf32>
    %c0_52 = arith.constant 0 : index
    %c0_53 = arith.constant 0 : index
    %45 = vector.load %arg5[%c0_52, %c0_53] : memref<288x128xf32, #tpu.memory_space<vmem>>, vector<288x128xf32>
    tpu.vector_store %arg5[%c0_52, %c0_53], %44 {strides = array<i32>} : memref<288x128xf32, #tpu.memory_space<vmem>>, vector<288x128xf32>,
    %c0_54 = arith.constant 0 : index
    %c36 = arith.constant 36 : index
    %c0_55 = arith.constant 0 : index
    %46 = vector.load %arg1[%c0_54, %c36, %c0_55] : memref<1x342x128xf32, #tpu.memory_space<vmem>>, vector<1x288x128xf32>
    %47 = vector.shape_cast %46 : vector<1x288x128xf32> to vector<288x128xf32>
    %c6 = arith.constant 6 : index
    %c0_56 = arith.constant 0 : index
    %c0_57 = arith.constant 0 : index
    %48 = vector.load %arg2[%c6, %c0_56, %c0_57] : memref<9x128x128xf32, #tpu.memory_space<vmem>>, vector<1x128x128xf32>
    %49 = vector.shape_cast %48 : vector<1x128x128xf32> to vector<128x128xf32>
    %cst_58 = arith.constant dense<0.000000e+00> : vector<288x128xf32>
    %50 = tpu.matmul %47, %49, %cst_58 {dimension_numbers = #tpu.dot_dimension_numbers<[1], [0], [0], [1], [0, 0, 1, 1], [], []>} : vector<288x128xf32>, vector<128x128xf32>, vector<288x128xf32> -> vector<288x128xf32>
    %c0_59 = arith.constant 0 : index
    %c0_60 = arith.constant 0 : index
    %51 = vector.load %arg5[%c0_59, %c0_60] : memref<288x128xf32, #tpu.memory_space<vmem>>, vector<288x128xf32>
    %52 = arith.addf %51, %50 : vector<288x128xf32>
    %c0_61 = arith.constant 0 : index
    %c0_62 = arith.constant 0 : index
    %53 = vector.load %arg5[%c0_61, %c0_62] : memref<288x128xf32, #tpu.memory_space<vmem>>, vector<288x128xf32>
    tpu.vector_store %arg5[%c0_61, %c0_62], %52 {strides = array<i32>} : memref<288x128xf32, #tpu.memory_space<vmem>>, vector<288x128xf32>,
    %c0_63 = arith.constant 0 : index
    %c37 = arith.constant 37 : index
    %c0_64 = arith.constant 0 : index
    %54 = vector.load %arg1[%c0_63, %c37, %c0_64] : memref<1x342x128xf32, #tpu.memory_space<vmem>>, vector<1x288x128xf32>
    %55 = vector.shape_cast %54 : vector<1x288x128xf32> to vector<288x128xf32>
    %c7 = arith.constant 7 : index
    %c0_65 = arith.constant 0 : index
    %c0_66 = arith.constant 0 : index
    %56 = vector.load %arg2[%c7, %c0_65, %c0_66] : memref<9x128x128xf32, #tpu.memory_space<vmem>>, vector<1x128x128xf32>
    %57 = vector.shape_cast %56 : vector<1x128x128xf32> to vector<128x128xf32>
    %cst_67 = arith.constant dense<0.000000e+00> : vector<288x128xf32>
    %58 = tpu.matmul %55, %57, %cst_67 {dimension_numbers = #tpu.dot_dimension_numbers<[1], [0], [0], [1], [0, 0, 1, 1], [], []>} : vector<288x128xf32>, vector<128x128xf32>, vector<288x128xf32> -> vector<288x128xf32>
    %c0_68 = arith.constant 0 : index
    %c0_69 = arith.constant 0 : index
    %59 = vector.load %arg5[%c0_68, %c0_69] : memref<288x128xf32, #tpu.memory_space<vmem>>, vector<288x128xf32>
    %60 = arith.addf %59, %58 : vector<288x128xf32>
    %c0_70 = arith.constant 0 : index
    %c0_71 = arith.constant 0 : index
    %61 = vector.load %arg5[%c0_70, %c0_71] : memref<288x128xf32, #tpu.memory_space<vmem>>, vector<288x128xf32>
    tpu.vector_store %arg5[%c0_70, %c0_71], %60 {strides = array<i32>} : memref<288x128xf32, #tpu.memory_space<vmem>>, vector<288x128xf32>,
    %c0_72 = arith.constant 0 : index
    %c38 = arith.constant 38 : index
    %c0_73 = arith.constant 0 : index
    %62 = vector.load %arg1[%c0_72, %c38, %c0_73] : memref<1x342x128xf32, #tpu.memory_space<vmem>>, vector<1x288x128xf32>
    %63 = vector.shape_cast %62 : vector<1x288x128xf32> to vector<288x128xf32>
    %c8 = arith.constant 8 : index
    %c0_74 = arith.constant 0 : index
    %c0_75 = arith.constant 0 : index
    %64 = vector.load %arg2[%c8, %c0_74, %c0_75] : memref<9x128x128xf32, #tpu.memory_space<vmem>>, vector<1x128x128xf32>
    %65 = vector.shape_cast %64 : vector<1x128x128xf32> to vector<128x128xf32>
    %cst_76 = arith.constant dense<0.000000e+00> : vector<288x128xf32>
    %66 = tpu.matmul %63, %65, %cst_76 {dimension_numbers = #tpu.dot_dimension_numbers<[1], [0], [0], [1], [0, 0, 1, 1], [], []>} : vector<288x128xf32>, vector<128x128xf32>, vector<288x128xf32> -> vector<288x128xf32>
    %c0_77 = arith.constant 0 : index
    %c0_78 = arith.constant 0 : index
    %67 = vector.load %arg5[%c0_77, %c0_78] : memref<288x128xf32, #tpu.memory_space<vmem>>, vector<288x128xf32>
    %68 = arith.addf %67, %66 : vector<288x128xf32>
    %c0_79 = arith.constant 0 : index
    %c0_80 = arith.constant 0 : index
    %69 = vector.load %arg5[%c0_79, %c0_80] : memref<288x128xf32, #tpu.memory_space<vmem>>, vector<288x128xf32>
    tpu.vector_store %arg5[%c0_79, %c0_80], %68 {strides = array<i32>} : memref<288x128xf32, #tpu.memory_space<vmem>>, vector<288x128xf32>,
    %c0_81 = arith.constant 0 : index
    %c0_82 = arith.constant 0 : index
    %70 = vector.load %arg5[%c0_81, %c0_82] : memref<288x128xf32, #tpu.memory_space<vmem>>, vector<288x128xf32>
    %c0_83 = arith.constant 0 : index
    %c0_84 = arith.constant 0 : index
    %c0_85 = arith.constant 0 : index
    %71 = vector.load %arg3[%c0_83, %c0_84, %c0_85] : memref<1x288x128xf32, #tpu.memory_space<vmem>>, vector<1x288x128xf32>
    %72 = vector.shape_cast %71 : vector<1x288x128xf32> to vector<288x128xf32>
    %73 = vector.shape_cast %70 : vector<288x128xf32> to vector<1x288x128xf32>
    tpu.vector_store %arg3[%c0_83, %c0_84, %c0_85], %73 {strides = array<i32>} : memref<1x288x128xf32, #tpu.memory_space<vmem>>, vector<1x288x128xf32>,
    %74 = tpu.iota {dimensions = array<i32: 0>} : vector<288x128xi32>
    %c18_i32 = arith.constant 18 : i32
    %c0_i32 = arith.constant 0 : i32
    %75 = arith.cmpi eq, %c18_i32, %c0_i32 : i32
    %c1_i32 = arith.constant 1 : i32
    %76 = arith.select %75, %c1_i32, %c18_i32 : i32
    %77 = vector.broadcast %76 : i32 to vector<288x128xi32>
    %78 = arith.remsi %74, %77 : vector<288x128xi32>
    %c0_i32_86 = arith.constant 0 : i32
    %79 = vector.broadcast %c0_i32_86 : i32 to vector<288x128xi32>
    %80 = arith.cmpi ne, %78, %79 : vector<288x128xi32>
    %c0_i32_87 = arith.constant 0 : i32
    %81 = vector.broadcast %c0_i32_87 : i32 to vector<288x128xi32>
    %82 = arith.cmpi slt, %78, %81 : vector<288x128xi32>
    %c0_i32_88 = arith.constant 0 : i32
    %83 = arith.cmpi slt, %76, %c0_i32_88 : i32
    %84 = vector.broadcast %83 : i1 to vector<288x128xi1>
    %85 = vector.broadcast %84 : vector<288x128xi1> to vector<288x128xi1>
    %86 = arith.xori %82, %85 : vector<288x128xi1>
    %87 = arith.andi %86, %80 : vector<288x128xi1>
    %88 = vector.broadcast %76 : i32 to vector<288x128xi32>
    %89 = arith.addi %78, %88 : vector<288x128xi32>
    %90 = arith.select %87, %89, %78 : vector<288x128xi1>, vector<288x128xi32>
    %c16_i32 = arith.constant 16 : i32
    %91 = vector.broadcast %c16_i32 : i32 to vector<288x128xi32>
    %92 = arith.cmpi slt, %90, %91 : vector<288x128xi32>
    %cst_89 = arith.constant 0.000000e+00 : f32
    %93 = vector.broadcast %cst_89 : f32 to vector<288x128xf32>
    %94 = arith.select %92, %70, %93 : vector<288x128xi1>, vector<288x128xf32>
    %cst_90 = arith.constant dense<0.000000e+00> : vector<128xf32>
    %95 = vector.multi_reduction <add>, %94, %cst_90 [0] : vector<288x128xf32> to vector<128xf32>
    %96 = vector.shape_cast %95 : vector<128xf32> to vector<1x128xf32>
    %97 = arith.mulf %94, %70 : vector<288x128xf32>
    %cst_91 = arith.constant dense<0.000000e+00> : vector<128xf32>
    %98 = vector.multi_reduction <add>, %97, %cst_91 [0] : vector<288x128xf32> to vector<128xf32>
    %99 = vector.shape_cast %98 : vector<128xf32> to vector<1x128xf32>
    %100 = tpu.concatenate %96, %99 in 0 : vector<1x128xf32>, vector<1x128xf32> -> vector<2x128xf32>
    %c0_92 = arith.constant 0 : index
    %c0_93 = arith.constant 0 : index
    %c0_94 = arith.constant 0 : index
    %101 = vector.load %arg4[%c0_92, %c0_93, %c0_94] : memref<1x2x128xf32, #tpu.memory_space<vmem>>, vector<1x2x128xf32>
    %102 = vector.shape_cast %101 : vector<1x2x128xf32> to vector<2x128xf32>
    %103 = vector.shape_cast %100 : vector<2x128xf32> to vector<1x2x128xf32>
    tpu.vector_store %arg4[%c0_92, %c0_93, %c0_94], %103 {strides = array<i32>} : memref<1x2x128xf32, #tpu.memory_space<vmem>>, vector<1x2x128xf32>,
    return
  }
  func.func @transform_0(%arg0: i32) -> (i32, i32, i32) {
    %c0_i32 = arith.constant 0 : i32
    %c0_i32_0 = arith.constant 0 : i32
    %c0_i32_1 = arith.constant 0 : i32
    return %arg0, %c0_i32, %c0_i32_0 : i32, i32, i32
  }
  func.func @transform_1(%arg0: i32) -> (i32, i32, i32) {
    %c0_i32 = arith.constant 0 : i32
    %c0_i32_0 = arith.constant 0 : i32
    %c0_i32_1 = arith.constant 0 : i32
    %c0_i32_2 = arith.constant 0 : i32
    return %c0_i32, %c0_i32_0, %c0_i32_1 : i32, i32, i32
  }
  func.func @transform_2(%arg0: i32) -> (i32, i32, i32) {
    %c0_i32 = arith.constant 0 : i32
    %c0_i32_0 = arith.constant 0 : i32
    %c0_i32_1 = arith.constant 0 : i32
    return %arg0, %c0_i32, %c0_i32_0 : i32, i32, i32
  }
  func.func @transform_3(%arg0: i32) -> (i32, i32, i32) {
    %c0_i32 = arith.constant 0 : i32
    %c0_i32_0 = arith.constant 0 : i32
    %c0_i32_1 = arith.constant 0 : i32
    return %arg0, %c0_i32, %c0_i32_0 : i32, i32, i32
  }
}

</mosaic_0001>

<llo_original>
// kernel: tpu_custom_call.1
$region0: #{tpu_custom_call.1}
  #allocation0 [shape = 'u32[]', space=smem, size = 0x4, offset = 0x4, fixed_abs, tag = 'smem constant byte address 0x4 - core index']
  #allocation1 [shape = 'u32[144,128]{1,0:T(1,128)}', space=vmem, size = 0x12000, scoped, tag = 'internal scratch']
  #allocation2 [shape = 'f32[288,128]{1,0:T(8,128)}', space=vmem, size = 0x24000, scoped, tag = 'scratch operand']
  %s0 = inlined_call_operand.vmem [shape: f32[2,342,128], index: 0, kind: input, shape index: {}]
  %s1 = inlined_call_operand.vmem [shape: f32[9,128,128], index: 1, kind: input, shape index: {}]
  %s2 = inlined_call_operand.hbm [shape: f32[2,288,128], index: 2, kind: output, shape index: {0}]
  %s3 = inlined_call_operand.hbm [shape: f32[2,2,128], index: 3, kind: output, shape index: {1}]
  %4 = xla_tuple %s2, %s3
  %s5 = sld [smem:[#allocation0]]
  $region49: #{tpu_custom_call.1} parent=0
    _
  %s7 = ssub.s32 1, %s5
  %s8 = scalar_select 0, %s7, %s5
  $region1: #{tpu_custom_call.1} parent=0
    #allocation3 [shape = 'u8[294912]{0}', space=vmem, size = 0x48000, scoped, tag = 'output window, operand 0']
    #allocation4 [shape = 's32[2]{0}', space=sflag, size = 0x8, scoped, tag = 'scoped memory for tpu_custom_call.1']
    #allocation5 [shape = 'u8[2048]{0}', space=vmem, size = 0x800, scoped, tag = 'output window, operand 1']
    #allocation6 [shape = 's32[2]{0}', space=sflag, size = 0x8, scoped, tag = 'scoped memory for tpu_custom_call.1']
    %9 = vsyncpa [#allocation4], 0
    %s10 = scalar_lea.sflag [#allocation4], 1
    %11 = vsyncpa %s10, 0
    %12 = vsyncpa [#allocation6], 0
    %s13 = scalar_lea.sflag [#allocation6], 1
    %14 = vsyncpa %s13, 0
    loop: start=0, step=1, limit=4
    $region2: #{tpu_custom_call.1} parent=1 // loop_pre_header
      _
    $region3: #{tpu_custom_call.1} parent=1 // loop_header
      %s16 = sphi 0, %s20
      %p17 = scmp.ge.s32.totalorder %s16, 4
      %s26 = sphi 0, %s28
      %s29 = sphi 0, %s26
      %s30 = sphi 0, %s29
      %s46 = sphi 0, %s30
      %s50 = sphi 0, %s50
      %s52 = sphi 0, %s50
      %s53 = sphi 0, %s52
      %s67 = sphi 0, %s53
      %s73 = sphi 0, %s75
      %s76 = sphi 0, %s73
      %s77 = sphi 0, %s76
      %s93 = sphi 0, %s77
      %s99 = sphi 0, %s101
      %s102 = sphi 0, %s99
      %s103 = sphi 0, %s102
      %s119 = sphi 0, %s103
    $region4: #{tpu_custom_call.1} parent=1 // loop_header_branch
      %19 = sbr.rel (%p17) target = $region8
    $region5: #{tpu_custom_call.1} parent=1 // loop_body
      %s21 = ssub.s32 %s16, 1
      %s22 = ssub.s32 %s16, 2
      %s23 = sadd.s32 %s16, 1
      %s24 = ssub.s32 %s16, %s23
      %p25 = scmp.eq.s32.totalorder %s24, 0
      %s27 = sadd.s32 %s26, 1
      %s28 = scalar_select %p25, %s26, %s27
      %p31 = pneg %p25
      %p32 = scmp.eq.s32.totalorder %s16, 1
      %p33 = por %p31, %p32
      %p34 = scmp.ne.s32.totalorder %s26, %s29
      %p35 = scmp.eq.s32.totalorder %s16, 0
      %p36 = por %p34, %p35
      %p37 = scmp.ne.s32.totalorder %s26, %s29
      %p38 = scmp.eq.s32.totalorder %s21, 1
      %p39 = por %p37, %p38
      %p40 = scmp.ne.s32.totalorder %s29, %s30
      %p41 = scmp.eq.s32.totalorder %s21, 0
      %p42 = por %p40, %p41
      %p43 = scmp.ne.s32.totalorder %s29, %s30
      %p44 = scmp.eq.s32.totalorder %s22, 1
      %p45 = por %p43, %p44
      %p47 = scmp.ne.s32.totalorder %s30, %s46
      %p48 = scmp.eq.s32.totalorder %s22, 0
      %p49 = por %p47, %p48
      %s51 = sadd.s32 %s50, 1
      %p54 = scmp.eq.s32.totalorder %s16, 1
      %p55 = scmp.ne.s32.totalorder %s50, %s52
      %p56 = scmp.eq.s32.totalorder %s16, 0
      %p57 = por %p55, %p56
      %p58 = scmp.ne.s32.totalorder %s50, %s52
      %p59 = scmp.eq.s32.totalorder %s21, 1
      %p60 = por %p58, %p59
      %p61 = scmp.ne.s32.totalorder %s52, %s53
      %p62 = scmp.eq.s32.totalorder %s21, 0
      %p63 = por %p61, %p62
      %p64 = scmp.ne.s32.totalorder %s52, %s53
      %p65 = scmp.eq.s32.totalorder %s22, 1
      %p66 = por %p64, %p65
      %p68 = scmp.ne.s32.totalorder %s53, %s67
      %p69 = scmp.eq.s32.totalorder %s22, 0
      %p70 = por %p68, %p69
      %s71 = ssub.s32 %s16, %s23
      %p72 = scmp.eq.s32.totalorder %s71, 0
      %s74 = sadd.s32 %s73, 1
      %s75 = scalar_select %p72, %s73, %s74
      %p78 = pneg %p72
      %p79 = scmp.eq.s32.totalorder %s16, 1
      %p80 = por %p78, %p79
      %p81 = scmp.ne.s32.totalorder %s73, %s76
      %p82 = scmp.eq.s32.totalorder %s16, 0
      %p83 = por %p81, %p82
      %p84 = scmp.ne.s32.totalorder %s73, %s76
      %p85 = scmp.eq.s32.totalorder %s21, 1
      %p86 = por %p84, %p85
      %p87 = scmp.ne.s32.totalorder %s76, %s77
      %p88 = scmp.eq.s32.totalorder %s21, 0
      %p89 = por %p87, %p88
      %p90 = scmp.ne.s32.totalorder %s76, %s77
      %p91 = scmp.eq.s32.totalorder %s22, 1
      %p92 = por %p90, %p91
      %p94 = scmp.ne.s32.totalorder %s77, %s93
      %p95 = scmp.eq.s32.totalorder %s22, 0
      %p96 = por %p94, %p95
      %s97 = ssub.s32 %s16, %s23
      %p98 = scmp.eq.s32.totalorder %s97, 0
      %s100 = sadd.s32 %s99, 1
      %s101 = scalar_select %p98, %s99, %s100
      %p104 = pneg %p98
      %p105 = scmp.eq.s32.totalorder %s16, 1
      %p106 = por %p104, %p105
      %p107 = scmp.ne.s32.totalorder %s99, %s102
      %p108 = scmp.eq.s32.totalorder %s16, 0
      %p109 = por %p107, %p108
      %p110 = scmp.ne.s32.totalorder %s99, %s102
      %p111 = scmp.eq.s32.totalorder %s21, 1
      %p112 = por %p110, %p111
      %p113 = scmp.ne.s32.totalorder %s102, %s103
      %p114 = scmp.eq.s32.totalorder %s21, 0
      %p115 = por %p113, %p114
      %p116 = scmp.ne.s32.totalorder %s102, %s103
      %p117 = scmp.eq.s32.totalorder %s22, 1
      %p118 = por %p116, %p117
      %p120 = scmp.ne.s32.totalorder %s103, %s119
      %p121 = scmp.eq.s32.totalorder %s22, 0
      %p122 = por %p120, %p121
      %p123 = scmp.le.s32.totalorder 1, %s16
      %p124 = scmp.lt.s32.totalorder %s16, 3
      %p125 = pnand %p123, %p124
      %p126 = pneg %p125
      // Predicated region
      $region9: #{tpu_custom_call.1} parent=5 // pred_check
        _
      $region10: #{tpu_custom_call.1} parent=5 // pred_check_branch
        %128 = sbr.rel (%p125) target = $region12
      $region11: #{tpu_custom_call.1} parent=5 // pred_region
        %s129 = ssub.s32 %s16, 1
        // Predicated region
        $region13: #{tpu_custom_call.1} parent=11 // pred_check
          %p130 = pneg %p63
        $region14: #{tpu_custom_call.1} parent=11 // pred_check_branch
          %132 = sbr.rel (%p130) target = $region16
        $region15: #{tpu_custom_call.1} parent=11 // pred_region
          _
        $region16: #{tpu_custom_call.1} parent=11 // pred_fallthru
          _
      $region12: #{tpu_custom_call.1} parent=5 // pred_fallthru
        _
      %p133 = scmp.lt.s32.totalorder %s16, 2
      // Predicated region
      $region17: #{tpu_custom_call.1} parent=5 // pred_check
        %p134 = pneg %p133
      $region18: #{tpu_custom_call.1} parent=5 // pred_check_branch
        %136 = sbr.rel (%p134) target = $region20
      $region19: #{tpu_custom_call.1} parent=5 // pred_region
        // Predicated region
        $region21: #{tpu_custom_call.1} parent=19 // pred_check
          %p137 = pneg %p36
        $region22: #{tpu_custom_call.1} parent=19 // pred_check_branch
          %139 = sbr.rel (%p137) target = $region24
        $region23: #{tpu_custom_call.1} parent=19 // pred_region
          %p140 = scmp.lt.s32.totalorder %s16, 1
          %s141 = scalar_select %p140, %s16, 1
          %s142 = smul.addr %s141, 43
          %s143 = smul.addr %s142, 8
          %s144 = scalar_lea.vmem %s0, %s143
        $region24: #{tpu_custom_call.1} parent=19 // pred_fallthru
          _
      $region20: #{tpu_custom_call.1} parent=5 // pred_fallthru
        _
      %p145 = scmp.le.s32.totalorder 1, %s16
      %p146 = scmp.lt.s32.totalorder %s16, 3
      %p147 = pnand %p145, %p146
      %p148 = pneg %p147
      // Predicated region
      $region25: #{tpu_custom_call.1} parent=5 // pred_check
        _
      $region26: #{tpu_custom_call.1} parent=5 // pred_check_branch
        %150 = sbr.rel (%p147) target = $region28
      $region27: #{tpu_custom_call.1} parent=5 // pred_region
        %s151 = ssub.s32 %s16, 1
        %p152 = scmp.lt.s32.totalorder %s21, 1
        %s153 = scalar_select %p152, %s21, 1
        %s154 = smul.addr %s153, 43
        %s155 = smul.addr %s154, 8
        %s156 = scalar_lea.vmem %s0, %s155
        %p157 = pneg %p42
        %p158 = pneg %p39
        %p159 = pneg %p63
        %p160 = pneg %p60
        %p161 = pneg %p89
        %p162 = pneg %p86
        %s163 = sand.u32 %s76, 1
        %s164 = scalar_lea.sflag [#allocation4], %s163
        %s165 = sand.u32 %s76, 1
        %s166 = smul.addr %s165, 288
        %s167 = scalar_lea.vmem [#allocation3], %s166
        %p168 = pneg %p115
        %p169 = pneg %p112
        %s170 = sand.u32 %s102, 1
        %s171 = scalar_lea.sflag [#allocation6], %s170
        %s172 = sand.u32 %s102, 1
        %s173 = smul.addr %s172, 2
        %s174 = scalar_lea.vmem [#allocation5], %s173
        %p175 = scmp.lt.s32.totalorder %s21, 1
        %s176 = scalar_select %p175, %s21, 1
        %s177 = smul.addr %s176, 43
        %s178 = smul.addr %s177, 8
        %s179 = scalar_lea.vmem %s0, %s178
        %v180 = vld [vmem:[%s179] sm:$0xff]
        %v181 = vld [vmem:[%s179 + $0x8] sm:$0xff]
        %v182 = vld [vmem:[%s179 + $0x10] sm:$0xff]
        %v183 = vld [vmem:[%s179 + $0x18] sm:$0xff]
        %v184 = vld [vmem:[%s179 + $0x20] sm:$0xff]
        %v185 = vld [vmem:[%s179 + $0x28] sm:$0xff]
        %v186 = vld [vmem:[%s179 + $0x30] sm:$0xff]
        %v187 = vld [vmem:[%s179 + $0x38] sm:$0xff]
        %v188 = vld [vmem:[%s179 + $0x40] sm:$0xff]
        %v189 = vld [vmem:[%s179 + $0x48] sm:$0xff]
        %v190 = vld [vmem:[%s179 + $0x50] sm:$0xff]
        %v191 = vld [vmem:[%s179 + $0x58] sm:$0xff]
        %v192 = vld [vmem:[%s179 + $0x60] sm:$0xff]
        %v193 = vld [vmem:[%s179 + $0x68] sm:$0xff]
        %v194 = vld [vmem:[%s179 + $0x70] sm:$0xff]
        %v195 = vld [vmem:[%s179 + $0x78] sm:$0xff]
        %v196 = vld [vmem:[%s179 + $0x80] sm:$0xff]
        %v197 = vld [vmem:[%s179 + $0x88] sm:$0xff]
        %v198 = vld [vmem:[%s179 + $0x90] sm:$0xff]
        %v199 = vld [vmem:[%s179 + $0x98] sm:$0xff]
        %v200 = vld [vmem:[%s179 + $0xa0] sm:$0xff]
        %v201 = vld [vmem:[%s179 + $0xa8] sm:$0xff]
        %v202 = vld [vmem:[%s179 + $0xb0] sm:$0xff]
        %v203 = vld [vmem:[%s179 + $0xb8] sm:$0xff]
        %v204 = vld [vmem:[%s179 + $0xc0] sm:$0xff]
        %v205 = vld [vmem:[%s179 + $0xc8] sm:$0xff]
        %v206 = vld [vmem:[%s179 + $0xd0] sm:$0xff]
        %v207 = vld [vmem:[%s179 + $0xd8] sm:$0xff]
        %v208 = vld [vmem:[%s179 + $0xe0] sm:$0xff]
        %v209 = vld [vmem:[%s179 + $0xe8] sm:$0xff]
        %v210 = vld [vmem:[%s179 + $0xf0] sm:$0xff]
        %v211 = vld [vmem:[%s179 + $0xf8] sm:$0xff]
        %v212 = vld [vmem:[%s179 + $0x100] sm:$0xff]
        %v213 = vld [vmem:[%s179 + $0x108] sm:$0xff]
        %v214 = vld [vmem:[%s179 + $0x110] sm:$0xff]
        %v215 = vld [vmem:[%s179 + $0x118] sm:$0xff]
        %v216 = vld [vmem:[%s1] sm:$0xff]
        %v217 = vld [vmem:[%s1 + $0x8] sm:$0xff]
        %v218 = vld [vmem:[%s1 + $0x10] sm:$0xff]
        %v219 = vld [vmem:[%s1 + $0x18] sm:$0xff]
        %v220 = vld [vmem:[%s1 + $0x20] sm:$0xff]
        %v221 = vld [vmem:[%s1 + $0x28] sm:$0xff]
        %v222 = vld [vmem:[%s1 + $0x30] sm:$0xff]
        %v223 = vld [vmem:[%s1 + $0x38] sm:$0xff]
        %v224 = vld [vmem:[%s1 + $0x40] sm:$0xff]
        %v225 = vld [vmem:[%s1 + $0x48] sm:$0xff]
        %v226 = vld [vmem:[%s1 + $0x50] sm:$0xff]
        %v227 = vld [vmem:[%s1 + $0x58] sm:$0xff]
        %v228 = vld [vmem:[%s1 + $0x60] sm:$0xff]
        %v229 = vld [vmem:[%s1 + $0x68] sm:$0xff]
        %v230 = vld [vmem:[%s1 + $0x70] sm:$0xff]
        %v231 = vld [vmem:[%s1 + $0x78] sm:$0xff]
        %232 = vmatprep.subr.mxu0 0.0
        %233 = vmatpush1.msra.mxu0 %v216
        %234 = vmatprep.subr.mxu0 0.0
        %235 = vmatpush1.msra.mxu0 %v217
        %236 = vmatprep.subr.mxu0 0.0
        %237 = vmatpush1.msra.mxu0 %v218
        %238 = vmatprep.subr.mxu0 0.0
        %239 = vmatpush1.msra.mxu0 %v219
        %240 = vmatprep.subr.mxu0 0.0
        %241 = vmatpush1.msra.mxu0 %v220
        %242 = vmatprep.subr.mxu0 0.0
        %243 = vmatpush1.msra.mxu0 %v221
        %244 = vmatprep.subr.mxu0 0.0
        %245 = vmatpush1.msra.mxu0 %v222
        %246 = vmatprep.subr.mxu0 0.0
        %247 = vmatpush1.msra.mxu0 %v223
        %248 = vmatprep.subr.mxu0 0.0
        %249 = vmatpush1.msra.mxu0 %v224
        %250 = vmatprep.subr.mxu0 0.0
        %251 = vmatpush1.msra.mxu0 %v225
        %252 = vmatprep.subr.mxu0 0.0
        %253 = vmatpush1.msra.mxu0 %v226
        %254 = vmatprep.subr.mxu0 0.0
        %255 = vmatpush1.msra.mxu0 %v227
        %256 = vmatprep.subr.mxu0 0.0
        %257 = vmatpush1.msra.mxu0 %v228
        %258 = vmatprep.subr.mxu0 0.0
        %259 = vmatpush1.msra.mxu0 %v229
        %260 = vmatprep.subr.mxu0 0.0
        %261 = vmatpush1.msra.mxu0 %v230
        %262 = vmatprep.subr.mxu0 0.0
        %263 = vmatpush1.msra.mxu0 %v231
        %264 = vmatprep.subr.mxu0 0.0
        %265 = vmatpush1.msra.mxu0 0.0
        %266 = vmatprep.subr.mxu0 0.0
        %267 = vmatpush1.msra.mxu0 0.0
        %268 = vmatprep.subr.mxu0 0.0
        %269 = vmatpush1.msra.mxu0 0.0
        %270 = vmatprep.subr.mxu0 0.0
        %271 = vmatpush1.msra.mxu0 0.0
        %272 = vmatprep.subr.mxu0 0.0
        %273 = vmatpush1.msra.mxu0 0.0
        %274 = vmatprep.subr.mxu0 0.0
        %275 = vmatpush1.msra.mxu0 0.0
        %276 = vmatprep.subr.mxu0 0.0
        %277 = vmatpush1.msra.mxu0 0.0
        %278 = vmatprep.subr.mxu0 0.0
        %279 = vmatpush1.msra.mxu0 0.0
        %280 = vmatprep.subr.mxu0 0.0
        %281 = vmatpush1.msra.mxu0 0.0
        %282 = vmatprep.subr.mxu0 0.0
        %283 = vmatpush1.msra.mxu0 0.0
        %284 = vmatprep.subr.mxu0 0.0
        %285 = vmatpush1.msra.mxu0 0.0
        %286 = vmatprep.subr.mxu0 0.0
        %287 = vmatpush1.msra.mxu0 0.0
        %288 = vmatprep.subr.mxu0 0.0
        %289 = vmatpush1.msra.mxu0 0.0
        %290 = vmatprep.subr.mxu0 0.0
        %291 = vmatpush1.msra.mxu0 0.0
        %292 = vmatprep.subr.mxu0 0.0
        %293 = vmatpush1.msra.mxu0 0.0
        %294 = vmatprep.subr.mxu0 0.0
        %295 = vmatpush1.msra.mxu0 0.0
        %296 = vmatprep.mubr.f32.mxu0 0.0
        %297 = vmatmul.mubr.f32.gmra.mrb[0].mxu0 %v180
        %v298 = vpop.f32.mrb[0].mxu0
        %v299 = vadd.f32 0.0, %v298
        %v300 = vpop.f32.mrb[0].mxu0
        %301 = vmatprep.mubr.f32.mxu0 0.0
        %302 = vmatmul.mubr.f32.gmra.mrb[0].mxu0 %v181
        %v303 = vpop.f32.mrb[0].mxu0
        %v304 = vadd.f32 0.0, %v303
        %v305 = vpop.f32.mrb[0].mxu0
        %306 = vmatprep.mubr.f32.mxu0 0.0
        %307 = vmatmul.mubr.f32.gmra.mrb[0].mxu0 %v182
        %v308 = vpop.f32.mrb[0].mxu0
        %v309 = vadd.f32 0.0, %v308
        %v310 = vpop.f32.mrb[0].mxu0
        %311 = vmatprep.mubr.f32.mxu0 0.0
        %312 = vmatmul.mubr.f32.gmra.mrb[0].mxu0 %v183
        %v313 = vpop.f32.mrb[0].mxu0
        %v314 = vadd.f32 0.0, %v313
        %v315 = vpop.f32.mrb[0].mxu0
        %316 = vmatprep.mubr.f32.mxu0 0.0
        %317 = vmatmul.mubr.f32.gmra.mrb[0].mxu0 %v184
        %v318 = vpop.f32.mrb[0].mxu0
        %v319 = vadd.f32 0.0, %v318
        %v320 = vpop.f32.mrb[0].mxu0
        %321 = vmatprep.mubr.f32.mxu0 0.0
        %322 = vmatmul.mubr.f32.gmra.mrb[0].mxu0 %v185
        %v323 = vpop.f32.mrb[0].mxu0
        %v324 = vadd.f32 0.0, %v323
        %v325 = vpop.f32.mrb[0].mxu0
        %326 = vmatprep.mubr.f32.mxu0 0.0
        %327 = vmatmul.mubr.f32.gmra.mrb[0].mxu0 %v186
        %v328 = vpop.f32.mrb[0].mxu0
        %v329 = vadd.f32 0.0, %v328
        %v330 = vpop.f32.mrb[0].mxu0
        %331 = vmatprep.mubr.f32.mxu0 0.0
        %332 = vmatmul.mubr.f32.gmra.mrb[0].mxu0 %v187
        %v333 = vpop.f32.mrb[0].mxu0
        %v334 = vadd.f32 0.0, %v333
        %v335 = vpop.f32.mrb[0].mxu0
        %336 = vmatprep.mubr.f32.mxu0 0.0
        %337 = vmatmul.mubr.f32.gmra.mrb[0].mxu0 %v188
        %v338 = vpop.f32.mrb[0].mxu0
        %v339 = vadd.f32 0.0, %v338
        %v340 = vpop.f32.mrb[0].mxu0
        %341 = vmatprep.mubr.f32.mxu0 0.0
        %342 = vmatmul.mubr.f32.gmra.mrb[0].mxu0 %v189
        %v343 = vpop.f32.mrb[0].mxu0
        %v344 = vadd.f32 0.0, %v343
        %v345 = vpop.f32.mrb[0].mxu0
        %346 = vmatprep.mubr.f32.mxu0 0.0
        %347 = vmatmul.mubr.f32.gmra.mrb[0].mxu0 %v190
        %v348 = vpop.f32.mrb[0].mxu0
        %v349 = vadd.f32 0.0, %v348
        %v350 = vpop.f32.mrb[0].mxu0
        %351 = vmatprep.mubr.f32.mxu0 0.0
        %352 = vmatmul.mubr.f32.gmra.mrb[0].mxu0 %v191
        %v353 = vpop.f32.mrb[0].mxu0
        %v354 = vadd.f32 0.0, %v353
        %v355 = vpop.f32.mrb[0].mxu0
        %356 = vmatprep.mubr.f32.mxu0 0.0
        %357 = vmatmul.mubr.f32.gmra.mrb[0].mxu0 %v192
        %v358 = vpop.f32.mrb[0].mxu0
        %v359 = vadd.f32 0.0, %v358
        %v360 = vpop.f32.mrb[0].mxu0
        %361 = vmatprep.mubr.f32.mxu0 0.0
        %362 = vmatmul.mubr.f32.gmra.mrb[0].mxu0 %v193
        %v363 = vpop.f32.mrb[0].mxu0
        %v364 = vadd.f32 0.0, %v363
        %v365 = vpop.f32.mrb[0].mxu0
        %366 = vmatprep.mubr.f32.mxu0 0.0
        %367 = vmatmul.mubr.f32.gmra.mrb[0].mxu0 %v194
        %v368 = vpop.f32.mrb[0].mxu0
        %v369 = vadd.f32 0.0, %v368
        %v370 = vpop.f32.mrb[0].mxu0
        %371 = vmatprep.mubr.f32.mxu0 0.0
        %372 = vmatmul.mubr.f32.gmra.mrb[0].mxu0 %v195
        %v373 = vpop.f32.mrb[0].mxu0
        %v374 = vadd.f32 0.0, %v373
        %v375 = vpop.f32.mrb[0].mxu0
        %376 = vmatprep.mubr.f32.mxu0 0.0
        %377 = vmatmul.mubr.f32.gmra.mrb[0].mxu0 %v196
        %v378 = vpop.f32.mrb[0].mxu0
        %v379 = vadd.f32 0.0, %v378
        %v380 = vpop.f32.mrb[0].mxu0
        %381 = vmatprep.mubr.f32.mxu0 0.0
        %382 = vmatmul.mubr.f32.gmra.mrb[0].mxu0 %v197
        %v383 = vpop.f32.mrb[0].mxu0
        %v384 = vadd.f32 0.0, %v383
        %v385 = vpop.f32.mrb[0].mxu0
        %386 = vmatprep.mubr.f32.mxu0 0.0
        %387 = vmatmul.mubr.f32.gmra.mrb[0].mxu0 %v198
        %v388 = vpop.f32.mrb[0].mxu0
        %v389 = vadd.f32 0.0, %v388
        %v390 = vpop.f32.mrb[0].mxu0
        %391 = vmatprep.mubr.f32.mxu0 0.0
        %392 = vmatmul.mubr.f32.gmra.mrb[0].mxu0 %v199
        %v393 = vpop.f32.mrb[0].mxu0
        %v394 = vadd.f32 0.0, %v393
        %v395 = vpop.f32.mrb[0].mxu0
        %396 = vmatprep.mubr.f32.mxu0 0.0
        %397 = vmatmul.mubr.f32.gmra.mrb[0].mxu0 %v200
        %v398 = vpop.f32.mrb[0].mxu0
        %v399 = vadd.f32 0.0, %v398
        %v400 = vpop.f32.mrb[0].mxu0
        %401 = vmatprep.mubr.f32.mxu0 0.0
        %402 = vmatmul.mubr.f32.gmra.mrb[0].mxu0 %v201
        %v403 = vpop.f32.mrb[0].mxu0
        %v404 = vadd.f32 0.0, %v403
        %v405 = vpop.f32.mrb[0].mxu0
        %406 = vmatprep.mubr.f32.mxu0 0.0
        %407 = vmatmul.mubr.f32.gmra.mrb[0].mxu0 %v202
        %v408 = vpop.f32.mrb[0].mxu0
        %v409 = vadd.f32 0.0, %v408
        %v410 = vpop.f32.mrb[0].mxu0
        %411 = vmatprep.mubr.f32.mxu0 0.0
        %412 = vmatmul.mubr.f32.gmra.mrb[0].mxu0 %v203
        %v413 = vpop.f32.mrb[0].mxu0
        %v414 = vadd.f32 0.0, %v413
        %v415 = vpop.f32.mrb[0].mxu0
        %416 = vmatprep.mubr.f32.mxu0 0.0
        %417 = vmatmul.mubr.f32.gmra.mrb[0].mxu0 %v204
        %v418 = vpop.f32.mrb[0].mxu0
        %v419 = vadd.f32 0.0, %v418
        %v420 = vpop.f32.mrb[0].mxu0
        %421 = vmatprep.mubr.f32.mxu0 0.0
        %422 = vmatmul.mubr.f32.gmra.mrb[0].mxu0 %v205
        %v423 = vpop.f32.mrb[0].mxu0
        %v424 = vadd.f32 0.0, %v423
        %v425 = vpop.f32.mrb[0].mxu0
        %426 = vmatprep.mubr.f32.mxu0 0.0
        %427 = vmatmul.mubr.f32.gmra.mrb[0].mxu0 %v206
        %v428 = vpop.f32.mrb[0].mxu0
        %v429 = vadd.f32 0.0, %v428
        %v430 = vpop.f32.mrb[0].mxu0
        %431 = vmatprep.mubr.f32.mxu0 0.0
        %432 = vmatmul.mubr.f32.gmra.mrb[0].mxu0 %v207
        %v433 = vpop.f32.mrb[0].mxu0
        %v434 = vadd.f32 0.0, %v433
        %v435 = vpop.f32.mrb[0].mxu0
        %436 = vmatprep.mubr.f32.mxu0 0.0
        %437 = vmatmul.mubr.f32.gmra.mrb[0].mxu0 %v208
        %v438 = vpop.f32.mrb[0].mxu0
        %v439 = vadd.f32 0.0, %v438
        %v440 = vpop.f32.mrb[0].mxu0
        %441 = vmatprep.mubr.f32.mxu0 0.0
        %442 = vmatmul.mubr.f32.gmra.mrb[0].mxu0 %v209
        %v443 = vpop.f32.mrb[0].mxu0
        %v444 = vadd.f32 0.0, %v443
        %v445 = vpop.f32.mrb[0].mxu0
        %446 = vmatprep.mubr.f32.mxu0 0.0
        %447 = vmatmul.mubr.f32.gmra.mrb[0].mxu0 %v210
        %v448 = vpop.f32.mrb[0].mxu0
        %v449 = vadd.f32 0.0, %v448
        %v450 = vpop.f32.mrb[0].mxu0
        %451 = vmatprep.mubr.f32.mxu0 0.0
        %452 = vmatmul.mubr.f32.gmra.mrb[0].mxu0 %v211
        %v453 = vpop.f32.mrb[0].mxu0
        %v454 = vadd.f32 0.0, %v453
        %v455 = vpop.f32.mrb[0].mxu0
        %456 = vmatprep.mubr.f32.mxu0 0.0
        %457 = vmatmul.mubr.f32.gmra.mrb[0].mxu0 %v212
        %v458 = vpop.f32.mrb[0].mxu0
        %v459 = vadd.f32 0.0, %v458
        %v460 = vpop.f32.mrb[0].mxu0
        %461 = vmatprep.mubr.f32.mxu0 0.0
        %462 = vmatmul.mubr.f32.gmra.mrb[0].mxu0 %v213
        %v463 = vpop.f32.mrb[0].mxu0
        %v464 = vadd.f32 0.0, %v463
        %v465 = vpop.f32.mrb[0].mxu0
        %466 = vmatprep.mubr.f32.mxu0 0.0
        %467 = vmatmul.mubr.f32.gmra.mrb[0].mxu0 %v214
        %v468 = vpop.f32.mrb[0].mxu0
        %v469 = vadd.f32 0.0, %v468
        %v470 = vpop.f32.mrb[0].mxu0
        %471 = vmatprep.mubr.f32.mxu0 0.0
        %472 = vmatmul.mubr.f32.gmra.mrb[0].mxu0 %v215
        %v473 = vpop.f32.mrb[0].mxu0
        %v474 = vadd.f32 0.0, %v473
        %v475 = vpop.f32.mrb[0].mxu0
        %476 = vdwg.mxu0
        %477 = vst [vmem:[#allocation2] sm:$0xff] %v299
        %478 = vst [vmem:[#allocation2 + $0x8] sm:$0xff] %v304
        %479 = vst [vmem:[#allocation2 + $0x10] sm:$0xff] %v309
        %480 = vst [vmem:[#allocation2 + $0x18] sm:$0xff] %v314
        %481 = vst [vmem:[#allocation2 + $0x20] sm:$0xff] %v319
        %482 = vst [vmem:[#allocation2 + $0x28] sm:$0xff] %v324
        %483 = vst [vmem:[#allocation2 + $0x30] sm:$0xff] %v329
        %484 = vst [vmem:[#allocation2 + $0x38] sm:$0xff] %v334
        %485 = vst [vmem:[#allocation2 + $0x40] sm:$0xff] %v339
        %486 = vst [vmem:[#allocation2 + $0x48] sm:$0xff] %v344
        %487 = vst [vmem:[#allocation2 + $0x50] sm:$0xff] %v349
        %488 = vst [vmem:[#allocation2 + $0x58] sm:$0xff] %v354
        %489 = vst [vmem:[#allocation2 + $0x60] sm:$0xff] %v359
        %490 = vst [vmem:[#allocation2 + $0x68] sm:$0xff] %v364
        %491 = vst [vmem:[#allocation2 + $0x70] sm:$0xff] %v369
        %492 = vst [vmem:[#allocation2 + $0x78] sm:$0xff] %v374
        %493 = vst [vmem:[#allocation2 + $0x80] sm:$0xff] %v379
        %494 = vst [vmem:[#allocation2 + $0x88] sm:$0xff] %v384
        %495 = vst [vmem:[#allocation2 + $0x90] sm:$0xff] %v389
        %496 = vst [vmem:[#allocation2 + $0x98] sm:$0xff] %v394
        %497 = vst [vmem:[#allocation2 + $0xa0] sm:$0xff] %v399
        %498 = vst [vmem:[#allocation2 + $0xa8] sm:$0xff] %v404
        %499 = vst [vmem:[#allocation2 + $0xb0] sm:$0xff] %v409
        %500 = vst [vmem:[#allocation2 + $0xb8] sm:$0xff] %v414
        %501 = vst [vmem:[#allocation2 + $0xc0] sm:$0xff] %v419
        %502 = vst [vmem:[#allocation2 + $0xc8] sm:$0xff] %v424
        %503 = vst [vmem:[#allocation2 + $0xd0] sm:$0xff] %v429
        %504 = vst [vmem:[#allocation2 + $0xd8] sm:$0xff] %v434
        %505 = vst [vmem:[#allocation2 + $0xe0] sm:$0xff] %v439
        %506 = vst [vmem:[#allocation2 + $0xe8] sm:$0xff] %v444
        %507 = vst [vmem:[#allocation2 + $0xf0] sm:$0xff] %v449
        %508 = vst [vmem:[#allocation2 + $0xf8] sm:$0xff] %v454
        %509 = vst [vmem:[#allocation2 + $0x100] sm:$0xff] %v459
        %510 = vst [vmem:[#allocation2 + $0x108] sm:$0xff] %v464
        %511 = vst [vmem:[#allocation2 + $0x110] sm:$0xff] %v469
        %512 = vst [vmem:[#allocation2 + $0x118] sm:$0xff] %v474
        %v513 = vld [vmem:[%s179 + $0x1] sm:$0xff]
        %v514 = vld [vmem:[%s179 + $0x9] sm:$0xff]
        %v515 = vld [vmem:[%s179 + $0x11] sm:$0xff]
        %v516 = vld [vmem:[%s179 + $0x19] sm:$0xff]
        %v517 = vld [vmem:[%s179 + $0x21] sm:$0xff]
        %v518 = vld [vmem:[%s179 + $0x29] sm:$0xff]
        %v519 = vld [vmem:[%s179 + $0x31] sm:$0xff]
        %v520 = vld [vmem:[%s179 + $0x39] sm:$0xff]
        %v521 = vld [vmem:[%s179 + $0x41] sm:$0xff]
        %v522 = vld [vmem:[%s179 + $0x49] sm:$0xff]
        %v523 = vld [vmem:[%s179 + $0x51] sm:$0xff]
        %v524 = vld [vmem:[%s179 + $0x59] sm:$0xff]
        %v525 = vld [vmem:[%s179 + $0x61] sm:$0xff]
        %v526 = vld [vmem:[%s179 + $0x69] sm:$0xff]
        %v527 = vld [vmem:[%s179 + $0x71] sm:$0xff]
        %v528 = vld [vmem:[%s179 + $0x79] sm:$0xff]
        %v529 = vld [vmem:[%s179 + $0x81] sm:$0xff]
        %v530 = vld [vmem:[%s179 + $0x89] sm:$0xff]
        %v531 = vld [vmem:[%s179 + $0x91] sm:$0xff]
        %v532 = vld [vmem:[%s179 + $0x99] sm:$0xff]
        %v533 = vld [vmem:[%s179 + $0xa1] sm:$0xff]
        %v534 = vld [vmem:[%s179 + $0xa9] sm:$0xff]
        %v535 = vld [vmem:[%s179 + $0xb1] sm:$0xff]
        %v536 = vld [vmem:[%s179 + $0xb9] sm:$0xff]
        %v537 = vld [vmem:[%s179 + $0xc1] sm:$0xff]
        %v538 = vld [vmem:[%s179 + $0xc9] sm:$0xff]
        %v539 = vld [vmem:[%s179 + $0xd1] sm:$0xff]
        %v540 = vld [vmem:[%s179 + $0xd9] sm:$0xff]
        %v541 = vld [vmem:[%s179 + $0xe1] sm:$0xff]
        %v542 = vld [vmem:[%s179 + $0xe9] sm:$0xff]
        %v543 = vld [vmem:[%s179 + $0xf1] sm:$0xff]
        %v544 = vld [vmem:[%s179 + $0xf9] sm:$0xff]
        %v545 = vld [vmem:[%s179 + $0x101] sm:$0xff]
        %v546 = vld [vmem:[%s179 + $0x109] sm:$0xff]
        %v547 = vld [vmem:[%s179 + $0x111] sm:$0xff]
        %v548 = vld [vmem:[%s179 + $0x119] sm:$0xff]
        %s549 = scalar_lea.vmem %s1, 128
        %v550 = vld [vmem:[%s549] sm:$0xff]
        %v551 = vld [vmem:[%s549 + $0x8] sm:$0xff]
        %v552 = vld [vmem:[%s549 + $0x10] sm:$0xff]
        %v553 = vld [vmem:[%s549 + $0x18] sm:$0xff]
        %v554 = vld [vmem:[%s549 + $0x20] sm:$0xff]
        %v555 = vld [vmem:[%s549 + $0x28] sm:$0xff]
        %v556 = vld [vmem:[%s549 + $0x30] sm:$0xff]
        %v557 = vld [vmem:[%s549 + $0x38] sm:$0xff]
        %v558 = vld [vmem:[%s549 + $0x40] sm:$0xff]
        %v559 = vld [vmem:[%s549 + $0x48] sm:$0xff]
        %v560 = vld [vmem:[%s549 + $0x50] sm:$0xff]
        %v561 = vld [vmem:[%s549 + $0x58] sm:$0xff]
        %v562 = vld [vmem:[%s549 + $0x60] sm:$0xff]
        %v563 = vld [vmem:[%s549 + $0x68] sm:$0xff]
        %v564 = vld [vmem:[%s549 + $0x70] sm:$0xff]
        %v565 = vld [vmem:[%s549 + $0x78] sm:$0xff]
        %566 = vmatprep.subr.mxu0 0.0
        %567 = vmatpush1.msra.mxu0 %v550
        %568 = vmatprep.subr.mxu0 0.0
        %569 = vmatpush1.msra.mxu0 %v551
        %570 = vmatprep.subr.mxu0 0.0
        %571 = vmatpush1.msra.mxu0 %v552
        %572 = vmatprep.subr.mxu0 0.0
        %573 = vmatpush1.msra.mxu0 %v553
        %574 = vmatprep.subr.mxu0 0.0
        %575 = vmatpush1.msra.mxu0 %v554
        %576 = vmatprep.subr.mxu0 0.0
        %577 = vmatpush1.msra.mxu0 %v555
        %578 = vmatprep.subr.mxu0 0.0
        %579 = vmatpush1.msra.mxu0 %v556
        %580 = vmatprep.subr.mxu0 0.0
        %581 = vmatpush1.msra.mxu0 %v557
        %582 = vmatprep.subr.mxu0 0.0
        %583 = vmatpush1.msra.mxu0 %v558
        %584 = vmatprep.subr.mxu0 0.0
        %585 = vmatpush1.msra.mxu0 %v559
        %586 = vmatprep.subr.mxu0 0.0
        %587 = vmatpush1.msra.mxu0 %v560
        %588 = vmatprep.subr.mxu0 0.0
        %589 = vmatpush1.msra.mxu0 %v561
        %590 = vmatprep.subr.mxu0 0.0
        %591 = vmatpush1.msra.mxu0 %v562
        %592 = vmatprep.subr.mxu0 0.0
        %593 = vmatpush1.msra.mxu0 %v563
        %594 = vmatprep.subr.mxu0 0.0
        %595 = vmatpush1.msra.mxu0 %v564
        %596 = vmatprep.subr.mxu0 0.0
        %597 = vmatpush1.msra.mxu0 %v565
        %598 = vmatprep.subr.mxu0 0.0
        %599 = vmatpush1.msra.mxu0 0.0
        %600 = vmatprep.subr.mxu0 0.0
        %601 = vmatpush1.msra.mxu0 0.0
        %602 = vmatprep.subr.mxu0 0.0
        %603 = vmatpush1.msra.mxu0 0.0
        %604 = vmatprep.subr.mxu0 0.0
        %605 = vmatpush1.msra.mxu0 0.0
        %606 = vmatprep.subr.mxu0 0.0
        %607 = vmatpush1.msra.mxu0 0.0
        %608 = vmatprep.subr.mxu0 0.0
        %609 = vmatpush1.msra.mxu0 0.0
        %610 = vmatprep.subr.mxu0 0.0
        %611 = vmatpush1.msra.mxu0 0.0
        %612 = vmatprep.subr.mxu0 0.0
        %613 = vmatpush1.msra.mxu0 0.0
        %614 = vmatprep.subr.mxu0 0.0
        %615 = vmatpush1.msra.mxu0 0.0
        %616 = vmatprep.subr.mxu0 0.0
        %617 = vmatpush1.msra.mxu0 0.0
        %618 = vmatprep.subr.mxu0 0.0
        %619 = vmatpush1.msra.mxu0 0.0
        %620 = vmatprep.subr.mxu0 0.0
        %621 = vmatpush1.msra.mxu0 0.0
        %622 = vmatprep.subr.mxu0 0.0
        %623 = vmatpush1.msra.mxu0 0.0
        %624 = vmatprep.subr.mxu0 0.0
        %625 = vmatpush1.msra.mxu0 0.0
        %626 = vmatprep.subr.mxu0 0.0
        %627 = vmatpush1.msra.mxu0 0.0
        %628 = vmatprep.subr.mxu0 0.0
        %629 = vmatpush1.msra.mxu0 0.0
        %630 = vmatprep.mubr.f32.mxu0 0.0
        %631 = vmatmul.mubr.f32.gmra.mrb[0].mxu0 %v513
        %v632 = vpop.f32.mrb[0].mxu0
        %v633 = vadd.f32 0.0, %v632
        %v634 = vpop.f32.mrb[0].mxu0
        %635 = vmatprep.mubr.f32.mxu0 0.0
        %636 = vmatmul.mubr.f32.gmra.mrb[0].mxu0 %v514
        %v637 = vpop.f32.mrb[0].mxu0
        %v638 = vadd.f32 0.0, %v637
        %v639 = vpop.f32.mrb[0].mxu0
        %640 = vmatprep.mubr.f32.mxu0 0.0
        %641 = vmatmul.mubr.f32.gmra.mrb[0].mxu0 %v515
        %v642 = vpop.f32.mrb[0].mxu0
        %v643 = vadd.f32 0.0, %v642
        %v644 = vpop.f32.mrb[0].mxu0
        %645 = vmatprep.mubr.f32.mxu0 0.0
        %646 = vmatmul.mubr.f32.gmra.mrb[0].mxu0 %v516
        %v647 = vpop.f32.mrb[0].mxu0
        %v648 = vadd.f32 0.0, %v647
        %v649 = vpop.f32.mrb[0].mxu0
        %650 = vmatprep.mubr.f32.mxu0 0.0
        %651 = vmatmul.mubr.f32.gmra.mrb[0].mxu0 %v517
        %v652 = vpop.f32.mrb[0].mxu0
        %v653 = vadd.f32 0.0, %v652
        %v654 = vpop.f32.mrb[0].mxu0
        %655 = vmatprep.mubr.f32.mxu0 0.0
        %656 = vmatmul.mubr.f32.gmra.mrb[0].mxu0 %v518
        %v657 = vpop.f32.mrb[0].mxu0
        %v658 = vadd.f32 0.0, %v657
        %v659 = vpop.f32.mrb[0].mxu0
        %660 = vmatprep.mubr.f32.mxu0 0.0
        %661 = vmatmul.mubr.f32.gmra.mrb[0].mxu0 %v519
        %v662 = vpop.f32.mrb[0].mxu0
        %v663 = vadd.f32 0.0, %v662
        %v664 = vpop.f32.mrb[0].mxu0
        %665 = vmatprep.mubr.f32.mxu0 0.0
        %666 = vmatmul.mubr.f32.gmra.mrb[0].mxu0 %v520
        %v667 = vpop.f32.mrb[0].mxu0
        %v668 = vadd.f32 0.0, %v667
        %v669 = vpop.f32.mrb[0].mxu0
        %670 = vmatprep.mubr.f32.mxu0 0.0
        %671 = vmatmul.mubr.f32.gmra.mrb[0].mxu0 %v521
        %v672 = vpop.f32.mrb[0].mxu0
        %v673 = vadd.f32 0.0, %v672
        %v674 = vpop.f32.mrb[0].mxu0
        %675 = vmatprep.mubr.f32.mxu0 0.0
        %676 = vmatmul.mubr.f32.gmra.mrb[0].mxu0 %v522
        %v677 = vpop.f32.mrb[0].mxu0
        %v678 = vadd.f32 0.0, %v677
        %v679 = vpop.f32.mrb[0].mxu0
        %680 = vmatprep.mubr.f32.mxu0 0.0
        %681 = vmatmul.mubr.f32.gmra.mrb[0].mxu0 %v523
        %v682 = vpop.f32.mrb[0].mxu0
        %v683 = vadd.f32 0.0, %v682
        %v684 = vpop.f32.mrb[0].mxu0
        %685 = vmatprep.mubr.f32.mxu0 0.0
        %686 = vmatmul.mubr.f32.gmra.mrb[0].mxu0 %v524
        %v687 = vpop.f32.mrb[0].mxu0
        %v688 = vadd.f32 0.0, %v687
        %v689 = vpop.f32.mrb[0].mxu0
        %690 = vmatprep.mubr.f32.mxu0 0.0
        %691 = vmatmul.mubr.f32.gmra.mrb[0].mxu0 %v525
        %v692 = vpop.f32.mrb[0].mxu0
        %v693 = vadd.f32 0.0, %v692
        %v694 = vpop.f32.mrb[0].mxu0
        %695 = vmatprep.mubr.f32.mxu0 0.0
        %696 = vmatmul.mubr.f32.gmra.mrb[0].mxu0 %v526
        %v697 = vpop.f32.mrb[0].mxu0
        %v698 = vadd.f32 0.0, %v697
        %v699 = vpop.f32.mrb[0].mxu0
        %700 = vmatprep.mubr.f32.mxu0 0.0
        %701 = vmatmul.mubr.f32.gmra.mrb[0].mxu0 %v527
        %v702 = vpop.f32.mrb[0].mxu0
        %v703 = vadd.f32 0.0, %v702
        %v704 = vpop.f32.mrb[0].mxu0
        %705 = vmatprep.mubr.f32.mxu0 0.0
        %706 = vmatmul.mubr.f32.gmra.mrb[0].mxu0 %v528
        %v707 = vpop.f32.mrb[0].mxu0
        %v708 = vadd.f32 0.0, %v707
        %v709 = vpop.f32.mrb[0].mxu0
        %710 = vmatprep.mubr.f32.mxu0 0.0
        %711 = vmatmul.mubr.f32.gmra.mrb[0].mxu0 %v529
        %v712 = vpop.f32.mrb[0].mxu0
        %v713 = vadd.f32 0.0, %v712
        %v714 = vpop.f32.mrb[0].mxu0
        %715 = vmatprep.mubr.f32.mxu0 0.0
        %716 = vmatmul.mubr.f32.gmra.mrb[0].mxu0 %v530
        %v717 = vpop.f32.mrb[0].mxu0
        %v718 = vadd.f32 0.0, %v717
        %v719 = vpop.f32.mrb[0].mxu0
        %720 = vmatprep.mubr.f32.mxu0 0.0
        %721 = vmatmul.mubr.f32.gmra.mrb[0].mxu0 %v531
        %v722 = vpop.f32.mrb[0].mxu0
        %v723 = vadd.f32 0.0, %v722
        %v724 = vpop.f32.mrb[0].mxu0
        %725 = vmatprep.mubr.f32.mxu0 0.0
        %726 = vmatmul.mubr.f32.gmra.mrb[0].mxu0 %v532
        %v727 = vpop.f32.mrb[0].mxu0
        %v728 = vadd.f32 0.0, %v727
        %v729 = vpop.f32.mrb[0].mxu0
        %730 = vmatprep.mubr.f32.mxu0 0.0
        %731 = vmatmul.mubr.f32.gmra.mrb[0].mxu0 %v533
        %v732 = vpop.f32.mrb[0].mxu0
        %v733 = vadd.f32 0.0, %v732
        %v734 = vpop.f32.mrb[0].mxu0
        %735 = vmatprep.mubr.f32.mxu0 0.0
        %736 = vmatmul.mubr.f32.gmra.mrb[0].mxu0 %v534
        %v737 = vpop.f32.mrb[0].mxu0
        %v738 = vadd.f32 0.0, %v737
        %v739 = vpop.f32.mrb[0].mxu0
        %740 = vmatprep.mubr.f32.mxu0 0.0
        %741 = vmatmul.mubr.f32.gmra.mrb[0].mxu0 %v535
        %v742 = vpop.f32.mrb[0].mxu0
        %v743 = vadd.f32 0.0, %v742
        %v744 = vpop.f32.mrb[0].mxu0
        %745 = vmatprep.mubr.f32.mxu0 0.0
        %746 = vmatmul.mubr.f32.gmra.mrb[0].mxu0 %v536
        %v747 = vpop.f32.mrb[0].mxu0
        %v748 = vadd.f32 0.0, %v747
        %v749 = vpop.f32.mrb[0].mxu0
        %750 = vmatprep.mubr.f32.mxu0 0.0
        %751 = vmatmul.mubr.f32.gmra.mrb[0].mxu0 %v537
        %v752 = vpop.f32.mrb[0].mxu0
        %v753 = vadd.f32 0.0, %v752
        %v754 = vpop.f32.mrb[0].mxu0
        %755 = vmatprep.mubr.f32.mxu0 0.0
        %756 = vmatmul.mubr.f32.gmra.mrb[0].mxu0 %v538
        %v757 = vpop.f32.mrb[0].mxu0
        %v758 = vadd.f32 0.0, %v757
        %v759 = vpop.f32.mrb[0].mxu0
        %760 = vmatprep.mubr.f32.mxu0 0.0
        %761 = vmatmul.mubr.f32.gmra.mrb[0].mxu0 %v539
        %v762 = vpop.f32.mrb[0].mxu0
        %v763 = vadd.f32 0.0, %v762
        %v764 = vpop.f32.mrb[0].mxu0
        %765 = vmatprep.mubr.f32.mxu0 0.0
        %766 = vmatmul.mubr.f32.gmra.mrb[0].mxu0 %v540
        %v767 = vpop.f32.mrb[0].mxu0
        %v768 = vadd.f32 0.0, %v767
        %v769 = vpop.f32.mrb[0].mxu0
        %770 = vmatprep.mubr.f32.mxu0 0.0
        %771 = vmatmul.mubr.f32.gmra.mrb[0].mxu0 %v541
        %v772 = vpop.f32.mrb[0].mxu0
        %v773 = vadd.f32 0.0, %v772
        %v774 = vpop.f32.mrb[0].mxu0
        %775 = vmatprep.mubr.f32.mxu0 0.0
        %776 = vmatmul.mubr.f32.gmra.mrb[0].mxu0 %v542
        %v777 = vpop.f32.mrb[0].mxu0
        %v778 = vadd.f32 0.0, %v777
        %v779 = vpop.f32.mrb[0].mxu0
        %780 = vmatprep.mubr.f32.mxu0 0.0
        %781 = vmatmul.mubr.f32.gmra.mrb[0].mxu0 %v543
        %v782 = vpop.f32.mrb[0].mxu0
        %v783 = vadd.f32 0.0, %v782
        %v784 = vpop.f32.mrb[0].mxu0
        %785 = vmatprep.mubr.f32.mxu0 0.0
        %786 = vmatmul.mubr.f32.gmra.mrb[0].mxu0 %v544
        %v787 = vpop.f32.mrb[0].mxu0
        %v788 = vadd.f32 0.0, %v787
        %v789 = vpop.f32.mrb[0].mxu0
        %790 = vmatprep.mubr.f32.mxu0 0.0
        %791 = vmatmul.mubr.f32.gmra.mrb[0].mxu0 %v545
        %v792 = vpop.f32.mrb[0].mxu0
        %v793 = vadd.f32 0.0, %v792
        %v794 = vpop.f32.mrb[0].mxu0
        %795 = vmatprep.mubr.f32.mxu0 0.0
        %796 = vmatmul.mubr.f32.gmra.mrb[0].mxu0 %v546
        %v797 = vpop.f32.mrb[0].mxu0
        %v798 = vadd.f32 0.0, %v797
        %v799 = vpop.f32.mrb[0].mxu0
        %800 = vmatprep.mubr.f32.mxu0 0.0
        %801 = vmatmul.mubr.f32.gmra.mrb[0].mxu0 %v547
        %v802 = vpop.f32.mrb[0].mxu0
        %v803 = vadd.f32 0.0, %v802
        %v804 = vpop.f32.mrb[0].mxu0
        %805 = vmatprep.mubr.f32.mxu0 0.0
        %806 = vmatmul.mubr.f32.gmra.mrb[0].mxu0 %v548
        %v807 = vpop.f32.mrb[0].mxu0
        %v808 = vadd.f32 0.0, %v807
        %v809 = vpop.f32.mrb[0].mxu0
        %810 = vdwg.mxu0
        %v811 = vld [vmem:[#allocation2] sm:$0xff]
        %v812 = vld [vmem:[#allocation2 + $0x8] sm:$0xff]
        %v813 = vld [vmem:[#allocation2 + $0x10] sm:$0xff]
        %v814 = vld [vmem:[#allocation2 + $0x18] sm:$0xff]
        %v815 = vld [vmem:[#allocation2 + $0x20] sm:$0xff]
        %v816 = vld [vmem:[#allocation2 + $0x28] sm:$0xff]
        %v817 = vld [vmem:[#allocation2 + $0x30] sm:$0xff]
        %v818 = vld [vmem:[#allocation2 + $0x38] sm:$0xff]
        %v819 = vld [vmem:[#allocation2 + $0x40] sm:$0xff]
        %v820 = vld [vmem:[#allocation2 + $0x48] sm:$0xff]
        %v821 = vld [vmem:[#allocation2 + $0x50] sm:$0xff]
        %v822 = vld [vmem:[#allocation2 + $0x58] sm:$0xff]
        %v823 = vld [vmem:[#allocation2 + $0x60] sm:$0xff]
        %v824 = vld [vmem:[#allocation2 + $0x68] sm:$0xff]
        %v825 = vld [vmem:[#allocation2 + $0x70] sm:$0xff]
        %v826 = vld [vmem:[#allocation2 + $0x78] sm:$0xff]
        %v827 = vld [vmem:[#allocation2 + $0x80] sm:$0xff]
        %v828 = vld [vmem:[#allocation2 + $0x88] sm:$0xff]
        %v829 = vld [vmem:[#allocation2 + $0x90] sm:$0xff]
        %v830 = vld [vmem:[#allocation2 + $0x98] sm:$0xff]
        %v831 = vld [vmem:[#allocation2 + $0xa0] sm:$0xff]
        %v832 = vld [vmem:[#allocation2 + $0xa8] sm:$0xff]
        %v833 = vld [vmem:[#allocation2 + $0xb0] sm:$0xff]
        %v834 = vld [vmem:[#allocation2 + $0xb8] sm:$0xff]
        %v835 = vld [vmem:[#allocation2 + $0xc0] sm:$0xff]
        %v836 = vld [vmem:[#allocation2 + $0xc8] sm:$0xff]
        %v837 = vld [vmem:[#allocation2 + $0xd0] sm:$0xff]
        %v838 = vld [vmem:[#allocation2 + $0xd8] sm:$0xff]
        %v839 = vld [vmem:[#allocation2 + $0xe0] sm:$0xff]
        %v840 = vld [vmem:[#allocation2 + $0xe8] sm:$0xff]
        %v841 = vld [vmem:[#allocation2 + $0xf0] sm:$0xff]
        %v842 = vld [vmem:[#allocation2 + $0xf8] sm:$0xff]
        %v843 = vld [vmem:[#allocation2 + $0x100] sm:$0xff]
        %v844 = vld [vmem:[#allocation2 + $0x108] sm:$0xff]
        %v845 = vld [vmem:[#allocation2 + $0x110] sm:$0xff]
        %v846 = vld [vmem:[#allocation2 + $0x118] sm:$0xff]
        %v847 = vadd.f32 %v811, %v633
        %v848 = vadd.f32 %v812, %v638
        %v849 = vadd.f32 %v813, %v643
        %v850 = vadd.f32 %v814, %v648
        %v851 = vadd.f32 %v815, %v653
        %v852 = vadd.f32 %v816, %v658
        %v853 = vadd.f32 %v817, %v663
        %v854 = vadd.f32 %v818, %v668
        %v855 = vadd.f32 %v819, %v673
        %v856 = vadd.f32 %v820, %v678
        %v857 = vadd.f32 %v821, %v683
        %v858 = vadd.f32 %v822, %v688
        %v859 = vadd.f32 %v823, %v693
        %v860 = vadd.f32 %v824, %v698
        %v861 = vadd.f32 %v825, %v703
        %v862 = vadd.f32 %v826, %v708
        %v863 = vadd.f32 %v827, %v713
        %v864 = vadd.f32 %v828, %v718
        %v865 = vadd.f32 %v829, %v723
        %v866 = vadd.f32 %v830, %v728
        %v867 = vadd.f32 %v831, %v733
        %v868 = vadd.f32 %v832, %v738
        %v869 = vadd.f32 %v833, %v743
        %v870 = vadd.f32 %v834, %v748
        %v871 = vadd.f32 %v835, %v753
        %v872 = vadd.f32 %v836, %v758
        %v873 = vadd.f32 %v837, %v763
        %v874 = vadd.f32 %v838, %v768
        %v875 = vadd.f32 %v839, %v773
        %v876 = vadd.f32 %v840, %v778
        %v877 = vadd.f32 %v841, %v783
        %v878 = vadd.f32 %v842, %v788
        %v879 = vadd.f32 %v843, %v793
        %v880 = vadd.f32 %v844, %v798
        %v881 = vadd.f32 %v845, %v803
        %v882 = vadd.f32 %v846, %v808
        %883 = vst [vmem:[#allocation2] sm:$0xff] %v847
        %884 = vst [vmem:[#allocation2 + $0x8] sm:$0xff] %v848
        %885 = vst [vmem:[#allocation2 + $0x10] sm:$0xff] %v849
        %886 = vst [vmem:[#allocation2 + $0x18] sm:$0xff] %v850
        %887 = vst [vmem:[#allocation2 + $0x20] sm:$0xff] %v851
        %888 = vst [vmem:[#allocation2 + $0x28] sm:$0xff] %v852
        %889 = vst [vmem:[#allocation2 + $0x30] sm:$0xff] %v853
        %890 = vst [vmem:[#allocation2 + $0x38] sm:$0xff] %v854
        %891 = vst [vmem:[#allocation2 + $0x40] sm:$0xff] %v855
        %892 = vst [vmem:[#allocation2 + $0x48] sm:$0xff] %v856
        %893 = vst [vmem:[#allocation2 + $0x50] sm:$0xff] %v857
        %894 = vst [vmem:[#allocation2 + $0x58] sm:$0xff] %v858
        %895 = vst [vmem:[#allocation2 + $0x60] sm:$0xff] %v859
        %896 = vst [vmem:[#allocation2 + $0x68] sm:$0xff] %v860
        %897 = vst [vmem:[#allocation2 + $0x70] sm:$0xff] %v861
        %898 = vst [vmem:[#allocation2 + $0x78] sm:$0xff] %v862
        %899 = vst [vmem:[#allocation2 + $0x80] sm:$0xff] %v863
        %900 = vst [vmem:[#allocation2 + $0x88] sm:$0xff] %v864
        %901 = vst [vmem:[#allocation2 + $0x90] sm:$0xff] %v865
        %902 = vst [vmem:[#allocation2 + $0x98] sm:$0xff] %v866
        %903 = vst [vmem:[#allocation2 + $0xa0] sm:$0xff] %v867
        %904 = vst [vmem:[#allocation2 + $0xa8] sm:$0xff] %v868
        %905 = vst [vmem:[#allocation2 + $0xb0] sm:$0xff] %v869
        %906 = vst [vmem:[#allocation2 + $0xb8] sm:$0xff] %v870
        %907 = vst [vmem:[#allocation2 + $0xc0] sm:$0xff] %v871
        %908 = vst [vmem:[#allocation2 + $0xc8] sm:$0xff] %v872
        %909 = vst [vmem:[#allocation2 + $0xd0] sm:$0xff] %v873
        %910 = vst [vmem:[#allocation2 + $0xd8] sm:$0xff] %v874
        %911 = vst [vmem:[#allocation2 + $0xe0] sm:$0xff] %v875
        %912 = vst [vmem:[#allocation2 + $0xe8] sm:$0xff] %v876
        %913 = vst [vmem:[#allocation2 + $0xf0] sm:$0xff] %v877
        %914 = vst [vmem:[#allocation2 + $0xf8] sm:$0xff] %v878
        %915 = vst [vmem:[#allocation2 + $0x100] sm:$0xff] %v879
        %916 = vst [vmem:[#allocation2 + $0x108] sm:$0xff] %v880
        %917 = vst [vmem:[#allocation2 + $0x110] sm:$0xff] %v881
        %918 = vst [vmem:[#allocation2 + $0x118] sm:$0xff] %v882
        %v919 = vld [vmem:[%s179 + $0x2] sm:$0xff]
        %v920 = vld [vmem:[%s179 + $0xa] sm:$0xff]
        %v921 = vld [vmem:[%s179 + $0x12] sm:$0xff]
        %v922 = vld [vmem:[%s179 + $0x1a] sm:$0xff]
        %v923 = vld [vmem:[%s179 + $0x22] sm:$0xff]
        %v924 = vld [vmem:[%s179 + $0x2a] sm:$0xff]
        %v925 = vld [vmem:[%s179 + $0x32] sm:$0xff]
        %v926 = vld [vmem:[%s179 + $0x3a] sm:$0xff]
        %v927 = vld [vmem:[%s179 + $0x42] sm:$0xff]
        %v928 = vld [vmem:[%s179 + $0x4a] sm:$0xff]
        %v929 = vld [vmem:[%s179 + $0x52] sm:$0xff]
        %v930 = vld [vmem:[%s179 + $0x5a] sm:$0xff]
        %v931 = vld [vmem:[%s179 + $0x62] sm:$0xff]
        %v932 = vld [vmem:[%s179 + $0x6a] sm:$0xff]
        %v933 = vld [vmem:[%s179 + $0x72] sm:$0xff]
        %v934 = vld [vmem:[%s179 + $0x7a] sm:$0xff]
        %v935 = vld [vmem:[%s179 + $0x82] sm:$0xff]
        %v936 = vld [vmem:[%s179 + $0x8a] sm:$0xff]
        %v937 = vld [vmem:[%s179 + $0x92] sm:$0xff]
        %v938 = vld [vmem:[%s179 + $0x9a] sm:$0xff]
        %v939 = vld [vmem:[%s179 + $0xa2] sm:$0xff]
        %v940 = vld [vmem:[%s179 + $0xaa] sm:$0xff]
        %v941 = vld [vmem:[%s179 + $0xb2] sm:$0xff]
        %v942 = vld [vmem:[%s179 + $0xba] sm:$0xff]
        %v943 = vld [vmem:[%s179 + $0xc2] sm:$0xff]
        %v944 = vld [vmem:[%s179 + $0xca] sm:$0xff]
        %v945 = vld [vmem:[%s179 + $0xd2] sm:$0xff]
        %v946 = vld [vmem:[%s179 + $0xda] sm:$0xff]
        %v947 = vld [vmem:[%s179 + $0xe2] sm:$0xff]
        %v948 = vld [vmem:[%s179 + $0xea] sm:$0xff]
        %v949 = vld [vmem:[%s179 + $0xf2] sm:$0xff]
        %v950 = vld [vmem:[%s179 + $0xfa] sm:$0xff]
        %v951 = vld [vmem:[%s179 + $0x102] sm:$0xff]
        %v952 = vld [vmem:[%s179 + $0x10a] sm:$0xff]
        %v953 = vld [vmem:[%s179 + $0x112] sm:$0xff]
        %v954 = vld [vmem:[%s179 + $0x11a] sm:$0xff]
        %s955 = scalar_lea.vmem %s1, 256
        %v956 = vld [vmem:[%s955] sm:$0xff]
        %v957 = vld [vmem:[%s955 + $0x8] sm:$0xff]
        %v958 = vld [vmem:[%s955 + $0x10] sm:$0xff]
        %v959 = vld [vmem:[%s955 + $0x18] sm:$0xff]
        %v960 = vld [vmem:[%s955 + $0x20] sm:$0xff]
        %v961 = vld [vmem:[%s955 + $0x28] sm:$0xff]
        %v962 = vld [vmem:[%s955 + $0x30] sm:$0xff]
        %v963 = vld [vmem:[%s955 + $0x38] sm:$0xff]
        %v964 = vld [vmem:[%s955 + $0x40] sm:$0xff]
        %v965 = vld [vmem:[%s955 + $0x48] sm:$0xff]
        %v966 = vld [vmem:[%s955 + $0x50] sm:$0xff]
        %v967 = vld [vmem:[%s955 + $0x58] sm:$0xff]
        %v968 = vld [vmem:[%s955 + $0x60] sm:$0xff]
        %v969 = vld [vmem:[%s955 + $0x68] sm:$0xff]
        %v970 = vld [vmem:[%s955 + $0x70] sm:$0xff]
        %v971 = vld [vmem:[%s955 + $0x78] sm:$0xff]
        %972 = vmatprep.subr.mxu0 0.0
        %973 = vmatpush1.msra.mxu0 %v956
        %974 = vmatprep.subr.mxu0 0.0
        %975 = vmatpush1.msra.mxu0 %v957
        %976 = vmatprep.subr.mxu0 0.0
        %977 = vmatpush1.msra.mxu0 %v958
        %978 = vmatprep.subr.mxu0 0.0
        %979 = vmatpush1.msra.mxu0 %v959
        %980 = vmatprep.subr.mxu0 0.0
        %981 = vmatpush1.msra.mxu0 %v960
        %982 = vmatprep.subr.mxu0 0.0
        %983 = vmatpush1.msra.mxu0 %v961
        %984 = vmatprep.subr.mxu0 0.0
        %985 = vmatpush1.msra.mxu0 %v962
        %986 = vmatprep.subr.mxu0 0.0
        %987 = vmatpush1.msra.mxu0 %v963
        %988 = vmatprep.subr.mxu0 0.0
        %989 = vmatpush1.msra.mxu0 %v964
        %990 = vmatprep.subr.mxu0 0.0
        %991 = vmatpush1.msra.mxu0 %v965
        %992 = vmatprep.subr.mxu0 0.0
        %993 = vmatpush1.msra.mxu0 %v966
        %994 = vmatprep.subr.mxu0 0.0
        %995 = vmatpush1.msra.mxu0 %v967
        %996 = vmatprep.subr.mxu0 0.0
        %997 = vmatpush1.msra.mxu0 %v968
        %998 = vmatprep.subr.mxu0 0.0
        %999 = vmatpush1.msra.mxu0 %v969
        %1000 = vmatprep.subr.mxu0 0.0
        %1001 = vmatpush1.msra.mxu0 %v970
        %1002 = vmatprep.subr.mxu0 0.0
        %1003 = vmatpush1.msra.mxu0 %v971
        %1004 = vmatprep.subr.mxu0 0.0
        %1005 = vmatpush1.msra.mxu0 0.0
        %1006 = vmatprep.subr.mxu0 0.0
        %1007 = vmatpush1.msra.mxu0 0.0
        %1008 = vmatprep.subr.mxu0 0.0
        %1009 = vmatpush1.msra.mxu0 0.0
        %1010 = vmatprep.subr.mxu0 0.0
        %1011 = vmatpush1.msra.mxu0 0.0
        %1012 = vmatprep.subr.mxu0 0.0
        %1013 = vmatpush1.msra.mxu0 0.0
        %1014 = vmatprep.subr.mxu0 0.0
        %1015 = vmatpush1.msra.mxu0 0.0
        %1016 = vmatprep.subr.mxu0 0.0
        %1017 = vmatpush1.msra.mxu0 0.0
        %1018 = vmatprep.subr.mxu0 0.0
        %1019 = vmatpush1.msra.mxu0 0.0
        %1020 = vmatprep.subr.mxu0 0.0
        %1021 = vmatpush1.msra.mxu0 0.0
        %1022 = vmatprep.subr.mxu0 0.0
        %1023 = vmatpush1.msra.mxu0 0.0
        %1024 = vmatprep.subr.mxu0 0.0
        %1025 = vmatpush1.msra.mxu0 0.0
        %1026 = vmatprep.subr.mxu0 0.0
        %1027 = vmatpush1.msra.mxu0 0.0
        %1028 = vmatprep.subr.mxu0 0.0
        %1029 = vmatpush1.msra.mxu0 0.0
        %1030 = vmatprep.subr.mxu0 0.0
        %1031 = vmatpush1.msra.mxu0 0.0
        %1032 = vmatprep.subr.mxu0 0.0
        %1033 = vmatpush1.msra.mxu0 0.0
        %1034 = vmatprep.subr.mxu0 0.0
        %1035 = vmatpush1.msra.mxu0 0.0
        %1036 = vmatprep.mubr.f32.mxu0 0.0
        %1037 = vmatmul.mubr.f32.gmra.mrb[0].mxu0 %v919
        %v1038 = vpop.f32.mrb[0].mxu0
        %v1039 = vadd.f32 0.0, %v1038
        %v1040 = vpop.f32.mrb[0].mxu0
        %1041 = vmatprep.mubr.f32.mxu0 0.0
        %1042 = vmatmul.mubr.f32.gmra.mrb[0].mxu0 %v920
        %v1043 = vpop.f32.mrb[0].mxu0
        %v1044 = vadd.f32 0.0, %v1043
        %v1045 = vpop.f32.mrb[0].mxu0
        %1046 = vmatprep.mubr.f32.mxu0 0.0
        %1047 = vmatmul.mubr.f32.gmra.mrb[0].mxu0 %v921
        %v1048 = vpop.f32.mrb[0].mxu0
        %v1049 = vadd.f32 0.0, %v1048
        %v1050 = vpop.f32.mrb[0].mxu0
        %1051 = vmatprep.mubr.f32.mxu0 0.0
        %1052 = vmatmul.mubr.f32.gmra.mrb[0].mxu0 %v922
        %v1053 = vpop.f32.mrb[0].mxu0
        %v1054 = vadd.f32 0.0, %v1053
        %v1055 = vpop.f32.mrb[0].mxu0
        %1056 = vmatprep.mubr.f32.mxu0 0.0
        %1057 = vmatmul.mubr.f32.gmra.mrb[0].mxu0 %v923
        %v1058 = vpop.f32.mrb[0].mxu0
        %v1059 = vadd.f32 0.0, %v1058
        %v1060 = vpop.f32.mrb[0].mxu0
        %1061 = vmatprep.mubr.f32.mxu0 0.0
        %1062 = vmatmul.mubr.f32.gmra.mrb[0].mxu0 %v924
        %v1063 = vpop.f32.mrb[0].mxu0
        %v1064 = vadd.f32 0.0, %v1063
        %v1065 = vpop.f32.mrb[0].mxu0
        %1066 = vmatprep.mubr.f32.mxu0 0.0
        %1067 = vmatmul.mubr.f32.gmra.mrb[0].mxu0 %v925
        %v1068 = vpop.f32.mrb[0].mxu0
        %v1069 = vadd.f32 0.0, %v1068
        %v1070 = vpop.f32.mrb[0].mxu0
        %1071 = vmatprep.mubr.f32.mxu0 0.0
        %1072 = vmatmul.mubr.f32.gmra.mrb[0].mxu0 %v926
        %v1073 = vpop.f32.mrb[0].mxu0
        %v1074 = vadd.f32 0.0, %v1073
        %v1075 = vpop.f32.mrb[0].mxu0
        %1076 = vmatprep.mubr.f32.mxu0 0.0
        %1077 = vmatmul.mubr.f32.gmra.mrb[0].mxu0 %v927
        %v1078 = vpop.f32.mrb[0].mxu0
        %v1079 = vadd.f32 0.0, %v1078
        %v1080 = vpop.f32.mrb[0].mxu0
        %1081 = vmatprep.mubr.f32.mxu0 0.0
        %1082 = vmatmul.mubr.f32.gmra.mrb[0].mxu0 %v928
        %v1083 = vpop.f32.mrb[0].mxu0
        %v1084 = vadd.f32 0.0, %v1083
        %v1085 = vpop.f32.mrb[0].mxu0
        %1086 = vmatprep.mubr.f32.mxu0 0.0
        %1087 = vmatmul.mubr.f32.gmra.mrb[0].mxu0 %v929
        %v1088 = vpop.f32.mrb[0].mxu0
        %v1089 = vadd.f32 0.0, %v1088
        %v1090 = vpop.f32.mrb[0].mxu0
        %1091 = vmatprep.mubr.f32.mxu0 0.0
        %1092 = vmatmul.mubr.f32.gmra.mrb[0].mxu0 %v930
        %v1093 = vpop.f32.mrb[0].mxu0
        %v1094 = vadd.f32 0.0, %v1093
        %v1095 = vpop.f32.mrb[0].mxu0
        %1096 = vmatprep.mubr.f32.mxu0 0.0
        %1097 = vmatmul.mubr.f32.gmra.mrb[0].mxu0 %v931
        %v1098 = vpop.f32.mrb[0].mxu0
        %v1099 = vadd.f32 0.0, %v1098
        %v1100 = vpop.f32.mrb[0].mxu0
        %1101 = vmatprep.mubr.f32.mxu0 0.0
        %1102 = vmatmul.mubr.f32.gmra.mrb[0].mxu0 %v932
        %v1103 = vpop.f32.mrb[0].mxu0
        %v1104 = vadd.f32 0.0, %v1103
        %v1105 = vpop.f32.mrb[0].mxu0
        %1106 = vmatprep.mubr.f32.mxu0 0.0
        %1107 = vmatmul.mubr.f32.gmra.mrb[0].mxu0 %v933
        %v1108 = vpop.f32.mrb[0].mxu0
        %v1109 = vadd.f32 0.0, %v1108
        %v1110 = vpop.f32.mrb[0].mxu0
        %1111 = vmatprep.mubr.f32.mxu0 0.0
        %1112 = vmatmul.mubr.f32.gmra.mrb[0].mxu0 %v934
        %v1113 = vpop.f32.mrb[0].mxu0
        %v1114 = vadd.f32 0.0, %v1113
        %v1115 = vpop.f32.mrb[0].mxu0
        %1116 = vmatprep.mubr.f32.mxu0 0.0
        %1117 = vmatmul.mubr.f32.gmra.mrb[0].mxu0 %v935
        %v1118 = vpop.f32.mrb[0].mxu0
        %v1119 = vadd.f32 0.0, %v1118
        %v1120 = vpop.f32.mrb[0].mxu0
        %1121 = vmatprep.mubr.f32.mxu0 0.0
        %1122 = vmatmul.mubr.f32.gmra.mrb[0].mxu0 %v936
        %v1123 = vpop.f32.mrb[0].mxu0
        %v1124 = vadd.f32 0.0, %v1123
        %v1125 = vpop.f32.mrb[0].mxu0
        %1126 = vmatprep.mubr.f32.mxu0 0.0
        %1127 = vmatmul.mubr.f32.gmra.mrb[0].mxu0 %v937
        %v1128 = vpop.f32.mrb[0].mxu0
        %v1129 = vadd.f32 0.0, %v1128
        %v1130 = vpop.f32.mrb[0].mxu0
        %1131 = vmatprep.mubr.f32.mxu0 0.0
        %1132 = vmatmul.mubr.f32.gmra.mrb[0].mxu0 %v938
        %v1133 = vpop.f32.mrb[0].mxu0
        %v1134 = vadd.f32 0.0, %v1133
        %v1135 = vpop.f32.mrb[0].mxu0
        %1136 = vmatprep.mubr.f32.mxu0 0.0
        %1137 = vmatmul.mubr.f32.gmra.mrb[0].mxu0 %v939
        %v1138 = vpop.f32.mrb[0].mxu0
        %v1139 = vadd.f32 0.0, %v1138
        %v1140 = vpop.f32.mrb[0].mxu0
        %1141 = vmatprep.mubr.f32.mxu0 0.0
        %1142 = vmatmul.mubr.f32.gmra.mrb[0].mxu0 %v940
        %v1143 = vpop.f32.mrb[0].mxu0
        %v1144 = vadd.f32 0.0, %v1143
        %v1145 = vpop.f32.mrb[0].mxu0
        %1146 = vmatprep.mubr.f32.mxu0 0.0
        %1147 = vmatmul.mubr.f32.gmra.mrb[0].mxu0 %v941
        %v1148 = vpop.f32.mrb[0].mxu0
        %v1149 = vadd.f32 0.0, %v1148
        %v1150 = vpop.f32.mrb[0].mxu0
        %1151 = vmatprep.mubr.f32.mxu0 0.0
        %1152 = vmatmul.mubr.f32.gmra.mrb[0].mxu0 %v942
        %v1153 = vpop.f32.mrb[0].mxu0
        %v1154 = vadd.f32 0.0, %v1153
        %v1155 = vpop.f32.mrb[0].mxu0
        %1156 = vmatprep.mubr.f32.mxu0 0.0
        %1157 = vmatmul.mubr.f32.gmra.mrb[0].mxu0 %v943
        %v1158 = vpop.f32.mrb[0].mxu0
        %v1159 = vadd.f32 0.0, %v1158
        %v1160 = vpop.f32.mrb[0].mxu0
        %1161 = vmatprep.mubr.f32.mxu0 0.0
        %1162 = vmatmul.mubr.f32.gmra.mrb[0].mxu0 %v944
        %v1163 = vpop.f32.mrb[0].mxu0
        %v1164 = vadd.f32 0.0, %v1163
        %v1165 = vpop.f32.mrb[0].mxu0
        %1166 = vmatprep.mubr.f32.mxu0 0.0
        %1167 = vmatmul.mubr.f32.gmra.mrb[0].mxu0 %v945
        %v1168 = vpop.f32.mrb[0].mxu0
        %v1169 = vadd.f32 0.0, %v1168
        %v1170 = vpop.f32.mrb[0].mxu0
        %1171 = vmatprep.mubr.f32.mxu0 0.0
        %1172 = vmatmul.mubr.f32.gmra.mrb[0].mxu0 %v946
        %v1173 = vpop.f32.mrb[0].mxu0
        %v1174 = vadd.f32 0.0, %v1173
        %v1175 = vpop.f32.mrb[0].mxu0
        %1176 = vmatprep.mubr.f32.mxu0 0.0
        %1177 = vmatmul.mubr.f32.gmra.mrb[0].mxu0 %v947
        %v1178 = vpop.f32.mrb[0].mxu0
        %v1179 = vadd.f32 0.0, %v1178
        %v1180 = vpop.f32.mrb[0].mxu0
        %1181 = vmatprep.mubr.f32.mxu0 0.0
        %1182 = vmatmul.mubr.f32.gmra.mrb[0].mxu0 %v948
        %v1183 = vpop.f32.mrb[0].mxu0
        %v1184 = vadd.f32 0.0, %v1183
        %v1185 = vpop.f32.mrb[0].mxu0
        %1186 = vmatprep.mubr.f32.mxu0 0.0
        %1187 = vmatmul.mubr.f32.gmra.mrb[0].mxu0 %v949
        %v1188 = vpop.f32.mrb[0].mxu0
        %v1189 = vadd.f32 0.0, %v1188
        %v1190 = vpop.f32.mrb[0].mxu0
        %1191 = vmatprep.mubr.f32.mxu0 0.0
        %1192 = vmatmul.mubr.f32.gmra.mrb[0].mxu0 %v950
        %v1193 = vpop.f32.mrb[0].mxu0
        %v1194 = vadd.f32 0.0, %v1193
        %v1195 = vpop.f32.mrb[0].mxu0
        %1196 = vmatprep.mubr.f32.mxu0 0.0
        %1197 = vmatmul.mubr.f32.gmra.mrb[0].mxu0 %v951
        %v1198 = vpop.f32.mrb[0].mxu0
        %v1199 = vadd.f32 0.0, %v1198
        %v1200 = vpop.f32.mrb[0].mxu0
        %1201 = vmatprep.mubr.f32.mxu0 0.0
        %1202 = vmatmul.mubr.f32.gmra.mrb[0].mxu0 %v952
        %v1203 = vpop.f32.mrb[0].mxu0
        %v1204 = vadd.f32 0.0, %v1203
        %v1205 = vpop.f32.mrb[0].mxu0
        %1206 = vmatprep.mubr.f32.mxu0 0.0
        %1207 = vmatmul.mubr.f32.gmra.mrb[0].mxu0 %v953
        %v1208 = vpop.f32.mrb[0].mxu0
        %v1209 = vadd.f32 0.0, %v1208
        %v1210 = vpop.f32.mrb[0].mxu0
        %1211 = vmatprep.mubr.f32.mxu0 0.0
        %1212 = vmatmul.mubr.f32.gmra.mrb[0].mxu0 %v954
        %v1213 = vpop.f32.mrb[0].mxu0
        %v1214 = vadd.f32 0.0, %v1213
        %v1215 = vpop.f32.mrb[0].mxu0
        %1216 = vdwg.mxu0
        %v1217 = vld [vmem:[#allocation2] sm:$0xff]
        %v1218 = vld [vmem:[#allocation2 + $0x8] sm:$0xff]
        %v1219 = vld [vmem:[#allocation2 + $0x10] sm:$0xff]
        %v1220 = vld [vmem:[#allocation2 + $0x18] sm:$0xff]
        %v1221 = vld [vmem:[#allocation2 + $0x20] sm:$0xff]
        %v1222 = vld [vmem:[#allocation2 + $0x28] sm:$0xff]
        %v1223 = vld [vmem:[#allocation2 + $0x30] sm:$0xff]
        %v1224 = vld [vmem:[#allocation2 + $0x38] sm:$0xff]
        %v1225 = vld [vmem:[#allocation2 + $0x40] sm:$0xff]
        %v1226 = vld [vmem:[#allocation2 + $0x48] sm:$0xff]
        %v1227 = vld [vmem:[#allocation2 + $0x50] sm:$0xff]
        %v1228 = vld [vmem:[#allocation2 + $0x58] sm:$0xff]
        %v1229 = vld [vmem:[#allocation2 + $0x60] sm:$0xff]
        %v1230 = vld [vmem:[#allocation2 + $0x68] sm:$0xff]
        %v1231 = vld [vmem:[#allocation2 + $0x70] sm:$0xff]
        %v1232 = vld [vmem:[#allocation2 + $0x78] sm:$0xff]
        %v1233 = vld [vmem:[#allocation2 + $0x80] sm:$0xff]
        %v1234 = vld [vmem:[#allocation2 + $0x88] sm:$0xff]
        %v1235 = vld [vmem:[#allocation2 + $0x90] sm:$0xff]
        %v1236 = vld [vmem:[#allocation2 + $0x98] sm:$0xff]
        %v1237 = vld [vmem:[#allocation2 + $0xa0] sm:$0xff]
        %v1238 = vld [vmem:[#allocation2 + $0xa8] sm:$0xff]
        %v1239 = vld [vmem:[#allocation2 + $0xb0] sm:$0xff]
        %v1240 = vld [vmem:[#allocation2 + $0xb8] sm:$0xff]
        %v1241 = vld [vmem:[#allocation2 + $0xc0] sm:$0xff]
        %v1242 = vld [vmem:[#allocation2 + $0xc8] sm:$0xff]
        %v1243 = vld [vmem:[#allocation2 + $0xd0] sm:$0xff]
        %v1244 = vld [vmem:[#allocation2 + $0xd8] sm:$0xff]
        %v1245 = vld [vmem:[#allocation2 + $0xe0] sm:$0xff]
        %v1246 = vld [vmem:[#allocation2 + $0xe8] sm:$0xff]
        %v1247 = vld [vmem:[#allocation2 + $0xf0] sm:$0xff]
        %v1248 = vld [vmem:[#allocation2 + $0xf8] sm:$0xff]
        %v1249 = vld [vmem:[#allocation2 + $0x100] sm:$0xff]
        %v1250 = vld [vmem:[#allocation2 + $0x108] sm:$0xff]
        %v1251 = vld [vmem:[#allocation2 + $0x110] sm:$0xff]
        %v1252 = vld [vmem:[#allocation2 + $0x118] sm:$0xff]
        %v1253 = vadd.f32 %v1217, %v1039
        %v1254 = vadd.f32 %v1218, %v1044
        %v1255 = vadd.f32 %v1219, %v1049
        %v1256 = vadd.f32 %v1220, %v1054
        %v1257 = vadd.f32 %v1221, %v1059
        %v1258 = vadd.f32 %v1222, %v1064
        %v1259 = vadd.f32 %v1223, %v1069
        %v1260 = vadd.f32 %v1224, %v1074
        %v1261 = vadd.f32 %v1225, %v1079
        %v1262 = vadd.f32 %v1226, %v1084
        %v1263 = vadd.f32 %v1227, %v1089
        %v1264 = vadd.f32 %v1228, %v1094
        %v1265 = vadd.f32 %v1229, %v1099
        %v1266 = vadd.f32 %v1230, %v1104
        %v1267 = vadd.f32 %v1231, %v1109
        %v1268 = vadd.f32 %v1232, %v1114
        %v1269 = vadd.f32 %v1233, %v1119
        %v1270 = vadd.f32 %v1234, %v1124
        %v1271 = vadd.f32 %v1235, %v1129
        %v1272 = vadd.f32 %v1236, %v1134
        %v1273 = vadd.f32 %v1237, %v1139
        %v1274 = vadd.f32 %v1238, %v1144
        %v1275 = vadd.f32 %v1239, %v1149
        %v1276 = vadd.f32 %v1240, %v1154
        %v1277 = vadd.f32 %v1241, %v1159
        %v1278 = vadd.f32 %v1242, %v1164
        %v1279 = vadd.f32 %v1243, %v1169
        %v1280 = vadd.f32 %v1244, %v1174
        %v1281 = vadd.f32 %v1245, %v1179
        %v1282 = vadd.f32 %v1246, %v1184
        %v1283 = vadd.f32 %v1247, %v1189
        %v1284 = vadd.f32 %v1248, %v1194
        %v1285 = vadd.f32 %v1249, %v1199
        %v1286 = vadd.f32 %v1250, %v1204
        %v1287 = vadd.f32 %v1251, %v1209
        %v1288 = vadd.f32 %v1252, %v1214
        %1289 = vst [vmem:[#allocation2] sm:$0xff] %v1253
        %1290 = vst [vmem:[#allocation2 + $0x8] sm:$0xff] %v1254
        %1291 = vst [vmem:[#allocation2 + $0x10] sm:$0xff] %v1255
        %1292 = vst [vmem:[#allocation2 + $0x18] sm:$0xff] %v1256
        %1293 = vst [vmem:[#allocation2 + $0x20] sm:$0xff] %v1257
        %1294 = vst [vmem:[#allocation2 + $0x28] sm:$0xff] %v1258
        %1295 = vst [vmem:[#allocation2 + $0x30] sm:$0xff] %v1259
        %1296 = vst [vmem:[#allocation2 + $0x38] sm:$0xff] %v1260
        %1297 = vst [vmem:[#allocation2 + $0x40] sm:$0xff] %v1261
        %1298 = vst [vmem:[#allocation2 + $0x48] sm:$0xff] %v1262
        %1299 = vst [vmem:[#allocation2 + $0x50] sm:$0xff] %v1263
        %1300 = vst [vmem:[#allocation2 + $0x58] sm:$0xff] %v1264
        %1301 = vst [vmem:[#allocation2 + $0x60] sm:$0xff] %v1265
        %1302 = vst [vmem:[#allocation2 + $0x68] sm:$0xff] %v1266
        %1303 = vst [vmem:[#allocation2 + $0x70] sm:$0xff] %v1267
        %1304 = vst [vmem:[#allocation2 + $0x78] sm:$0xff] %v1268
        %1305 = vst [vmem:[#allocation2 + $0x80] sm:$0xff] %v1269
        %1306 = vst [vmem:[#allocation2 + $0x88] sm:$0xff] %v1270
        %1307 = vst [vmem:[#allocation2 + $0x90] sm:$0xff] %v1271
        %1308 = vst [vmem:[#allocation2 + $0x98] sm:$0xff] %v1272
        %1309 = vst [vmem:[#allocation2 + $0xa0] sm:$0xff] %v1273
        %1310 = vst [vmem:[#allocation2 + $0xa8] sm:$0xff] %v1274
        %1311 = vst [vmem:[#allocation2 + $0xb0] sm:$0xff] %v1275
        %1312 = vst [vmem:[#allocation2 + $0xb8] sm:$0xff] %v1276
        %1313 = vst [vmem:[#allocation2 + $0xc0] sm:$0xff] %v1277
        %1314 = vst [vmem:[#allocation2 + $0xc8] sm:$0xff] %v1278
        %1315 = vst [vmem:[#allocation2 + $0xd0] sm:$0xff] %v1279
        %1316 = vst [vmem:[#allocation2 + $0xd8] sm:$0xff] %v1280
        %1317 = vst [vmem:[#allocation2 + $0xe0] sm:$0xff] %v1281
        %1318 = vst [vmem:[#allocation2 + $0xe8] sm:$0xff] %v1282
        %1319 = vst [vmem:[#allocation2 + $0xf0] sm:$0xff] %v1283
        %1320 = vst [vmem:[#allocation2 + $0xf8] sm:$0xff] %v1284
        %1321 = vst [vmem:[#allocation2 + $0x100] sm:$0xff] %v1285
        %1322 = vst [vmem:[#allocation2 + $0x108] sm:$0xff] %v1286
        %1323 = vst [vmem:[#allocation2 + $0x110] sm:$0xff] %v1287
        %1324 = vst [vmem:[#allocation2 + $0x118] sm:$0xff] %v1288
        %v1325 = vld [vmem:[%s179 + $0x12] sm:$0xff]
        %v1326 = vld [vmem:[%s179 + $0x1a] sm:$0xff]
        %v1327 = vld [vmem:[%s179 + $0x22] sm:$0xff]
        %v1328 = vld [vmem:[%s179 + $0x2a] sm:$0xff]
        %v1329 = vld [vmem:[%s179 + $0x32] sm:$0xff]
        %v1330 = vld [vmem:[%s179 + $0x3a] sm:$0xff]
        %v1331 = vld [vmem:[%s179 + $0x42] sm:$0xff]
        %v1332 = vld [vmem:[%s179 + $0x4a] sm:$0xff]
        %v1333 = vld [vmem:[%s179 + $0x52] sm:$0xff]
        %v1334 = vld [vmem:[%s179 + $0x5a] sm:$0xff]
        %v1335 = vld [vmem:[%s179 + $0x62] sm:$0xff]
        %v1336 = vld [vmem:[%s179 + $0x6a] sm:$0xff]
        %v1337 = vld [vmem:[%s179 + $0x72] sm:$0xff]
        %v1338 = vld [vmem:[%s179 + $0x7a] sm:$0xff]
        %v1339 = vld [vmem:[%s179 + $0x82] sm:$0xff]
        %v1340 = vld [vmem:[%s179 + $0x8a] sm:$0xff]
        %v1341 = vld [vmem:[%s179 + $0x92] sm:$0xff]
        %v1342 = vld [vmem:[%s179 + $0x9a] sm:$0xff]
        %v1343 = vld [vmem:[%s179 + $0xa2] sm:$0xff]
        %v1344 = vld [vmem:[%s179 + $0xaa] sm:$0xff]
        %v1345 = vld [vmem:[%s179 + $0xb2] sm:$0xff]
        %v1346 = vld [vmem:[%s179 + $0xba] sm:$0xff]
        %v1347 = vld [vmem:[%s179 + $0xc2] sm:$0xff]
        %v1348 = vld [vmem:[%s179 + $0xca] sm:$0xff]
        %v1349 = vld [vmem:[%s179 + $0xd2] sm:$0xff]
        %v1350 = vld [vmem:[%s179 + $0xda] sm:$0xff]
        %v1351 = vld [vmem:[%s179 + $0xe2] sm:$0xff]
        %v1352 = vld [vmem:[%s179 + $0xea] sm:$0xff]
        %v1353 = vld [vmem:[%s179 + $0xf2] sm:$0xff]
        %v1354 = vld [vmem:[%s179 + $0xfa] sm:$0xff]
        %v1355 = vld [vmem:[%s179 + $0x102] sm:$0xff]
        %v1356 = vld [vmem:[%s179 + $0x10a] sm:$0xff]
        %v1357 = vld [vmem:[%s179 + $0x112] sm:$0xff]
        %v1358 = vld [vmem:[%s179 + $0x11a] sm:$0xff]
        %v1359 = vld [vmem:[%s179 + $0x122] sm:$0xff]
        %v1360 = vld [vmem:[%s179 + $0x12a] sm:$0xff]
        %s1361 = scalar_lea.vmem %s1, 384
        %v1362 = vld [vmem:[%s1361] sm:$0xff]
        %v1363 = vld [vmem:[%s1361 + $0x8] sm:$0xff]
        %v1364 = vld [vmem:[%s1361 + $0x10] sm:$0xff]
        %v1365 = vld [vmem:[%s1361 + $0x18] sm:$0xff]
        %v1366 = vld [vmem:[%s1361 + $0x20] sm:$0xff]
        %v1367 = vld [vmem:[%s1361 + $0x28] sm:$0xff]
        %v1368 = vld [vmem:[%s1361 + $0x30] sm:$0xff]
        %v1369 = vld [vmem:[%s1361 + $0x38] sm:$0xff]
        %v1370 = vld [vmem:[%s1361 + $0x40] sm:$0xff]
        %v1371 = vld [vmem:[%s1361 + $0x48] sm:$0xff]
        %v1372 = vld [vmem:[%s1361 + $0x50] sm:$0xff]
        %v1373 = vld [vmem:[%s1361 + $0x58] sm:$0xff]
        %v1374 = vld [vmem:[%s1361 + $0x60] sm:$0xff]
        %v1375 = vld [vmem:[%s1361 + $0x68] sm:$0xff]
        %v1376 = vld [vmem:[%s1361 + $0x70] sm:$0xff]
        %v1377 = vld [vmem:[%s1361 + $0x78] sm:$0xff]
        %1378 = vmatprep.subr.mxu0 0.0
        %1379 = vmatpush1.msra.mxu0 %v1362
        %1380 = vmatprep.subr.mxu0 0.0
        %1381 = vmatpush1.msra.mxu0 %v1363
        %1382 = vmatprep.subr.mxu0 0.0
        %1383 = vmatpush1.msra.mxu0 %v1364
        %1384 = vmatprep.subr.mxu0 0.0
        %1385 = vmatpush1.msra.mxu0 %v1365
        %1386 = vmatprep.subr.mxu0 0.0
        %1387 = vmatpush1.msra.mxu0 %v1366
        %1388 = vmatprep.subr.mxu0 0.0
        %1389 = vmatpush1.msra.mxu0 %v1367
        %1390 = vmatprep.subr.mxu0 0.0
        %1391 = vmatpush1.msra.mxu0 %v1368
        %1392 = vmatprep.subr.mxu0 0.0
        %1393 = vmatpush1.msra.mxu0 %v1369
        %1394 = vmatprep.subr.mxu0 0.0
        %1395 = vmatpush1.msra.mxu0 %v1370
        %1396 = vmatprep.subr.mxu0 0.0
        %1397 = vmatpush1.msra.mxu0 %v1371
        %1398 = vmatprep.subr.mxu0 0.0
        %1399 = vmatpush1.msra.mxu0 %v1372
        %1400 = vmatprep.subr.mxu0 0.0
        %1401 = vmatpush1.msra.mxu0 %v1373
        %1402 = vmatprep.subr.mxu0 0.0
        %1403 = vmatpush1.msra.mxu0 %v1374
        %1404 = vmatprep.subr.mxu0 0.0
        %1405 = vmatpush1.msra.mxu0 %v1375
        %1406 = vmatprep.subr.mxu0 0.0
        %1407 = vmatpush1.msra.mxu0 %v1376
        %1408 = vmatprep.subr.mxu0 0.0
        %1409 = vmatpush1.msra.mxu0 %v1377
        %1410 = vmatprep.subr.mxu0 0.0
        %1411 = vmatpush1.msra.mxu0 0.0
        %1412 = vmatprep.subr.mxu0 0.0
        %1413 = vmatpush1.msra.mxu0 0.0
        %1414 = vmatprep.subr.mxu0 0.0
        %1415 = vmatpush1.msra.mxu0 0.0
        %1416 = vmatprep.subr.mxu0 0.0
        %1417 = vmatpush1.msra.mxu0 0.0
        %1418 = vmatprep.subr.mxu0 0.0
        %1419 = vmatpush1.msra.mxu0 0.0
        %1420 = vmatprep.subr.mxu0 0.0
        %1421 = vmatpush1.msra.mxu0 0.0
        %1422 = vmatprep.subr.mxu0 0.0
        %1423 = vmatpush1.msra.mxu0 0.0
        %1424 = vmatprep.subr.mxu0 0.0
        %1425 = vmatpush1.msra.mxu0 0.0
        %1426 = vmatprep.subr.mxu0 0.0
        %1427 = vmatpush1.msra.mxu0 0.0
        %1428 = vmatprep.subr.mxu0 0.0
        %1429 = vmatpush1.msra.mxu0 0.0
        %1430 = vmatprep.subr.mxu0 0.0
        %1431 = vmatpush1.msra.mxu0 0.0
        %1432 = vmatprep.subr.mxu0 0.0
        %1433 = vmatpush1.msra.mxu0 0.0
        %1434 = vmatprep.subr.mxu0 0.0
        %1435 = vmatpush1.msra.mxu0 0.0
        %1436 = vmatprep.subr.mxu0 0.0
        %1437 = vmatpush1.msra.mxu0 0.0
        %1438 = vmatprep.subr.mxu0 0.0
        %1439 = vmatpush1.msra.mxu0 0.0
        %1440 = vmatprep.subr.mxu0 0.0
        %1441 = vmatpush1.msra.mxu0 0.0
        %1442 = vmatprep.mubr.f32.mxu0 0.0
        %1443 = vmatmul.mubr.f32.gmra.mrb[0].mxu0 %v1325
        %v1444 = vpop.f32.mrb[0].mxu0
        %v1445 = vadd.f32 0.0, %v1444
        %v1446 = vpop.f32.mrb[0].mxu0
        %1447 = vmatprep.mubr.f32.mxu0 0.0
        %1448 = vmatmul.mubr.f32.gmra.mrb[0].mxu0 %v1326
        %v1449 = vpop.f32.mrb[0].mxu0
        %v1450 = vadd.f32 0.0, %v1449
        %v1451 = vpop.f32.mrb[0].mxu0
        %1452 = vmatprep.mubr.f32.mxu0 0.0
        %1453 = vmatmul.mubr.f32.gmra.mrb[0].mxu0 %v1327
        %v1454 = vpop.f32.mrb[0].mxu0
        %v1455 = vadd.f32 0.0, %v1454
        %v1456 = vpop.f32.mrb[0].mxu0
        %1457 = vmatprep.mubr.f32.mxu0 0.0
        %1458 = vmatmul.mubr.f32.gmra.mrb[0].mxu0 %v1328
        %v1459 = vpop.f32.mrb[0].mxu0
        %v1460 = vadd.f32 0.0, %v1459
        %v1461 = vpop.f32.mrb[0].mxu0
        %1462 = vmatprep.mubr.f32.mxu0 0.0
        %1463 = vmatmul.mubr.f32.gmra.mrb[0].mxu0 %v1329
        %v1464 = vpop.f32.mrb[0].mxu0
        %v1465 = vadd.f32 0.0, %v1464
        %v1466 = vpop.f32.mrb[0].mxu0
        %1467 = vmatprep.mubr.f32.mxu0 0.0
        %1468 = vmatmul.mubr.f32.gmra.mrb[0].mxu0 %v1330
        %v1469 = vpop.f32.mrb[0].mxu0
        %v1470 = vadd.f32 0.0, %v1469
        %v1471 = vpop.f32.mrb[0].mxu0
        %1472 = vmatprep.mubr.f32.mxu0 0.0
        %1473 = vmatmul.mubr.f32.gmra.mrb[0].mxu0 %v1331
        %v1474 = vpop.f32.mrb[0].mxu0
        %v1475 = vadd.f32 0.0, %v1474
        %v1476 = vpop.f32.mrb[0].mxu0
        %1477 = vmatprep.mubr.f32.mxu0 0.0
        %1478 = vmatmul.mubr.f32.gmra.mrb[0].mxu0 %v1332
        %v1479 = vpop.f32.mrb[0].mxu0
        %v1480 = vadd.f32 0.0, %v1479
        %v1481 = vpop.f32.mrb[0].mxu0
        %1482 = vmatprep.mubr.f32.mxu0 0.0
        %1483 = vmatmul.mubr.f32.gmra.mrb[0].mxu0 %v1333
        %v1484 = vpop.f32.mrb[0].mxu0
        %v1485 = vadd.f32 0.0, %v1484
        %v1486 = vpop.f32.mrb[0].mxu0
        %1487 = vmatprep.mubr.f32.mxu0 0.0
        %1488 = vmatmul.mubr.f32.gmra.mrb[0].mxu0 %v1334
        %v1489 = vpop.f32.mrb[0].mxu0
        %v1490 = vadd.f32 0.0, %v1489
        %v1491 = vpop.f32.mrb[0].mxu0
        %1492 = vmatprep.mubr.f32.mxu0 0.0
        %1493 = vmatmul.mubr.f32.gmra.mrb[0].mxu0 %v1335
        %v1494 = vpop.f32.mrb[0].mxu0
        %v1495 = vadd.f32 0.0, %v1494
        %v1496 = vpop.f32.mrb[0].mxu0
        %1497 = vmatprep.mubr.f32.mxu0 0.0
        %1498 = vmatmul.mubr.f32.gmra.mrb[0].mxu0 %v1336
        %v1499 = vpop.f32.mrb[0].mxu0
        %v1500 = vadd.f32 0.0, %v1499
        %v1501 = vpop.f32.mrb[0].mxu0
        %1502 = vmatprep.mubr.f32.mxu0 0.0
        %1503 = vmatmul.mubr.f32.gmra.mrb[0].mxu0 %v1337
        %v1504 = vpop.f32.mrb[0].mxu0
        %v1505 = vadd.f32 0.0, %v1504
        %v1506 = vpop.f32.mrb[0].mxu0
        %1507 = vmatprep.mubr.f32.mxu0 0.0
        %1508 = vmatmul.mubr.f32.gmra.mrb[0].mxu0 %v1338
        %v1509 = vpop.f32.mrb[0].mxu0
        %v1510 = vadd.f32 0.0, %v1509
        %v1511 = vpop.f32.mrb[0].mxu0
        %1512 = vmatprep.mubr.f32.mxu0 0.0
        %1513 = vmatmul.mubr.f32.gmra.mrb[0].mxu0 %v1339
        %v1514 = vpop.f32.mrb[0].mxu0
        %v1515 = vadd.f32 0.0, %v1514
        %v1516 = vpop.f32.mrb[0].mxu0
        %1517 = vmatprep.mubr.f32.mxu0 0.0
        %1518 = vmatmul.mubr.f32.gmra.mrb[0].mxu0 %v1340
        %v1519 = vpop.f32.mrb[0].mxu0
        %v1520 = vadd.f32 0.0, %v1519
        %v1521 = vpop.f32.mrb[0].mxu0
        %1522 = vmatprep.mubr.f32.mxu0 0.0
        %1523 = vmatmul.mubr.f32.gmra.mrb[0].mxu0 %v1341
        %v1524 = vpop.f32.mrb[0].mxu0
        %v1525 = vadd.f32 0.0, %v1524
        %v1526 = vpop.f32.mrb[0].mxu0
        %1527 = vmatprep.mubr.f32.mxu0 0.0
        %1528 = vmatmul.mubr.f32.gmra.mrb[0].mxu0 %v1342
        %v1529 = vpop.f32.mrb[0].mxu0
        %v1530 = vadd.f32 0.0, %v1529
        %v1531 = vpop.f32.mrb[0].mxu0
        %1532 = vmatprep.mubr.f32.mxu0 0.0
        %1533 = vmatmul.mubr.f32.gmra.mrb[0].mxu0 %v1343
        %v1534 = vpop.f32.mrb[0].mxu0
        %v1535 = vadd.f32 0.0, %v1534
        %v1536 = vpop.f32.mrb[0].mxu0
        %1537 = vmatprep.mubr.f32.mxu0 0.0
        %1538 = vmatmul.mubr.f32.gmra.mrb[0].mxu0 %v1344
        %v1539 = vpop.f32.mrb[0].mxu0
        %v1540 = vadd.f32 0.0, %v1539
        %v1541 = vpop.f32.mrb[0].mxu0
        %1542 = vmatprep.mubr.f32.mxu0 0.0
        %1543 = vmatmul.mubr.f32.gmra.mrb[0].mxu0 %v1345
        %v1544 = vpop.f32.mrb[0].mxu0
        %v1545 = vadd.f32 0.0, %v1544
        %v1546 = vpop.f32.mrb[0].mxu0
        %1547 = vmatprep.mubr.f32.mxu0 0.0
        %1548 = vmatmul.mubr.f32.gmra.mrb[0].mxu0 %v1346
        %v1549 = vpop.f32.mrb[0].mxu0
        %v1550 = vadd.f32 0.0, %v1549
        %v1551 = vpop.f32.mrb[0].mxu0
        %1552 = vmatprep.mubr.f32.mxu0 0.0
        %1553 = vmatmul.mubr.f32.gmra.mrb[0].mxu0 %v1347
        %v1554 = vpop.f32.mrb[0].mxu0
        %v1555 = vadd.f32 0.0, %v1554
        %v1556 = vpop.f32.mrb[0].mxu0
        %1557 = vmatprep.mubr.f32.mxu0 0.0
        %1558 = vmatmul.mubr.f32.gmra.mrb[0].mxu0 %v1348
        %v1559 = vpop.f32.mrb[0].mxu0
        %v1560 = vadd.f32 0.0, %v1559
        %v1561 = vpop.f32.mrb[0].mxu0
        %1562 = vmatprep.mubr.f32.mxu0 0.0
        %1563 = vmatmul.mubr.f32.gmra.mrb[0].mxu0 %v1349
        %v1564 = vpop.f32.mrb[0].mxu0
        %v1565 = vadd.f32 0.0, %v1564
        %v1566 = vpop.f32.mrb[0].mxu0
        %1567 = vmatprep.mubr.f32.mxu0 0.0
        %1568 = vmatmul.mubr.f32.gmra.mrb[0].mxu0 %v1350
        %v1569 = vpop.f32.mrb[0].mxu0
        %v1570 = vadd.f32 0.0, %v1569
        %v1571 = vpop.f32.mrb[0].mxu0
        %1572 = vmatprep.mubr.f32.mxu0 0.0
        %1573 = vmatmul.mubr.f32.gmra.mrb[0].mxu0 %v1351
        %v1574 = vpop.f32.mrb[0].mxu0
        %v1575 = vadd.f32 0.0, %v1574
        %v1576 = vpop.f32.mrb[0].mxu0
        %1577 = vmatprep.mubr.f32.mxu0 0.0
        %1578 = vmatmul.mubr.f32.gmra.mrb[0].mxu0 %v1352
        %v1579 = vpop.f32.mrb[0].mxu0
        %v1580 = vadd.f32 0.0, %v1579
        %v1581 = vpop.f32.mrb[0].mxu0
        %1582 = vmatprep.mubr.f32.mxu0 0.0
        %1583 = vmatmul.mubr.f32.gmra.mrb[0].mxu0 %v1353
        %v1584 = vpop.f32.mrb[0].mxu0
        %v1585 = vadd.f32 0.0, %v1584
        %v1586 = vpop.f32.mrb[0].mxu0
        %1587 = vmatprep.mubr.f32.mxu0 0.0
        %1588 = vmatmul.mubr.f32.gmra.mrb[0].mxu0 %v1354
        %v1589 = vpop.f32.mrb[0].mxu0
        %v1590 = vadd.f32 0.0, %v1589
        %v1591 = vpop.f32.mrb[0].mxu0
        %1592 = vmatprep.mubr.f32.mxu0 0.0
        %1593 = vmatmul.mubr.f32.gmra.mrb[0].mxu0 %v1355
        %v1594 = vpop.f32.mrb[0].mxu0
        %v1595 = vadd.f32 0.0, %v1594
        %v1596 = vpop.f32.mrb[0].mxu0
        %1597 = vmatprep.mubr.f32.mxu0 0.0
        %1598 = vmatmul.mubr.f32.gmra.mrb[0].mxu0 %v1356
        %v1599 = vpop.f32.mrb[0].mxu0
        %v1600 = vadd.f32 0.0, %v1599
        %v1601 = vpop.f32.mrb[0].mxu0
        %1602 = vmatprep.mubr.f32.mxu0 0.0
        %1603 = vmatmul.mubr.f32.gmra.mrb[0].mxu0 %v1357
        %v1604 = vpop.f32.mrb[0].mxu0
        %v1605 = vadd.f32 0.0, %v1604
        %v1606 = vpop.f32.mrb[0].mxu0
        %1607 = vmatprep.mubr.f32.mxu0 0.0
        %1608 = vmatmul.mubr.f32.gmra.mrb[0].mxu0 %v1358
        %v1609 = vpop.f32.mrb[0].mxu0
        %v1610 = vadd.f32 0.0, %v1609
        %v1611 = vpop.f32.mrb[0].mxu0
        %1612 = vmatprep.mubr.f32.mxu0 0.0
        %1613 = vmatmul.mubr.f32.gmra.mrb[0].mxu0 %v1359
        %v1614 = vpop.f32.mrb[0].mxu0
        %v1615 = vadd.f32 0.0, %v1614
        %v1616 = vpop.f32.mrb[0].mxu0
        %1617 = vmatprep.mubr.f32.mxu0 0.0
        %1618 = vmatmul.mubr.f32.gmra.mrb[0].mxu0 %v1360
        %v1619 = vpop.f32.mrb[0].mxu0
        %v1620 = vadd.f32 0.0, %v1619
        %v1621 = vpop.f32.mrb[0].mxu0
        %1622 = vdwg.mxu0
        %v1623 = vld [vmem:[#allocation2] sm:$0xff]
        %v1624 = vld [vmem:[#allocation2 + $0x8] sm:$0xff]
        %v1625 = vld [vmem:[#allocation2 + $0x10] sm:$0xff]
        %v1626 = vld [vmem:[#allocation2 + $0x18] sm:$0xff]
        %v1627 = vld [vmem:[#allocation2 + $0x20] sm:$0xff]
        %v1628 = vld [vmem:[#allocation2 + $0x28] sm:$0xff]
        %v1629 = vld [vmem:[#allocation2 + $0x30] sm:$0xff]
        %v1630 = vld [vmem:[#allocation2 + $0x38] sm:$0xff]
        %v1631 = vld [vmem:[#allocation2 + $0x40] sm:$0xff]
        %v1632 = vld [vmem:[#allocation2 + $0x48] sm:$0xff]
        %v1633 = vld [vmem:[#allocation2 + $0x50] sm:$0xff]
        %v1634 = vld [vmem:[#allocation2 + $0x58] sm:$0xff]
        %v1635 = vld [vmem:[#allocation2 + $0x60] sm:$0xff]
        %v1636 = vld [vmem:[#allocation2 + $0x68] sm:$0xff]
        %v1637 = vld [vmem:[#allocation2 + $0x70] sm:$0xff]
        %v1638 = vld [vmem:[#allocation2 + $0x78] sm:$0xff]
        %v1639 = vld [vmem:[#allocation2 + $0x80] sm:$0xff]
        %v1640 = vld [vmem:[#allocation2 + $0x88] sm:$0xff]
        %v1641 = vld [vmem:[#allocation2 + $0x90] sm:$0xff]
        %v1642 = vld [vmem:[#allocation2 + $0x98] sm:$0xff]
        %v1643 = vld [vmem:[#allocation2 + $0xa0] sm:$0xff]
        %v1644 = vld [vmem:[#allocation2 + $0xa8] sm:$0xff]
        %v1645 = vld [vmem:[#allocation2 + $0xb0] sm:$0xff]
        %v1646 = vld [vmem:[#allocation2 + $0xb8] sm:$0xff]
        %v1647 = vld [vmem:[#allocation2 + $0xc0] sm:$0xff]
        %v1648 = vld [vmem:[#allocation2 + $0xc8] sm:$0xff]
        %v1649 = vld [vmem:[#allocation2 + $0xd0] sm:$0xff]
        %v1650 = vld [vmem:[#allocation2 + $0xd8] sm:$0xff]
        %v1651 = vld [vmem:[#allocation2 + $0xe0] sm:$0xff]
        %v1652 = vld [vmem:[#allocation2 + $0xe8] sm:$0xff]
        %v1653 = vld [vmem:[#allocation2 + $0xf0] sm:$0xff]
        %v1654 = vld [vmem:[#allocation2 + $0xf8] sm:$0xff]
        %v1655 = vld [vmem:[#allocation2 + $0x100] sm:$0xff]
        %v1656 = vld [vmem:[#allocation2 + $0x108] sm:$0xff]
        %v1657 = vld [vmem:[#allocation2 + $0x110] sm:$0xff]
        %v1658 = vld [vmem:[#allocation2 + $0x118] sm:$0xff]
        %v1659 = vadd.f32 %v1623, %v1445
        %v1660 = vadd.f32 %v1624, %v1450
        %v1661 = vadd.f32 %v1625, %v1455
        %v1662 = vadd.f32 %v1626, %v1460
        %v1663 = vadd.f32 %v1627, %v1465
        %v1664 = vadd.f32 %v1628, %v1470
        %v1665 = vadd.f32 %v1629, %v1475
        %v1666 = vadd.f32 %v1630, %v1480
        %v1667 = vadd.f32 %v1631, %v1485
        %v1668 = vadd.f32 %v1632, %v1490
        %v1669 = vadd.f32 %v1633, %v1495
        %v1670 = vadd.f32 %v1634, %v1500
        %v1671 = vadd.f32 %v1635, %v1505
        %v1672 = vadd.f32 %v1636, %v1510
        %v1673 = vadd.f32 %v1637, %v1515
        %v1674 = vadd.f32 %v1638, %v1520
        %v1675 = vadd.f32 %v1639, %v1525
        %v1676 = vadd.f32 %v1640, %v1530
        %v1677 = vadd.f32 %v1641, %v1535
        %v1678 = vadd.f32 %v1642, %v1540
        %v1679 = vadd.f32 %v1643, %v1545
        %v1680 = vadd.f32 %v1644, %v1550
        %v1681 = vadd.f32 %v1645, %v1555
        %v1682 = vadd.f32 %v1646, %v1560
        %v1683 = vadd.f32 %v1647, %v1565
        %v1684 = vadd.f32 %v1648, %v1570
        %v1685 = vadd.f32 %v1649, %v1575
        %v1686 = vadd.f32 %v1650, %v1580
        %v1687 = vadd.f32 %v1651, %v1585
        %v1688 = vadd.f32 %v1652, %v1590
        %v1689 = vadd.f32 %v1653, %v1595
        %v1690 = vadd.f32 %v1654, %v1600
        %v1691 = vadd.f32 %v1655, %v1605
        %v1692 = vadd.f32 %v1656, %v1610
        %v1693 = vadd.f32 %v1657, %v1615
        %v1694 = vadd.f32 %v1658, %v1620
        %1695 = vst [vmem:[#allocation2] sm:$0xff] %v1659
        %1696 = vst [vmem:[#allocation2 + $0x8] sm:$0xff] %v1660
        %1697 = vst [vmem:[#allocation2 + $0x10] sm:$0xff] %v1661
        %1698 = vst [vmem:[#allocation2 + $0x18] sm:$0xff] %v1662
        %1699 = vst [vmem:[#allocation2 + $0x20] sm:$0xff] %v1663
        %1700 = vst [vmem:[#allocation2 + $0x28] sm:$0xff] %v1664
        %1701 = vst [vmem:[#allocation2 + $0x30] sm:$0xff] %v1665
        %1702 = vst [vmem:[#allocation2 + $0x38] sm:$0xff] %v1666
        %1703 = vst [vmem:[#allocation2 + $0x40] sm:$0xff] %v1667
        %1704 = vst [vmem:[#allocation2 + $0x48] sm:$0xff] %v1668
        %1705 = vst [vmem:[#allocation2 + $0x50] sm:$0xff] %v1669
        %1706 = vst [vmem:[#allocation2 + $0x58] sm:$0xff] %v1670
        %1707 = vst [vmem:[#allocation2 + $0x60] sm:$0xff] %v1671
        %1708 = vst [vmem:[#allocation2 + $0x68] sm:$0xff] %v1672
        %1709 = vst [vmem:[#allocation2 + $0x70] sm:$0xff] %v1673
        %1710 = vst [vmem:[#allocation2 + $0x78] sm:$0xff] %v1674
        %1711 = vst [vmem:[#allocation2 + $0x80] sm:$0xff] %v1675
        %1712 = vst [vmem:[#allocation2 + $0x88] sm:$0xff] %v1676
        %1713 = vst [vmem:[#allocation2 + $0x90] sm:$0xff] %v1677
        %1714 = vst [vmem:[#allocation2 + $0x98] sm:$0xff] %v1678
        %1715 = vst [vmem:[#allocation2 + $0xa0] sm:$0xff] %v1679
        %1716 = vst [vmem:[#allocation2 + $0xa8] sm:$0xff] %v1680
        %1717 = vst [vmem:[#allocation2 + $0xb0] sm:$0xff] %v1681
        %1718 = vst [vmem:[#allocation2 + $0xb8] sm:$0xff] %v1682
        %1719 = vst [vmem:[#allocation2 + $0xc0] sm:$0xff] %v1683
        %1720 = vst [vmem:[#allocation2 + $0xc8] sm:$0xff] %v1684
        %1721 = vst [vmem:[#allocation2 + $0xd0] sm:$0xff] %v1685
        %1722 = vst [vmem:[#allocation2 + $0xd8] sm:$0xff] %v1686
        %1723 = vst [vmem:[#allocation2 + $0xe0] sm:$0xff] %v1687
        %1724 = vst [vmem:[#allocation2 + $0xe8] sm:$0xff] %v1688
        %1725 = vst [vmem:[#allocation2 + $0xf0] sm:$0xff] %v1689
        %1726 = vst [vmem:[#allocation2 + $0xf8] sm:$0xff] %v1690
        %1727 = vst [vmem:[#allocation2 + $0x100] sm:$0xff] %v1691
        %1728 = vst [vmem:[#allocation2 + $0x108] sm:$0xff] %v1692
        %1729 = vst [vmem:[#allocation2 + $0x110] sm:$0xff] %v1693
        %1730 = vst [vmem:[#allocation2 + $0x118] sm:$0xff] %v1694
        %v1731 = vld [vmem:[%s179 + $0x13] sm:$0xff]
        %v1732 = vld [vmem:[%s179 + $0x1b] sm:$0xff]
        %v1733 = vld [vmem:[%s179 + $0x23] sm:$0xff]
        %v1734 = vld [vmem:[%s179 + $0x2b] sm:$0xff]
        %v1735 = vld [vmem:[%s179 + $0x33] sm:$0xff]
        %v1736 = vld [vmem:[%s179 + $0x3b] sm:$0xff]
        %v1737 = vld [vmem:[%s179 + $0x43] sm:$0xff]
        %v1738 = vld [vmem:[%s179 + $0x4b] sm:$0xff]
        %v1739 = vld [vmem:[%s179 + $0x53] sm:$0xff]
        %v1740 = vld [vmem:[%s179 + $0x5b] sm:$0xff]
        %v1741 = vld [vmem:[%s179 + $0x63] sm:$0xff]
        %v1742 = vld [vmem:[%s179 + $0x6b] sm:$0xff]
        %v1743 = vld [vmem:[%s179 + $0x73] sm:$0xff]
        %v1744 = vld [vmem:[%s179 + $0x7b] sm:$0xff]
        %v1745 = vld [vmem:[%s179 + $0x83] sm:$0xff]
        %v1746 = vld [vmem:[%s179 + $0x8b] sm:$0xff]
        %v1747 = vld [vmem:[%s179 + $0x93] sm:$0xff]
        %v1748 = vld [vmem:[%s179 + $0x9b] sm:$0xff]
        %v1749 = vld [vmem:[%s179 + $0xa3] sm:$0xff]
        %v1750 = vld [vmem:[%s179 + $0xab] sm:$0xff]
        %v1751 = vld [vmem:[%s179 + $0xb3] sm:$0xff]
        %v1752 = vld [vmem:[%s179 + $0xbb] sm:$0xff]
        %v1753 = vld [vmem:[%s179 + $0xc3] sm:$0xff]
        %v1754 = vld [vmem:[%s179 + $0xcb] sm:$0xff]
        %v1755 = vld [vmem:[%s179 + $0xd3] sm:$0xff]
        %v1756 = vld [vmem:[%s179 + $0xdb] sm:$0xff]
        %v1757 = vld [vmem:[%s179 + $0xe3] sm:$0xff]
        %v1758 = vld [vmem:[%s179 + $0xeb] sm:$0xff]
        %v1759 = vld [vmem:[%s179 + $0xf3] sm:$0xff]
        %v1760 = vld [vmem:[%s179 + $0xfb] sm:$0xff]
        %v1761 = vld [vmem:[%s179 + $0x103] sm:$0xff]
        %v1762 = vld [vmem:[%s179 + $0x10b] sm:$0xff]
        %v1763 = vld [vmem:[%s179 + $0x113] sm:$0xff]
        %v1764 = vld [vmem:[%s179 + $0x11b] sm:$0xff]
        %v1765 = vld [vmem:[%s179 + $0x123] sm:$0xff]
        %v1766 = vld [vmem:[%s179 + $0x12b] sm:$0xff]
        %s1767 = scalar_lea.vmem %s1, 512
        %v1768 = vld [vmem:[%s1767] sm:$0xff]
        %v1769 = vld [vmem:[%s1767 + $0x8] sm:$0xff]
        %v1770 = vld [vmem:[%s1767 + $0x10] sm:$0xff]
        %v1771 = vld [vmem:[%s1767 + $0x18] sm:$0xff]
        %v1772 = vld [vmem:[%s1767 + $0x20] sm:$0xff]
        %v1773 = vld [vmem:[%s1767 + $0x28] sm:$0xff]
        %v1774 = vld [vmem:[%s1767 + $0x30] sm:$0xff]
        %v1775 = vld [vmem:[%s1767 + $0x38] sm:$0xff]
        %v1776 = vld [vmem:[%s1767 + $0x40] sm:$0xff]
        %v1777 = vld [vmem:[%s1767 + $0x48] sm:$0xff]
        %v1778 = vld [vmem:[%s1767 + $0x50] sm:$0xff]
        %v1779 = vld [vmem:[%s1767 + $0x58] sm:$0xff]
        %v1780 = vld [vmem:[%s1767 + $0x60] sm:$0xff]
        %v1781 = vld [vmem:[%s1767 + $0x68] sm:$0xff]
        %v1782 = vld [vmem:[%s1767 + $0x70] sm:$0xff]
        %v1783 = vld [vmem:[%s1767 + $0x78] sm:$0xff]
        %1784 = vmatprep.subr.mxu0 0.0
        %1785 = vmatpush1.msra.mxu0 %v1768
        %1786 = vmatprep.subr.mxu0 0.0
        %1787 = vmatpush1.msra.mxu0 %v1769
        %1788 = vmatprep.subr.mxu0 0.0
        %1789 = vmatpush1.msra.mxu0 %v1770
        %1790 = vmatprep.subr.mxu0 0.0
        %1791 = vmatpush1.msra.mxu0 %v1771
        %1792 = vmatprep.subr.mxu0 0.0
        %1793 = vmatpush1.msra.mxu0 %v1772
        %1794 = vmatprep.subr.mxu0 0.0
        %1795 = vmatpush1.msra.mxu0 %v1773
        %1796 = vmatprep.subr.mxu0 0.0
        %1797 = vmatpush1.msra.mxu0 %v1774
        %1798 = vmatprep.subr.mxu0 0.0
        %1799 = vmatpush1.msra.mxu0 %v1775
        %1800 = vmatprep.subr.mxu0 0.0
        %1801 = vmatpush1.msra.mxu0 %v1776
        %1802 = vmatprep.subr.mxu0 0.0
        %1803 = vmatpush1.msra.mxu0 %v1777
        %1804 = vmatprep.subr.mxu0 0.0
        %1805 = vmatpush1.msra.mxu0 %v1778
        %1806 = vmatprep.subr.mxu0 0.0
        %1807 = vmatpush1.msra.mxu0 %v1779
        %1808 = vmatprep.subr.mxu0 0.0
        %1809 = vmatpush1.msra.mxu0 %v1780
        %1810 = vmatprep.subr.mxu0 0.0
        %1811 = vmatpush1.msra.mxu0 %v1781
        %1812 = vmatprep.subr.mxu0 0.0
        %1813 = vmatpush1.msra.mxu0 %v1782
        %1814 = vmatprep.subr.mxu0 0.0
        %1815 = vmatpush1.msra.mxu0 %v1783
        %1816 = vmatprep.subr.mxu0 0.0
        %1817 = vmatpush1.msra.mxu0 0.0
        %1818 = vmatprep.subr.mxu0 0.0
        %1819 = vmatpush1.msra.mxu0 0.0
        %1820 = vmatprep.subr.mxu0 0.0
        %1821 = vmatpush1.msra.mxu0 0.0
        %1822 = vmatprep.subr.mxu0 0.0
        %1823 = vmatpush1.msra.mxu0 0.0
        %1824 = vmatprep.subr.mxu0 0.0
        %1825 = vmatpush1.msra.mxu0 0.0
        %1826 = vmatprep.subr.mxu0 0.0
        %1827 = vmatpush1.msra.mxu0 0.0
        %1828 = vmatprep.subr.mxu0 0.0
        %1829 = vmatpush1.msra.mxu0 0.0
        %1830 = vmatprep.subr.mxu0 0.0
        %1831 = vmatpush1.msra.mxu0 0.0
        %1832 = vmatprep.subr.mxu0 0.0
        %1833 = vmatpush1.msra.mxu0 0.0
        %1834 = vmatprep.subr.mxu0 0.0
        %1835 = vmatpush1.msra.mxu0 0.0
        %1836 = vmatprep.subr.mxu0 0.0
        %1837 = vmatpush1.msra.mxu0 0.0
        %1838 = vmatprep.subr.mxu0 0.0
        %1839 = vmatpush1.msra.mxu0 0.0
        %1840 = vmatprep.subr.mxu0 0.0
        %1841 = vmatpush1.msra.mxu0 0.0
        %1842 = vmatprep.subr.mxu0 0.0
        %1843 = vmatpush1.msra.mxu0 0.0
        %1844 = vmatprep.subr.mxu0 0.0
        %1845 = vmatpush1.msra.mxu0 0.0
        %1846 = vmatprep.subr.mxu0 0.0
        %1847 = vmatpush1.msra.mxu0 0.0
        %1848 = vmatprep.mubr.f32.mxu0 0.0
        %1849 = vmatmul.mubr.f32.gmra.mrb[0].mxu0 %v1731
        %v1850 = vpop.f32.mrb[0].mxu0
        %v1851 = vadd.f32 0.0, %v1850
        %v1852 = vpop.f32.mrb[0].mxu0
        %1853 = vmatprep.mubr.f32.mxu0 0.0
        %1854 = vmatmul.mubr.f32.gmra.mrb[0].mxu0 %v1732
        %v1855 = vpop.f32.mrb[0].mxu0
        %v1856 = vadd.f32 0.0, %v1855
        %v1857 = vpop.f32.mrb[0].mxu0
        %1858 = vmatprep.mubr.f32.mxu0 0.0
        %1859 = vmatmul.mubr.f32.gmra.mrb[0].mxu0 %v1733
        %v1860 = vpop.f32.mrb[0].mxu0
        %v1861 = vadd.f32 0.0, %v1860
        %v1862 = vpop.f32.mrb[0].mxu0
        %1863 = vmatprep.mubr.f32.mxu0 0.0
        %1864 = vmatmul.mubr.f32.gmra.mrb[0].mxu0 %v1734
        %v1865 = vpop.f32.mrb[0].mxu0
        %v1866 = vadd.f32 0.0, %v1865
        %v1867 = vpop.f32.mrb[0].mxu0
        %1868 = vmatprep.mubr.f32.mxu0 0.0
        %1869 = vmatmul.mubr.f32.gmra.mrb[0].mxu0 %v1735
        %v1870 = vpop.f32.mrb[0].mxu0
        %v1871 = vadd.f32 0.0, %v1870
        %v1872 = vpop.f32.mrb[0].mxu0
        %1873 = vmatprep.mubr.f32.mxu0 0.0
        %1874 = vmatmul.mubr.f32.gmra.mrb[0].mxu0 %v1736
        %v1875 = vpop.f32.mrb[0].mxu0
        %v1876 = vadd.f32 0.0, %v1875
        %v1877 = vpop.f32.mrb[0].mxu0
        %1878 = vmatprep.mubr.f32.mxu0 0.0
        %1879 = vmatmul.mubr.f32.gmra.mrb[0].mxu0 %v1737
        %v1880 = vpop.f32.mrb[0].mxu0
        %v1881 = vadd.f32 0.0, %v1880
        %v1882 = vpop.f32.mrb[0].mxu0
        %1883 = vmatprep.mubr.f32.mxu0 0.0
        %1884 = vmatmul.mubr.f32.gmra.mrb[0].mxu0 %v1738
        %v1885 = vpop.f32.mrb[0].mxu0
        %v1886 = vadd.f32 0.0, %v1885
        %v1887 = vpop.f32.mrb[0].mxu0
        %1888 = vmatprep.mubr.f32.mxu0 0.0
        %1889 = vmatmul.mubr.f32.gmra.mrb[0].mxu0 %v1739
        %v1890 = vpop.f32.mrb[0].mxu0
        %v1891 = vadd.f32 0.0, %v1890
        %v1892 = vpop.f32.mrb[0].mxu0
        %1893 = vmatprep.mubr.f32.mxu0 0.0
        %1894 = vmatmul.mubr.f32.gmra.mrb[0].mxu0 %v1740
        %v1895 = vpop.f32.mrb[0].mxu0
        %v1896 = vadd.f32 0.0, %v1895
        %v1897 = vpop.f32.mrb[0].mxu0
        %1898 = vmatprep.mubr.f32.mxu0 0.0
        %1899 = vmatmul.mubr.f32.gmra.mrb[0].mxu0 %v1741
        %v1900 = vpop.f32.mrb[0].mxu0
        %v1901 = vadd.f32 0.0, %v1900
        %v1902 = vpop.f32.mrb[0].mxu0
        %1903 = vmatprep.mubr.f32.mxu0 0.0
        %1904 = vmatmul.mubr.f32.gmra.mrb[0].mxu0 %v1742
        %v1905 = vpop.f32.mrb[0].mxu0
        %v1906 = vadd.f32 0.0, %v1905
        %v1907 = vpop.f32.mrb[0].mxu0
        %1908 = vmatprep.mubr.f32.mxu0 0.0
        %1909 = vmatmul.mubr.f32.gmra.mrb[0].mxu0 %v1743
        %v1910 = vpop.f32.mrb[0].mxu0
        %v1911 = vadd.f32 0.0, %v1910
        %v1912 = vpop.f32.mrb[0].mxu0
        %1913 = vmatprep.mubr.f32.mxu0 0.0
        %1914 = vmatmul.mubr.f32.gmra.mrb[0].mxu0 %v1744
        %v1915 = vpop.f32.mrb[0].mxu0
        %v1916 = vadd.f32 0.0, %v1915
        %v1917 = vpop.f32.mrb[0].mxu0
        %1918 = vmatprep.mubr.f32.mxu0 0.0
        %1919 = vmatmul.mubr.f32.gmra.mrb[0].mxu0 %v1745
        %v1920 = vpop.f32.mrb[0].mxu0
        %v1921 = vadd.f32 0.0, %v1920
        %v1922 = vpop.f32.mrb[0].mxu0
        %1923 = vmatprep.mubr.f32.mxu0 0.0
        %1924 = vmatmul.mubr.f32.gmra.mrb[0].mxu0 %v1746
        %v1925 = vpop.f32.mrb[0].mxu0
        %v1926 = vadd.f32 0.0, %v1925
        %v1927 = vpop.f32.mrb[0].mxu0
        %1928 = vmatprep.mubr.f32.mxu0 0.0
        %1929 = vmatmul.mubr.f32.gmra.mrb[0].mxu0 %v1747
        %v1930 = vpop.f32.mrb[0].mxu0
        %v1931 = vadd.f32 0.0, %v1930
        %v1932 = vpop.f32.mrb[0].mxu0
        %1933 = vmatprep.mubr.f32.mxu0 0.0
        %1934 = vmatmul.mubr.f32.gmra.mrb[0].mxu0 %v1748
        %v1935 = vpop.f32.mrb[0].mxu0
        %v1936 = vadd.f32 0.0, %v1935
        %v1937 = vpop.f32.mrb[0].mxu0
        %1938 = vmatprep.mubr.f32.mxu0 0.0
        %1939 = vmatmul.mubr.f32.gmra.mrb[0].mxu0 %v1749
        %v1940 = vpop.f32.mrb[0].mxu0
        %v1941 = vadd.f32 0.0, %v1940
        %v1942 = vpop.f32.mrb[0].mxu0
        %1943 = vmatprep.mubr.f32.mxu0 0.0
        %1944 = vmatmul.mubr.f32.gmra.mrb[0].mxu0 %v1750
        %v1945 = vpop.f32.mrb[0].mxu0
        %v1946 = vadd.f32 0.0, %v1945
        %v1947 = vpop.f32.mrb[0].mxu0
        %1948 = vmatprep.mubr.f32.mxu0 0.0
        %1949 = vmatmul.mubr.f32.gmra.mrb[0].mxu0 %v1751
        %v1950 = vpop.f32.mrb[0].mxu0
        %v1951 = vadd.f32 0.0, %v1950
        %v1952 = vpop.f32.mrb[0].mxu0
        %1953 = vmatprep.mubr.f32.mxu0 0.0
        %1954 = vmatmul.mubr.f32.gmra.mrb[0].mxu0 %v1752
        %v1955 = vpop.f32.mrb[0].mxu0
        %v1956 = vadd.f32 0.0, %v1955
        %v1957 = vpop.f32.mrb[0].mxu0
        %1958 = vmatprep.mubr.f32.mxu0 0.0
        %1959 = vmatmul.mubr.f32.gmra.mrb[0].mxu0 %v1753
        %v1960 = vpop.f32.mrb[0].mxu0
        %v1961 = vadd.f32 0.0, %v1960
        %v1962 = vpop.f32.mrb[0].mxu0
        %1963 = vmatprep.mubr.f32.mxu0 0.0
        %1964 = vmatmul.mubr.f32.gmra.mrb[0].mxu0 %v1754
        %v1965 = vpop.f32.mrb[0].mxu0
        %v1966 = vadd.f32 0.0, %v1965
        %v1967 = vpop.f32.mrb[0].mxu0
        %1968 = vmatprep.mubr.f32.mxu0 0.0
        %1969 = vmatmul.mubr.f32.gmra.mrb[0].mxu0 %v1755
        %v1970 = vpop.f32.mrb[0].mxu0
        %v1971 = vadd.f32 0.0, %v1970
        %v1972 = vpop.f32.mrb[0].mxu0
        %1973 = vmatprep.mubr.f32.mxu0 0.0
        %1974 = vmatmul.mubr.f32.gmra.mrb[0].mxu0 %v1756
        %v1975 = vpop.f32.mrb[0].mxu0
        %v1976 = vadd.f32 0.0, %v1975
        %v1977 = vpop.f32.mrb[0].mxu0
        %1978 = vmatprep.mubr.f32.mxu0 0.0
        %1979 = vmatmul.mubr.f32.gmra.mrb[0].mxu0 %v1757
        %v1980 = vpop.f32.mrb[0].mxu0
        %v1981 = vadd.f32 0.0, %v1980
        %v1982 = vpop.f32.mrb[0].mxu0
        %1983 = vmatprep.mubr.f32.mxu0 0.0
        %1984 = vmatmul.mubr.f32.gmra.mrb[0].mxu0 %v1758
        %v1985 = vpop.f32.mrb[0].mxu0
        %v1986 = vadd.f32 0.0, %v1985
        %v1987 = vpop.f32.mrb[0].mxu0
        %1988 = vmatprep.mubr.f32.mxu0 0.0
        %1989 = vmatmul.mubr.f32.gmra.mrb[0].mxu0 %v1759
        %v1990 = vpop.f32.mrb[0].mxu0
        %v1991 = vadd.f32 0.0, %v1990
        %v1992 = vpop.f32.mrb[0].mxu0
        %1993 = vmatprep.mubr.f32.mxu0 0.0
        %1994 = vmatmul.mubr.f32.gmra.mrb[0].mxu0 %v1760
        %v1995 = vpop.f32.mrb[0].mxu0
        %v1996 = vadd.f32 0.0, %v1995
        %v1997 = vpop.f32.mrb[0].mxu0
        %1998 = vmatprep.mubr.f32.mxu0 0.0
        %1999 = vmatmul.mubr.f32.gmra.mrb[0].mxu0 %v1761
        %v2000 = vpop.f32.mrb[0].mxu0
        %v2001 = vadd.f32 0.0, %v2000
        %v2002 = vpop.f32.mrb[0].mxu0
        %2003 = vmatprep.mubr.f32.mxu0 0.0
        %2004 = vmatmul.mubr.f32.gmra.mrb[0].mxu0 %v1762
        %v2005 = vpop.f32.mrb[0].mxu0
        %v2006 = vadd.f32 0.0, %v2005
        %v2007 = vpop.f32.mrb[0].mxu0
        %2008 = vmatprep.mubr.f32.mxu0 0.0
        %2009 = vmatmul.mubr.f32.gmra.mrb[0].mxu0 %v1763
        %v2010 = vpop.f32.mrb[0].mxu0
        %v2011 = vadd.f32 0.0, %v2010
        %v2012 = vpop.f32.mrb[0].mxu0
        %2013 = vmatprep.mubr.f32.mxu0 0.0
        %2014 = vmatmul.mubr.f32.gmra.mrb[0].mxu0 %v1764
        %v2015 = vpop.f32.mrb[0].mxu0
        %v2016 = vadd.f32 0.0, %v2015
        %v2017 = vpop.f32.mrb[0].mxu0
        %2018 = vmatprep.mubr.f32.mxu0 0.0
        %2019 = vmatmul.mubr.f32.gmra.mrb[0].mxu0 %v1765
        %v2020 = vpop.f32.mrb[0].mxu0
        %v2021 = vadd.f32 0.0, %v2020
        %v2022 = vpop.f32.mrb[0].mxu0
        %2023 = vmatprep.mubr.f32.mxu0 0.0
        %2024 = vmatmul.mubr.f32.gmra.mrb[0].mxu0 %v1766
        %v2025 = vpop.f32.mrb[0].mxu0
        %v2026 = vadd.f32 0.0, %v2025
        %v2027 = vpop.f32.mrb[0].mxu0
        %2028 = vdwg.mxu0
        %v2029 = vld [vmem:[#allocation2] sm:$0xff]
        %v2030 = vld [vmem:[#allocation2 + $0x8] sm:$0xff]
        %v2031 = vld [vmem:[#allocation2 + $0x10] sm:$0xff]
        %v2032 = vld [vmem:[#allocation2 + $0x18] sm:$0xff]
        %v2033 = vld [vmem:[#allocation2 + $0x20] sm:$0xff]
        %v2034 = vld [vmem:[#allocation2 + $0x28] sm:$0xff]
        %v2035 = vld [vmem:[#allocation2 + $0x30] sm:$0xff]
        %v2036 = vld [vmem:[#allocation2 + $0x38] sm:$0xff]
        %v2037 = vld [vmem:[#allocation2 + $0x40] sm:$0xff]
        %v2038 = vld [vmem:[#allocation2 + $0x48] sm:$0xff]
        %v2039 = vld [vmem:[#allocation2 + $0x50] sm:$0xff]
        %v2040 = vld [vmem:[#allocation2 + $0x58] sm:$0xff]
        %v2041 = vld [vmem:[#allocation2 + $0x60] sm:$0xff]
        %v2042 = vld [vmem:[#allocation2 + $0x68] sm:$0xff]
        %v2043 = vld [vmem:[#allocation2 + $0x70] sm:$0xff]
        %v2044 = vld [vmem:[#allocation2 + $0x78] sm:$0xff]
        %v2045 = vld [vmem:[#allocation2 + $0x80] sm:$0xff]
        %v2046 = vld [vmem:[#allocation2 + $0x88] sm:$0xff]
        %v2047 = vld [vmem:[#allocation2 + $0x90] sm:$0xff]
        %v2048 = vld [vmem:[#allocation2 + $0x98] sm:$0xff]
        %v2049 = vld [vmem:[#allocation2 + $0xa0] sm:$0xff]
        %v2050 = vld [vmem:[#allocation2 + $0xa8] sm:$0xff]
        %v2051 = vld [vmem:[#allocation2 + $0xb0] sm:$0xff]
        %v2052 = vld [vmem:[#allocation2 + $0xb8] sm:$0xff]
        %v2053 = vld [vmem:[#allocation2 + $0xc0] sm:$0xff]
        %v2054 = vld [vmem:[#allocation2 + $0xc8] sm:$0xff]
        %v2055 = vld [vmem:[#allocation2 + $0xd0] sm:$0xff]
        %v2056 = vld [vmem:[#allocation2 + $0xd8] sm:$0xff]
        %v2057 = vld [vmem:[#allocation2 + $0xe0] sm:$0xff]
        %v2058 = vld [vmem:[#allocation2 + $0xe8] sm:$0xff]
        %v2059 = vld [vmem:[#allocation2 + $0xf0] sm:$0xff]
        %v2060 = vld [vmem:[#allocation2 + $0xf8] sm:$0xff]
        %v2061 = vld [vmem:[#allocation2 + $0x100] sm:$0xff]
        %v2062 = vld [vmem:[#allocation2 + $0x108] sm:$0xff]
        %v2063 = vld [vmem:[#allocation2 + $0x110] sm:$0xff]
        %v2064 = vld [vmem:[#allocation2 + $0x118] sm:$0xff]
        %v2065 = vadd.f32 %v2029, %v1851
        %v2066 = vadd.f32 %v2030, %v1856
        %v2067 = vadd.f32 %v2031, %v1861
        %v2068 = vadd.f32 %v2032, %v1866
        %v2069 = vadd.f32 %v2033, %v1871
        %v2070 = vadd.f32 %v2034, %v1876
        %v2071 = vadd.f32 %v2035, %v1881
        %v2072 = vadd.f32 %v2036, %v1886
        %v2073 = vadd.f32 %v2037, %v1891
        %v2074 = vadd.f32 %v2038, %v1896
        %v2075 = vadd.f32 %v2039, %v1901
        %v2076 = vadd.f32 %v2040, %v1906
        %v2077 = vadd.f32 %v2041, %v1911
        %v2078 = vadd.f32 %v2042, %v1916
        %v2079 = vadd.f32 %v2043, %v1921
        %v2080 = vadd.f32 %v2044, %v1926
        %v2081 = vadd.f32 %v2045, %v1931
        %v2082 = vadd.f32 %v2046, %v1936
        %v2083 = vadd.f32 %v2047, %v1941
        %v2084 = vadd.f32 %v2048, %v1946
        %v2085 = vadd.f32 %v2049, %v1951
        %v2086 = vadd.f32 %v2050, %v1956
        %v2087 = vadd.f32 %v2051, %v1961
        %v2088 = vadd.f32 %v2052, %v1966
        %v2089 = vadd.f32 %v2053, %v1971
        %v2090 = vadd.f32 %v2054, %v1976
        %v2091 = vadd.f32 %v2055, %v1981
        %v2092 = vadd.f32 %v2056, %v1986
        %v2093 = vadd.f32 %v2057, %v1991
        %v2094 = vadd.f32 %v2058, %v1996
        %v2095 = vadd.f32 %v2059, %v2001
        %v2096 = vadd.f32 %v2060, %v2006
        %v2097 = vadd.f32 %v2061, %v2011
        %v2098 = vadd.f32 %v2062, %v2016
        %v2099 = vadd.f32 %v2063, %v2021
        %v2100 = vadd.f32 %v2064, %v2026
        %2101 = vst [vmem:[#allocation2] sm:$0xff] %v2065
        %2102 = vst [vmem:[#allocation2 + $0x8] sm:$0xff] %v2066
        %2103 = vst [vmem:[#allocation2 + $0x10] sm:$0xff] %v2067
        %2104 = vst [vmem:[#allocation2 + $0x18] sm:$0xff] %v2068
        %2105 = vst [vmem:[#allocation2 + $0x20] sm:$0xff] %v2069
        %2106 = vst [vmem:[#allocation2 + $0x28] sm:$0xff] %v2070
        %2107 = vst [vmem:[#allocation2 + $0x30] sm:$0xff] %v2071
        %2108 = vst [vmem:[#allocation2 + $0x38] sm:$0xff] %v2072
        %2109 = vst [vmem:[#allocation2 + $0x40] sm:$0xff] %v2073
        %2110 = vst [vmem:[#allocation2 + $0x48] sm:$0xff] %v2074
        %2111 = vst [vmem:[#allocation2 + $0x50] sm:$0xff] %v2075
        %2112 = vst [vmem:[#allocation2 + $0x58] sm:$0xff] %v2076
        %2113 = vst [vmem:[#allocation2 + $0x60] sm:$0xff] %v2077
        %2114 = vst [vmem:[#allocation2 + $0x68] sm:$0xff] %v2078
        %2115 = vst [vmem:[#allocation2 + $0x70] sm:$0xff] %v2079
        %2116 = vst [vmem:[#allocation2 + $0x78] sm:$0xff] %v2080
        %2117 = vst [vmem:[#allocation2 + $0x80] sm:$0xff] %v2081
        %2118 = vst [vmem:[#allocation2 + $0x88] sm:$0xff] %v2082
        %2119 = vst [vmem:[#allocation2 + $0x90] sm:$0xff] %v2083
        %2120 = vst [vmem:[#allocation2 + $0x98] sm:$0xff] %v2084
        %2121 = vst [vmem:[#allocation2 + $0xa0] sm:$0xff] %v2085
        %2122 = vst [vmem:[#allocation2 + $0xa8] sm:$0xff] %v2086
        %2123 = vst [vmem:[#allocation2 + $0xb0] sm:$0xff] %v2087
        %2124 = vst [vmem:[#allocation2 + $0xb8] sm:$0xff] %v2088
        %2125 = vst [vmem:[#allocation2 + $0xc0] sm:$0xff] %v2089
        %2126 = vst [vmem:[#allocation2 + $0xc8] sm:$0xff] %v2090
        %2127 = vst [vmem:[#allocation2 + $0xd0] sm:$0xff] %v2091
        %2128 = vst [vmem:[#allocation2 + $0xd8] sm:$0xff] %v2092
        %2129 = vst [vmem:[#allocation2 + $0xe0] sm:$0xff] %v2093
        %2130 = vst [vmem:[#allocation2 + $0xe8] sm:$0xff] %v2094
        %2131 = vst [vmem:[#allocation2 + $0xf0] sm:$0xff] %v2095
        %2132 = vst [vmem:[#allocation2 + $0xf8] sm:$0xff] %v2096
        %2133 = vst [vmem:[#allocation2 + $0x100] sm:$0xff] %v2097
        %2134 = vst [vmem:[#allocation2 + $0x108] sm:$0xff] %v2098
        %2135 = vst [vmem:[#allocation2 + $0x110] sm:$0xff] %v2099
        %2136 = vst [vmem:[#allocation2 + $0x118] sm:$0xff] %v2100
        %v2137 = vld [vmem:[%s179 + $0x14] sm:$0xff]
        %v2138 = vld [vmem:[%s179 + $0x1c] sm:$0xff]
        %v2139 = vld [vmem:[%s179 + $0x24] sm:$0xff]
        %v2140 = vld [vmem:[%s179 + $0x2c] sm:$0xff]
        %v2141 = vld [vmem:[%s179 + $0x34] sm:$0xff]
        %v2142 = vld [vmem:[%s179 + $0x3c] sm:$0xff]
        %v2143 = vld [vmem:[%s179 + $0x44] sm:$0xff]
        %v2144 = vld [vmem:[%s179 + $0x4c] sm:$0xff]
        %v2145 = vld [vmem:[%s179 + $0x54] sm:$0xff]
        %v2146 = vld [vmem:[%s179 + $0x5c] sm:$0xff]
        %v2147 = vld [vmem:[%s179 + $0x64] sm:$0xff]
        %v2148 = vld [vmem:[%s179 + $0x6c] sm:$0xff]
        %v2149 = vld [vmem:[%s179 + $0x74] sm:$0xff]
        %v2150 = vld [vmem:[%s179 + $0x7c] sm:$0xff]
        %v2151 = vld [vmem:[%s179 + $0x84] sm:$0xff]
        %v2152 = vld [vmem:[%s179 + $0x8c] sm:$0xff]
        %v2153 = vld [vmem:[%s179 + $0x94] sm:$0xff]
        %v2154 = vld [vmem:[%s179 + $0x9c] sm:$0xff]
        %v2155 = vld [vmem:[%s179 + $0xa4] sm:$0xff]
        %v2156 = vld [vmem:[%s179 + $0xac] sm:$0xff]
        %v2157 = vld [vmem:[%s179 + $0xb4] sm:$0xff]
        %v2158 = vld [vmem:[%s179 + $0xbc] sm:$0xff]
        %v2159 = vld [vmem:[%s179 + $0xc4] sm:$0xff]
        %v2160 = vld [vmem:[%s179 + $0xcc] sm:$0xff]
        %v2161 = vld [vmem:[%s179 + $0xd4] sm:$0xff]
        %v2162 = vld [vmem:[%s179 + $0xdc] sm:$0xff]
        %v2163 = vld [vmem:[%s179 + $0xe4] sm:$0xff]
        %v2164 = vld [vmem:[%s179 + $0xec] sm:$0xff]
        %v2165 = vld [vmem:[%s179 + $0xf4] sm:$0xff]
        %v2166 = vld [vmem:[%s179 + $0xfc] sm:$0xff]
        %v2167 = vld [vmem:[%s179 + $0x104] sm:$0xff]
        %v2168 = vld [vmem:[%s179 + $0x10c] sm:$0xff]
        %v2169 = vld [vmem:[%s179 + $0x114] sm:$0xff]
        %v2170 = vld [vmem:[%s179 + $0x11c] sm:$0xff]
        %v2171 = vld [vmem:[%s179 + $0x124] sm:$0xff]
        %v2172 = vld [vmem:[%s179 + $0x12c] sm:$0xff]
        %s2173 = scalar_lea.vmem %s1, 640
        %v2174 = vld [vmem:[%s2173] sm:$0xff]
        %v2175 = vld [vmem:[%s2173 + $0x8] sm:$0xff]
        %v2176 = vld [vmem:[%s2173 + $0x10] sm:$0xff]
        %v2177 = vld [vmem:[%s2173 + $0x18] sm:$0xff]
        %v2178 = vld [vmem:[%s2173 + $0x20] sm:$0xff]
        %v2179 = vld [vmem:[%s2173 + $0x28] sm:$0xff]
        %v2180 = vld [vmem:[%s2173 + $0x30] sm:$0xff]
        %v2181 = vld [vmem:[%s2173 + $0x38] sm:$0xff]
        %v2182 = vld [vmem:[%s2173 + $0x40] sm:$0xff]
        %v2183 = vld [vmem:[%s2173 + $0x48] sm:$0xff]
        %v2184 = vld [vmem:[%s2173 + $0x50] sm:$0xff]
        %v2185 = vld [vmem:[%s2173 + $0x58] sm:$0xff]
        %v2186 = vld [vmem:[%s2173 + $0x60] sm:$0xff]
        %v2187 = vld [vmem:[%s2173 + $0x68] sm:$0xff]
        %v2188 = vld [vmem:[%s2173 + $0x70] sm:$0xff]
        %v2189 = vld [vmem:[%s2173 + $0x78] sm:$0xff]
        %2190 = vmatprep.subr.mxu0 0.0
        %2191 = vmatpush1.msra.mxu0 %v2174
        %2192 = vmatprep.subr.mxu0 0.0
        %2193 = vmatpush1.msra.mxu0 %v2175
        %2194 = vmatprep.subr.mxu0 0.0
        %2195 = vmatpush1.msra.mxu0 %v2176
        %2196 = vmatprep.subr.mxu0 0.0
        %2197 = vmatpush1.msra.mxu0 %v2177
        %2198 = vmatprep.subr.mxu0 0.0
        %2199 = vmatpush1.msra.mxu0 %v2178
        %2200 = vmatprep.subr.mxu0 0.0
        %2201 = vmatpush1.msra.mxu0 %v2179
        %2202 = vmatprep.subr.mxu0 0.0
        %2203 = vmatpush1.msra.mxu0 %v2180
        %2204 = vmatprep.subr.mxu0 0.0
        %2205 = vmatpush1.msra.mxu0 %v2181
        %2206 = vmatprep.subr.mxu0 0.0
        %2207 = vmatpush1.msra.mxu0 %v2182
        %2208 = vmatprep.subr.mxu0 0.0
        %2209 = vmatpush1.msra.mxu0 %v2183
        %2210 = vmatprep.subr.mxu0 0.0
        %2211 = vmatpush1.msra.mxu0 %v2184
        %2212 = vmatprep.subr.mxu0 0.0
        %2213 = vmatpush1.msra.mxu0 %v2185
        %2214 = vmatprep.subr.mxu0 0.0
        %2215 = vmatpush1.msra.mxu0 %v2186
        %2216 = vmatprep.subr.mxu0 0.0
        %2217 = vmatpush1.msra.mxu0 %v2187
        %2218 = vmatprep.subr.mxu0 0.0
        %2219 = vmatpush1.msra.mxu0 %v2188
        %2220 = vmatprep.subr.mxu0 0.0
        %2221 = vmatpush1.msra.mxu0 %v2189
        %2222 = vmatprep.subr.mxu0 0.0
        %2223 = vmatpush1.msra.mxu0 0.0
        %2224 = vmatprep.subr.mxu0 0.0
        %2225 = vmatpush1.msra.mxu0 0.0
        %2226 = vmatprep.subr.mxu0 0.0
        %2227 = vmatpush1.msra.mxu0 0.0
        %2228 = vmatprep.subr.mxu0 0.0
        %2229 = vmatpush1.msra.mxu0 0.0
        %2230 = vmatprep.subr.mxu0 0.0
        %2231 = vmatpush1.msra.mxu0 0.0
        %2232 = vmatprep.subr.mxu0 0.0
        %2233 = vmatpush1.msra.mxu0 0.0
        %2234 = vmatprep.subr.mxu0 0.0
        %2235 = vmatpush1.msra.mxu0 0.0
        %2236 = vmatprep.subr.mxu0 0.0
        %2237 = vmatpush1.msra.mxu0 0.0
        %2238 = vmatprep.subr.mxu0 0.0
        %2239 = vmatpush1.msra.mxu0 0.0
        %2240 = vmatprep.subr.mxu0 0.0
        %2241 = vmatpush1.msra.mxu0 0.0
        %2242 = vmatprep.subr.mxu0 0.0
        %2243 = vmatpush1.msra.mxu0 0.0
        %2244 = vmatprep.subr.mxu0 0.0
        %2245 = vmatpush1.msra.mxu0 0.0
        %2246 = vmatprep.subr.mxu0 0.0
        %2247 = vmatpush1.msra.mxu0 0.0
        %2248 = vmatprep.subr.mxu0 0.0
        %2249 = vmatpush1.msra.mxu0 0.0
        %2250 = vmatprep.subr.mxu0 0.0
        %2251 = vmatpush1.msra.mxu0 0.0
        %2252 = vmatprep.subr.mxu0 0.0
        %2253 = vmatpush1.msra.mxu0 0.0
        %2254 = vmatprep.mubr.f32.mxu0 0.0
        %2255 = vmatmul.mubr.f32.gmra.mrb[0].mxu0 %v2137
        %v2256 = vpop.f32.mrb[0].mxu0
        %v2257 = vadd.f32 0.0, %v2256
        %v2258 = vpop.f32.mrb[0].mxu0
        %2259 = vmatprep.mubr.f32.mxu0 0.0
        %2260 = vmatmul.mubr.f32.gmra.mrb[0].mxu0 %v2138
        %v2261 = vpop.f32.mrb[0].mxu0
        %v2262 = vadd.f32 0.0, %v2261
        %v2263 = vpop.f32.mrb[0].mxu0
        %2264 = vmatprep.mubr.f32.mxu0 0.0
        %2265 = vmatmul.mubr.f32.gmra.mrb[0].mxu0 %v2139
        %v2266 = vpop.f32.mrb[0].mxu0
        %v2267 = vadd.f32 0.0, %v2266
        %v2268 = vpop.f32.mrb[0].mxu0
        %2269 = vmatprep.mubr.f32.mxu0 0.0
        %2270 = vmatmul.mubr.f32.gmra.mrb[0].mxu0 %v2140
        %v2271 = vpop.f32.mrb[0].mxu0
        %v2272 = vadd.f32 0.0, %v2271
        %v2273 = vpop.f32.mrb[0].mxu0
        %2274 = vmatprep.mubr.f32.mxu0 0.0
        %2275 = vmatmul.mubr.f32.gmra.mrb[0].mxu0 %v2141
        %v2276 = vpop.f32.mrb[0].mxu0
        %v2277 = vadd.f32 0.0, %v2276
        %v2278 = vpop.f32.mrb[0].mxu0
        %2279 = vmatprep.mubr.f32.mxu0 0.0
        %2280 = vmatmul.mubr.f32.gmra.mrb[0].mxu0 %v2142
        %v2281 = vpop.f32.mrb[0].mxu0
        %v2282 = vadd.f32 0.0, %v2281
        %v2283 = vpop.f32.mrb[0].mxu0
        %2284 = vmatprep.mubr.f32.mxu0 0.0
        %2285 = vmatmul.mubr.f32.gmra.mrb[0].mxu0 %v2143
        %v2286 = vpop.f32.mrb[0].mxu0
        %v2287 = vadd.f32 0.0, %v2286
        %v2288 = vpop.f32.mrb[0].mxu0
        %2289 = vmatprep.mubr.f32.mxu0 0.0
        %2290 = vmatmul.mubr.f32.gmra.mrb[0].mxu0 %v2144
        %v2291 = vpop.f32.mrb[0].mxu0
        %v2292 = vadd.f32 0.0, %v2291
        %v2293 = vpop.f32.mrb[0].mxu0
        %2294 = vmatprep.mubr.f32.mxu0 0.0
        %2295 = vmatmul.mubr.f32.gmra.mrb[0].mxu0 %v2145
        %v2296 = vpop.f32.mrb[0].mxu0
        %v2297 = vadd.f32 0.0, %v2296
        %v2298 = vpop.f32.mrb[0].mxu0
        %2299 = vmatprep.mubr.f32.mxu0 0.0
        %2300 = vmatmul.mubr.f32.gmra.mrb[0].mxu0 %v2146
        %v2301 = vpop.f32.mrb[0].mxu0
        %v2302 = vadd.f32 0.0, %v2301
        %v2303 = vpop.f32.mrb[0].mxu0
        %2304 = vmatprep.mubr.f32.mxu0 0.0
        %2305 = vmatmul.mubr.f32.gmra.mrb[0].mxu0 %v2147
        %v2306 = vpop.f32.mrb[0].mxu0
        %v2307 = vadd.f32 0.0, %v2306
        %v2308 = vpop.f32.mrb[0].mxu0
        %2309 = vmatprep.mubr.f32.mxu0 0.0
        %2310 = vmatmul.mubr.f32.gmra.mrb[0].mxu0 %v2148
        %v2311 = vpop.f32.mrb[0].mxu0
        %v2312 = vadd.f32 0.0, %v2311
        %v2313 = vpop.f32.mrb[0].mxu0
        %2314 = vmatprep.mubr.f32.mxu0 0.0
        %2315 = vmatmul.mubr.f32.gmra.mrb[0].mxu0 %v2149
        %v2316 = vpop.f32.mrb[0].mxu0
        %v2317 = vadd.f32 0.0, %v2316
        %v2318 = vpop.f32.mrb[0].mxu0
        %2319 = vmatprep.mubr.f32.mxu0 0.0
        %2320 = vmatmul.mubr.f32.gmra.mrb[0].mxu0 %v2150
        %v2321 = vpop.f32.mrb[0].mxu0
        %v2322 = vadd.f32 0.0, %v2321
        %v2323 = vpop.f32.mrb[0].mxu0
        %2324 = vmatprep.mubr.f32.mxu0 0.0
        %2325 = vmatmul.mubr.f32.gmra.mrb[0].mxu0 %v2151
        %v2326 = vpop.f32.mrb[0].mxu0
        %v2327 = vadd.f32 0.0, %v2326
        %v2328 = vpop.f32.mrb[0].mxu0
        %2329 = vmatprep.mubr.f32.mxu0 0.0
        %2330 = vmatmul.mubr.f32.gmra.mrb[0].mxu0 %v2152
        %v2331 = vpop.f32.mrb[0].mxu0
        %v2332 = vadd.f32 0.0, %v2331
        %v2333 = vpop.f32.mrb[0].mxu0
        %2334 = vmatprep.mubr.f32.mxu0 0.0
        %2335 = vmatmul.mubr.f32.gmra.mrb[0].mxu0 %v2153
        %v2336 = vpop.f32.mrb[0].mxu0
        %v2337 = vadd.f32 0.0, %v2336
        %v2338 = vpop.f32.mrb[0].mxu0
        %2339 = vmatprep.mubr.f32.mxu0 0.0
        %2340 = vmatmul.mubr.f32.gmra.mrb[0].mxu0 %v2154
        %v2341 = vpop.f32.mrb[0].mxu0
        %v2342 = vadd.f32 0.0, %v2341
        %v2343 = vpop.f32.mrb[0].mxu0
        %2344 = vmatprep.mubr.f32.mxu0 0.0
        %2345 = vmatmul.mubr.f32.gmra.mrb[0].mxu0 %v2155
        %v2346 = vpop.f32.mrb[0].mxu0
        %v2347 = vadd.f32 0.0, %v2346
        %v2348 = vpop.f32.mrb[0].mxu0
        %2349 = vmatprep.mubr.f32.mxu0 0.0
        %2350 = vmatmul.mubr.f32.gmra.mrb[0].mxu0 %v2156
        %v2351 = vpop.f32.mrb[0].mxu0
        %v2352 = vadd.f32 0.0, %v2351
        %v2353 = vpop.f32.mrb[0].mxu0
        %2354 = vmatprep.mubr.f32.mxu0 0.0
        %2355 = vmatmul.mubr.f32.gmra.mrb[0].mxu0 %v2157
        %v2356 = vpop.f32.mrb[0].mxu0
        %v2357 = vadd.f32 0.0, %v2356
        %v2358 = vpop.f32.mrb[0].mxu0
        %2359 = vmatprep.mubr.f32.mxu0 0.0
        %2360 = vmatmul.mubr.f32.gmra.mrb[0].mxu0 %v2158
        %v2361 = vpop.f32.mrb[0].mxu0
        %v2362 = vadd.f32 0.0, %v2361
        %v2363 = vpop.f32.mrb[0].mxu0
        %2364 = vmatprep.mubr.f32.mxu0 0.0
        %2365 = vmatmul.mubr.f32.gmra.mrb[0].mxu0 %v2159
        %v2366 = vpop.f32.mrb[0].mxu0
        %v2367 = vadd.f32 0.0, %v2366
        %v2368 = vpop.f32.mrb[0].mxu0
        %2369 = vmatprep.mubr.f32.mxu0 0.0
        %2370 = vmatmul.mubr.f32.gmra.mrb[0].mxu0 %v2160
        %v2371 = vpop.f32.mrb[0].mxu0
        %v2372 = vadd.f32 0.0, %v2371
        %v2373 = vpop.f32.mrb[0].mxu0
        %2374 = vmatprep.mubr.f32.mxu0 0.0
        %2375 = vmatmul.mubr.f32.gmra.mrb[0].mxu0 %v2161
        %v2376 = vpop.f32.mrb[0].mxu0
        %v2377 = vadd.f32 0.0, %v2376
        %v2378 = vpop.f32.mrb[0].mxu0
        %2379 = vmatprep.mubr.f32.mxu0 0.0
        %2380 = vmatmul.mubr.f32.gmra.mrb[0].mxu0 %v2162
        %v2381 = vpop.f32.mrb[0].mxu0
        %v2382 = vadd.f32 0.0, %v2381
        %v2383 = vpop.f32.mrb[0].mxu0
        %2384 = vmatprep.mubr.f32.mxu0 0.0
        %2385 = vmatmul.mubr.f32.gmra.mrb[0].mxu0 %v2163
        %v2386 = vpop.f32.mrb[0].mxu0
        %v2387 = vadd.f32 0.0, %v2386
        %v2388 = vpop.f32.mrb[0].mxu0
        %2389 = vmatprep.mubr.f32.mxu0 0.0
        %2390 = vmatmul.mubr.f32.gmra.mrb[0].mxu0 %v2164
        %v2391 = vpop.f32.mrb[0].mxu0
        %v2392 = vadd.f32 0.0, %v2391
        %v2393 = vpop.f32.mrb[0].mxu0
        %2394 = vmatprep.mubr.f32.mxu0 0.0
        %2395 = vmatmul.mubr.f32.gmra.mrb[0].mxu0 %v2165
        %v2396 = vpop.f32.mrb[0].mxu0
        %v2397 = vadd.f32 0.0, %v2396
        %v2398 = vpop.f32.mrb[0].mxu0
        %2399 = vmatprep.mubr.f32.mxu0 0.0
        %2400 = vmatmul.mubr.f32.gmra.mrb[0].mxu0 %v2166
        %v2401 = vpop.f32.mrb[0].mxu0
        %v2402 = vadd.f32 0.0, %v2401
        %v2403 = vpop.f32.mrb[0].mxu0
        %2404 = vmatprep.mubr.f32.mxu0 0.0
        %2405 = vmatmul.mubr.f32.gmra.mrb[0].mxu0 %v2167
        %v2406 = vpop.f32.mrb[0].mxu0
        %v2407 = vadd.f32 0.0, %v2406
        %v2408 = vpop.f32.mrb[0].mxu0
        %2409 = vmatprep.mubr.f32.mxu0 0.0
        %2410 = vmatmul.mubr.f32.gmra.mrb[0].mxu0 %v2168
        %v2411 = vpop.f32.mrb[0].mxu0
        %v2412 = vadd.f32 0.0, %v2411
        %v2413 = vpop.f32.mrb[0].mxu0
        %2414 = vmatprep.mubr.f32.mxu0 0.0
        %2415 = vmatmul.mubr.f32.gmra.mrb[0].mxu0 %v2169
        %v2416 = vpop.f32.mrb[0].mxu0
        %v2417 = vadd.f32 0.0, %v2416
        %v2418 = vpop.f32.mrb[0].mxu0
        %2419 = vmatprep.mubr.f32.mxu0 0.0
        %2420 = vmatmul.mubr.f32.gmra.mrb[0].mxu0 %v2170
        %v2421 = vpop.f32.mrb[0].mxu0
        %v2422 = vadd.f32 0.0, %v2421
        %v2423 = vpop.f32.mrb[0].mxu0
        %2424 = vmatprep.mubr.f32.mxu0 0.0
        %2425 = vmatmul.mubr.f32.gmra.mrb[0].mxu0 %v2171
        %v2426 = vpop.f32.mrb[0].mxu0
        %v2427 = vadd.f32 0.0, %v2426
        %v2428 = vpop.f32.mrb[0].mxu0
        %2429 = vmatprep.mubr.f32.mxu0 0.0
        %2430 = vmatmul.mubr.f32.gmra.mrb[0].mxu0 %v2172
        %v2431 = vpop.f32.mrb[0].mxu0
        %v2432 = vadd.f32 0.0, %v2431
        %v2433 = vpop.f32.mrb[0].mxu0
        %2434 = vdwg.mxu0
        %v2435 = vld [vmem:[#allocation2] sm:$0xff]
        %v2436 = vld [vmem:[#allocation2 + $0x8] sm:$0xff]
        %v2437 = vld [vmem:[#allocation2 + $0x10] sm:$0xff]
        %v2438 = vld [vmem:[#allocation2 + $0x18] sm:$0xff]
        %v2439 = vld [vmem:[#allocation2 + $0x20] sm:$0xff]
        %v2440 = vld [vmem:[#allocation2 + $0x28] sm:$0xff]
        %v2441 = vld [vmem:[#allocation2 + $0x30] sm:$0xff]
        %v2442 = vld [vmem:[#allocation2 + $0x38] sm:$0xff]
        %v2443 = vld [vmem:[#allocation2 + $0x40] sm:$0xff]
        %v2444 = vld [vmem:[#allocation2 + $0x48] sm:$0xff]
        %v2445 = vld [vmem:[#allocation2 + $0x50] sm:$0xff]
        %v2446 = vld [vmem:[#allocation2 + $0x58] sm:$0xff]
        %v2447 = vld [vmem:[#allocation2 + $0x60] sm:$0xff]
        %v2448 = vld [vmem:[#allocation2 + $0x68] sm:$0xff]
        %v2449 = vld [vmem:[#allocation2 + $0x70] sm:$0xff]
        %v2450 = vld [vmem:[#allocation2 + $0x78] sm:$0xff]
        %v2451 = vld [vmem:[#allocation2 + $0x80] sm:$0xff]
        %v2452 = vld [vmem:[#allocation2 + $0x88] sm:$0xff]
        %v2453 = vld [vmem:[#allocation2 + $0x90] sm:$0xff]
        %v2454 = vld [vmem:[#allocation2 + $0x98] sm:$0xff]
        %v2455 = vld [vmem:[#allocation2 + $0xa0] sm:$0xff]
        %v2456 = vld [vmem:[#allocation2 + $0xa8] sm:$0xff]
        %v2457 = vld [vmem:[#allocation2 + $0xb0] sm:$0xff]
        %v2458 = vld [vmem:[#allocation2 + $0xb8] sm:$0xff]
        %v2459 = vld [vmem:[#allocation2 + $0xc0] sm:$0xff]
        %v2460 = vld [vmem:[#allocation2 + $0xc8] sm:$0xff]
        %v2461 = vld [vmem:[#allocation2 + $0xd0] sm:$0xff]
        %v2462 = vld [vmem:[#allocation2 + $0xd8] sm:$0xff]
        %v2463 = vld [vmem:[#allocation2 + $0xe0] sm:$0xff]
        %v2464 = vld [vmem:[#allocation2 + $0xe8] sm:$0xff]
        %v2465 = vld [vmem:[#allocation2 + $0xf0] sm:$0xff]
        %v2466 = vld [vmem:[#allocation2 + $0xf8] sm:$0xff]
        %v2467 = vld [vmem:[#allocation2 + $0x100] sm:$0xff]
        %v2468 = vld [vmem:[#allocation2 + $0x108] sm:$0xff]
        %v2469 = vld [vmem:[#allocation2 + $0x110] sm:$0xff]
        %v2470 = vld [vmem:[#allocation2 + $0x118] sm:$0xff]
        %v2471 = vadd.f32 %v2435, %v2257
        %v2472 = vadd.f32 %v2436, %v2262
        %v2473 = vadd.f32 %v2437, %v2267
        %v2474 = vadd.f32 %v2438, %v2272
        %v2475 = vadd.f32 %v2439, %v2277
        %v2476 = vadd.f32 %v2440, %v2282
        %v2477 = vadd.f32 %v2441, %v2287
        %v2478 = vadd.f32 %v2442, %v2292
        %v2479 = vadd.f32 %v2443, %v2297
        %v2480 = vadd.f32 %v2444, %v2302
        %v2481 = vadd.f32 %v2445, %v2307
        %v2482 = vadd.f32 %v2446, %v2312
        %v2483 = vadd.f32 %v2447, %v2317
        %v2484 = vadd.f32 %v2448, %v2322
        %v2485 = vadd.f32 %v2449, %v2327
        %v2486 = vadd.f32 %v2450, %v2332
        %v2487 = vadd.f32 %v2451, %v2337
        %v2488 = vadd.f32 %v2452, %v2342
        %v2489 = vadd.f32 %v2453, %v2347
        %v2490 = vadd.f32 %v2454, %v2352
        %v2491 = vadd.f32 %v2455, %v2357
        %v2492 = vadd.f32 %v2456, %v2362
        %v2493 = vadd.f32 %v2457, %v2367
        %v2494 = vadd.f32 %v2458, %v2372
        %v2495 = vadd.f32 %v2459, %v2377
        %v2496 = vadd.f32 %v2460, %v2382
        %v2497 = vadd.f32 %v2461, %v2387
        %v2498 = vadd.f32 %v2462, %v2392
        %v2499 = vadd.f32 %v2463, %v2397
        %v2500 = vadd.f32 %v2464, %v2402
        %v2501 = vadd.f32 %v2465, %v2407
        %v2502 = vadd.f32 %v2466, %v2412
        %v2503 = vadd.f32 %v2467, %v2417
        %v2504 = vadd.f32 %v2468, %v2422
        %v2505 = vadd.f32 %v2469, %v2427
        %v2506 = vadd.f32 %v2470, %v2432
        %2507 = vst [vmem:[#allocation2] sm:$0xff] %v2471
        %2508 = vst [vmem:[#allocation2 + $0x8] sm:$0xff] %v2472
        %2509 = vst [vmem:[#allocation2 + $0x10] sm:$0xff] %v2473
        %2510 = vst [vmem:[#allocation2 + $0x18] sm:$0xff] %v2474
        %2511 = vst [vmem:[#allocation2 + $0x20] sm:$0xff] %v2475
        %2512 = vst [vmem:[#allocation2 + $0x28] sm:$0xff] %v2476
        %2513 = vst [vmem:[#allocation2 + $0x30] sm:$0xff] %v2477
        %2514 = vst [vmem:[#allocation2 + $0x38] sm:$0xff] %v2478
        %2515 = vst [vmem:[#allocation2 + $0x40] sm:$0xff] %v2479
        %2516 = vst [vmem:[#allocation2 + $0x48] sm:$0xff] %v2480
        %2517 = vst [vmem:[#allocation2 + $0x50] sm:$0xff] %v2481
        %2518 = vst [vmem:[#allocation2 + $0x58] sm:$0xff] %v2482
        %2519 = vst [vmem:[#allocation2 + $0x60] sm:$0xff] %v2483
        %2520 = vst [vmem:[#allocation2 + $0x68] sm:$0xff] %v2484
        %2521 = vst [vmem:[#allocation2 + $0x70] sm:$0xff] %v2485
        %2522 = vst [vmem:[#allocation2 + $0x78] sm:$0xff] %v2486
        %2523 = vst [vmem:[#allocation2 + $0x80] sm:$0xff] %v2487
        %2524 = vst [vmem:[#allocation2 + $0x88] sm:$0xff] %v2488
        %2525 = vst [vmem:[#allocation2 + $0x90] sm:$0xff] %v2489
        %2526 = vst [vmem:[#allocation2 + $0x98] sm:$0xff] %v2490
        %2527 = vst [vmem:[#allocation2 + $0xa0] sm:$0xff] %v2491
        %2528 = vst [vmem:[#allocation2 + $0xa8] sm:$0xff] %v2492
        %2529 = vst [vmem:[#allocation2 + $0xb0] sm:$0xff] %v2493
        %2530 = vst [vmem:[#allocation2 + $0xb8] sm:$0xff] %v2494
        %2531 = vst [vmem:[#allocation2 + $0xc0] sm:$0xff] %v2495
        %2532 = vst [vmem:[#allocation2 + $0xc8] sm:$0xff] %v2496
        %2533 = vst [vmem:[#allocation2 + $0xd0] sm:$0xff] %v2497
        %2534 = vst [vmem:[#allocation2 + $0xd8] sm:$0xff] %v2498
        %2535 = vst [vmem:[#allocation2 + $0xe0] sm:$0xff] %v2499
        %2536 = vst [vmem:[#allocation2 + $0xe8] sm:$0xff] %v2500
        %2537 = vst [vmem:[#allocation2 + $0xf0] sm:$0xff] %v2501
        %2538 = vst [vmem:[#allocation2 + $0xf8] sm:$0xff] %v2502
        %2539 = vst [vmem:[#allocation2 + $0x100] sm:$0xff] %v2503
        %2540 = vst [vmem:[#allocation2 + $0x108] sm:$0xff] %v2504
        %2541 = vst [vmem:[#allocation2 + $0x110] sm:$0xff] %v2505
        %2542 = vst [vmem:[#allocation2 + $0x118] sm:$0xff] %v2506
        %v2543 = vld [vmem:[%s179 + $0x24] sm:$0xff]
        %v2544 = vld [vmem:[%s179 + $0x2c] sm:$0xff]
        %v2545 = vld [vmem:[%s179 + $0x34] sm:$0xff]
        %v2546 = vld [vmem:[%s179 + $0x3c] sm:$0xff]
        %v2547 = vld [vmem:[%s179 + $0x44] sm:$0xff]
        %v2548 = vld [vmem:[%s179 + $0x4c] sm:$0xff]
        %v2549 = vld [vmem:[%s179 + $0x54] sm:$0xff]
        %v2550 = vld [vmem:[%s179 + $0x5c] sm:$0xff]
        %v2551 = vld [vmem:[%s179 + $0x64] sm:$0xff]
        %v2552 = vld [vmem:[%s179 + $0x6c] sm:$0xff]
        %v2553 = vld [vmem:[%s179 + $0x74] sm:$0xff]
        %v2554 = vld [vmem:[%s179 + $0x7c] sm:$0xff]
        %v2555 = vld [vmem:[%s179 + $0x84] sm:$0xff]
        %v2556 = vld [vmem:[%s179 + $0x8c] sm:$0xff]
        %v2557 = vld [vmem:[%s179 + $0x94] sm:$0xff]
        %v2558 = vld [vmem:[%s179 + $0x9c] sm:$0xff]
        %v2559 = vld [vmem:[%s179 + $0xa4] sm:$0xff]
        %v2560 = vld [vmem:[%s179 + $0xac] sm:$0xff]
        %v2561 = vld [vmem:[%s179 + $0xb4] sm:$0xff]
        %v2562 = vld [vmem:[%s179 + $0xbc] sm:$0xff]
        %v2563 = vld [vmem:[%s179 + $0xc4] sm:$0xff]
        %v2564 = vld [vmem:[%s179 + $0xcc] sm:$0xff]
        %v2565 = vld [vmem:[%s179 + $0xd4] sm:$0xff]
        %v2566 = vld [vmem:[%s179 + $0xdc] sm:$0xff]
        %v2567 = vld [vmem:[%s179 + $0xe4] sm:$0xff]
        %v2568 = vld [vmem:[%s179 + $0xec] sm:$0xff]
        %v2569 = vld [vmem:[%s179 + $0xf4] sm:$0xff]
        %v2570 = vld [vmem:[%s179 + $0xfc] sm:$0xff]
        %v2571 = vld [vmem:[%s179 + $0x104] sm:$0xff]
        %v2572 = vld [vmem:[%s179 + $0x10c] sm:$0xff]
        %v2573 = vld [vmem:[%s179 + $0x114] sm:$0xff]
        %v2574 = vld [vmem:[%s179 + $0x11c] sm:$0xff]
        %v2575 = vld [vmem:[%s179 + $0x124] sm:$0xff]
        %v2576 = vld [vmem:[%s179 + $0x12c] sm:$0xff]
        %v2577 = vld [vmem:[%s179 + $0x134] sm:$0xff]
        %v2578 = vld [vmem:[%s179 + $0x13c] sm:$0xff]
        %s2579 = scalar_lea.vmem %s1, 768
        %v2580 = vld [vmem:[%s2579] sm:$0xff]
        %v2581 = vld [vmem:[%s2579 + $0x8] sm:$0xff]
        %v2582 = vld [vmem:[%s2579 + $0x10] sm:$0xff]
        %v2583 = vld [vmem:[%s2579 + $0x18] sm:$0xff]
        %v2584 = vld [vmem:[%s2579 + $0x20] sm:$0xff]
        %v2585 = vld [vmem:[%s2579 + $0x28] sm:$0xff]
        %v2586 = vld [vmem:[%s2579 + $0x30] sm:$0xff]
        %v2587 = vld [vmem:[%s2579 + $0x38] sm:$0xff]
        %v2588 = vld [vmem:[%s2579 + $0x40] sm:$0xff]
        %v2589 = vld [vmem:[%s2579 + $0x48] sm:$0xff]
        %v2590 = vld [vmem:[%s2579 + $0x50] sm:$0xff]
        %v2591 = vld [vmem:[%s2579 + $0x58] sm:$0xff]
        %v2592 = vld [vmem:[%s2579 + $0x60] sm:$0xff]
        %v2593 = vld [vmem:[%s2579 + $0x68] sm:$0xff]
        %v2594 = vld [vmem:[%s2579 + $0x70] sm:$0xff]
        %v2595 = vld [vmem:[%s2579 + $0x78] sm:$0xff]
        %2596 = vmatprep.subr.mxu0 0.0
        %2597 = vmatpush1.msra.mxu0 %v2580
        %2598 = vmatprep.subr.mxu0 0.0
        %2599 = vmatpush1.msra.mxu0 %v2581
        %2600 = vmatprep.subr.mxu0 0.0
        %2601 = vmatpush1.msra.mxu0 %v2582
        %2602 = vmatprep.subr.mxu0 0.0
        %2603 = vmatpush1.msra.mxu0 %v2583
        %2604 = vmatprep.subr.mxu0 0.0
        %2605 = vmatpush1.msra.mxu0 %v2584
        %2606 = vmatprep.subr.mxu0 0.0
        %2607 = vmatpush1.msra.mxu0 %v2585
        %2608 = vmatprep.subr.mxu0 0.0
        %2609 = vmatpush1.msra.mxu0 %v2586
        %2610 = vmatprep.subr.mxu0 0.0
        %2611 = vmatpush1.msra.mxu0 %v2587
        %2612 = vmatprep.subr.mxu0 0.0
        %2613 = vmatpush1.msra.mxu0 %v2588
        %2614 = vmatprep.subr.mxu0 0.0
        %2615 = vmatpush1.msra.mxu0 %v2589
        %2616 = vmatprep.subr.mxu0 0.0
        %2617 = vmatpush1.msra.mxu0 %v2590
        %2618 = vmatprep.subr.mxu0 0.0
        %2619 = vmatpush1.msra.mxu0 %v2591
        %2620 = vmatprep.subr.mxu0 0.0
        %2621 = vmatpush1.msra.mxu0 %v2592
        %2622 = vmatprep.subr.mxu0 0.0
        %2623 = vmatpush1.msra.mxu0 %v2593
        %2624 = vmatprep.subr.mxu0 0.0
        %2625 = vmatpush1.msra.mxu0 %v2594
        %2626 = vmatprep.subr.mxu0 0.0
        %2627 = vmatpush1.msra.mxu0 %v2595
        %2628 = vmatprep.subr.mxu0 0.0
        %2629 = vmatpush1.msra.mxu0 0.0
        %2630 = vmatprep.subr.mxu0 0.0
        %2631 = vmatpush1.msra.mxu0 0.0
        %2632 = vmatprep.subr.mxu0 0.0
        %2633 = vmatpush1.msra.mxu0 0.0
        %2634 = vmatprep.subr.mxu0 0.0
        %2635 = vmatpush1.msra.mxu0 0.0
        %2636 = vmatprep.subr.mxu0 0.0
        %2637 = vmatpush1.msra.mxu0 0.0
        %2638 = vmatprep.subr.mxu0 0.0
        %2639 = vmatpush1.msra.mxu0 0.0
        %2640 = vmatprep.subr.mxu0 0.0
        %2641 = vmatpush1.msra.mxu0 0.0
        %2642 = vmatprep.subr.mxu0 0.0
        %2643 = vmatpush1.msra.mxu0 0.0
        %2644 = vmatprep.subr.mxu0 0.0
        %2645 = vmatpush1.msra.mxu0 0.0
        %2646 = vmatprep.subr.mxu0 0.0
        %2647 = vmatpush1.msra.mxu0 0.0
        %2648 = vmatprep.subr.mxu0 0.0
        %2649 = vmatpush1.msra.mxu0 0.0
        %2650 = vmatprep.subr.mxu0 0.0
        %2651 = vmatpush1.msra.mxu0 0.0
        %2652 = vmatprep.subr.mxu0 0.0
        %2653 = vmatpush1.msra.mxu0 0.0
        %2654 = vmatprep.subr.mxu0 0.0
        %2655 = vmatpush1.msra.mxu0 0.0
        %2656 = vmatprep.subr.mxu0 0.0
        %2657 = vmatpush1.msra.mxu0 0.0
        %2658 = vmatprep.subr.mxu0 0.0
        %2659 = vmatpush1.msra.mxu0 0.0
        %2660 = vmatprep.mubr.f32.mxu0 0.0
        %2661 = vmatmul.mubr.f32.gmra.mrb[0].mxu0 %v2543
        %v2662 = vpop.f32.mrb[0].mxu0
        %v2663 = vadd.f32 0.0, %v2662
        %v2664 = vpop.f32.mrb[0].mxu0
        %2665 = vmatprep.mubr.f32.mxu0 0.0
        %2666 = vmatmul.mubr.f32.gmra.mrb[0].mxu0 %v2544
        %v2667 = vpop.f32.mrb[0].mxu0
        %v2668 = vadd.f32 0.0, %v2667
        %v2669 = vpop.f32.mrb[0].mxu0
        %2670 = vmatprep.mubr.f32.mxu0 0.0
        %2671 = vmatmul.mubr.f32.gmra.mrb[0].mxu0 %v2545
        %v2672 = vpop.f32.mrb[0].mxu0
        %v2673 = vadd.f32 0.0, %v2672
        %v2674 = vpop.f32.mrb[0].mxu0
        %2675 = vmatprep.mubr.f32.mxu0 0.0
        %2676 = vmatmul.mubr.f32.gmra.mrb[0].mxu0 %v2546
        %v2677 = vpop.f32.mrb[0].mxu0
        %v2678 = vadd.f32 0.0, %v2677
        %v2679 = vpop.f32.mrb[0].mxu0
        %2680 = vmatprep.mubr.f32.mxu0 0.0
        %2681 = vmatmul.mubr.f32.gmra.mrb[0].mxu0 %v2547
        %v2682 = vpop.f32.mrb[0].mxu0
        %v2683 = vadd.f32 0.0, %v2682
        %v2684 = vpop.f32.mrb[0].mxu0
        %2685 = vmatprep.mubr.f32.mxu0 0.0
        %2686 = vmatmul.mubr.f32.gmra.mrb[0].mxu0 %v2548
        %v2687 = vpop.f32.mrb[0].mxu0
        %v2688 = vadd.f32 0.0, %v2687
        %v2689 = vpop.f32.mrb[0].mxu0
        %2690 = vmatprep.mubr.f32.mxu0 0.0
        %2691 = vmatmul.mubr.f32.gmra.mrb[0].mxu0 %v2549
        %v2692 = vpop.f32.mrb[0].mxu0
        %v2693 = vadd.f32 0.0, %v2692
        %v2694 = vpop.f32.mrb[0].mxu0
        %2695 = vmatprep.mubr.f32.mxu0 0.0
        %2696 = vmatmul.mubr.f32.gmra.mrb[0].mxu0 %v2550
        %v2697 = vpop.f32.mrb[0].mxu0
        %v2698 = vadd.f32 0.0, %v2697
        %v2699 = vpop.f32.mrb[0].mxu0
        %2700 = vmatprep.mubr.f32.mxu0 0.0
        %2701 = vmatmul.mubr.f32.gmra.mrb[0].mxu0 %v2551
        %v2702 = vpop.f32.mrb[0].mxu0
        %v2703 = vadd.f32 0.0, %v2702
        %v2704 = vpop.f32.mrb[0].mxu0
        %2705 = vmatprep.mubr.f32.mxu0 0.0
        %2706 = vmatmul.mubr.f32.gmra.mrb[0].mxu0 %v2552
        %v2707 = vpop.f32.mrb[0].mxu0
        %v2708 = vadd.f32 0.0, %v2707
        %v2709 = vpop.f32.mrb[0].mxu0
        %2710 = vmatprep.mubr.f32.mxu0 0.0
        %2711 = vmatmul.mubr.f32.gmra.mrb[0].mxu0 %v2553
        %v2712 = vpop.f32.mrb[0].mxu0
        %v2713 = vadd.f32 0.0, %v2712
        %v2714 = vpop.f32.mrb[0].mxu0
        %2715 = vmatprep.mubr.f32.mxu0 0.0
        %2716 = vmatmul.mubr.f32.gmra.mrb[0].mxu0 %v2554
        %v2717 = vpop.f32.mrb[0].mxu0
        %v2718 = vadd.f32 0.0, %v2717
        %v2719 = vpop.f32.mrb[0].mxu0
        %2720 = vmatprep.mubr.f32.mxu0 0.0
        %2721 = vmatmul.mubr.f32.gmra.mrb[0].mxu0 %v2555
        %v2722 = vpop.f32.mrb[0].mxu0
        %v2723 = vadd.f32 0.0, %v2722
        %v2724 = vpop.f32.mrb[0].mxu0
        %2725 = vmatprep.mubr.f32.mxu0 0.0
        %2726 = vmatmul.mubr.f32.gmra.mrb[0].mxu0 %v2556
        %v2727 = vpop.f32.mrb[0].mxu0
        %v2728 = vadd.f32 0.0, %v2727
        %v2729 = vpop.f32.mrb[0].mxu0
        %2730 = vmatprep.mubr.f32.mxu0 0.0
        %2731 = vmatmul.mubr.f32.gmra.mrb[0].mxu0 %v2557
        %v2732 = vpop.f32.mrb[0].mxu0
        %v2733 = vadd.f32 0.0, %v2732
        %v2734 = vpop.f32.mrb[0].mxu0
        %2735 = vmatprep.mubr.f32.mxu0 0.0
        %2736 = vmatmul.mubr.f32.gmra.mrb[0].mxu0 %v2558
        %v2737 = vpop.f32.mrb[0].mxu0
        %v2738 = vadd.f32 0.0, %v2737
        %v2739 = vpop.f32.mrb[0].mxu0
        %2740 = vmatprep.mubr.f32.mxu0 0.0
        %2741 = vmatmul.mubr.f32.gmra.mrb[0].mxu0 %v2559
        %v2742 = vpop.f32.mrb[0].mxu0
        %v2743 = vadd.f32 0.0, %v2742
        %v2744 = vpop.f32.mrb[0].mxu0
        %2745 = vmatprep.mubr.f32.mxu0 0.0
        %2746 = vmatmul.mubr.f32.gmra.mrb[0].mxu0 %v2560
        %v2747 = vpop.f32.mrb[0].mxu0
        %v2748 = vadd.f32 0.0, %v2747
        %v2749 = vpop.f32.mrb[0].mxu0
        %2750 = vmatprep.mubr.f32.mxu0 0.0
        %2751 = vmatmul.mubr.f32.gmra.mrb[0].mxu0 %v2561
        %v2752 = vpop.f32.mrb[0].mxu0
        %v2753 = vadd.f32 0.0, %v2752
        %v2754 = vpop.f32.mrb[0].mxu0
        %2755 = vmatprep.mubr.f32.mxu0 0.0
        %2756 = vmatmul.mubr.f32.gmra.mrb[0].mxu0 %v2562
        %v2757 = vpop.f32.mrb[0].mxu0
        %v2758 = vadd.f32 0.0, %v2757
        %v2759 = vpop.f32.mrb[0].mxu0
        %2760 = vmatprep.mubr.f32.mxu0 0.0
        %2761 = vmatmul.mubr.f32.gmra.mrb[0].mxu0 %v2563
        %v2762 = vpop.f32.mrb[0].mxu0
        %v2763 = vadd.f32 0.0, %v2762
        %v2764 = vpop.f32.mrb[0].mxu0
        %2765 = vmatprep.mubr.f32.mxu0 0.0
        %2766 = vmatmul.mubr.f32.gmra.mrb[0].mxu0 %v2564
        %v2767 = vpop.f32.mrb[0].mxu0
        %v2768 = vadd.f32 0.0, %v2767
        %v2769 = vpop.f32.mrb[0].mxu0
        %2770 = vmatprep.mubr.f32.mxu0 0.0
        %2771 = vmatmul.mubr.f32.gmra.mrb[0].mxu0 %v2565
        %v2772 = vpop.f32.mrb[0].mxu0
        %v2773 = vadd.f32 0.0, %v2772
        %v2774 = vpop.f32.mrb[0].mxu0
        %2775 = vmatprep.mubr.f32.mxu0 0.0
        %2776 = vmatmul.mubr.f32.gmra.mrb[0].mxu0 %v2566
        %v2777 = vpop.f32.mrb[0].mxu0
        %v2778 = vadd.f32 0.0, %v2777
        %v2779 = vpop.f32.mrb[0].mxu0
        %2780 = vmatprep.mubr.f32.mxu0 0.0
        %2781 = vmatmul.mubr.f32.gmra.mrb[0].mxu0 %v2567
        %v2782 = vpop.f32.mrb[0].mxu0
        %v2783 = vadd.f32 0.0, %v2782
        %v2784 = vpop.f32.mrb[0].mxu0
        %2785 = vmatprep.mubr.f32.mxu0 0.0
        %2786 = vmatmul.mubr.f32.gmra.mrb[0].mxu0 %v2568
        %v2787 = vpop.f32.mrb[0].mxu0
        %v2788 = vadd.f32 0.0, %v2787
        %v2789 = vpop.f32.mrb[0].mxu0
        %2790 = vmatprep.mubr.f32.mxu0 0.0
        %2791 = vmatmul.mubr.f32.gmra.mrb[0].mxu0 %v2569
        %v2792 = vpop.f32.mrb[0].mxu0
        %v2793 = vadd.f32 0.0, %v2792
        %v2794 = vpop.f32.mrb[0].mxu0
        %2795 = vmatprep.mubr.f32.mxu0 0.0
        %2796 = vmatmul.mubr.f32.gmra.mrb[0].mxu0 %v2570
        %v2797 = vpop.f32.mrb[0].mxu0
        %v2798 = vadd.f32 0.0, %v2797
        %v2799 = vpop.f32.mrb[0].mxu0
        %2800 = vmatprep.mubr.f32.mxu0 0.0
        %2801 = vmatmul.mubr.f32.gmra.mrb[0].mxu0 %v2571
        %v2802 = vpop.f32.mrb[0].mxu0
        %v2803 = vadd.f32 0.0, %v2802
        %v2804 = vpop.f32.mrb[0].mxu0
        %2805 = vmatprep.mubr.f32.mxu0 0.0
        %2806 = vmatmul.mubr.f32.gmra.mrb[0].mxu0 %v2572
        %v2807 = vpop.f32.mrb[0].mxu0
        %v2808 = vadd.f32 0.0, %v2807
        %v2809 = vpop.f32.mrb[0].mxu0
        %2810 = vmatprep.mubr.f32.mxu0 0.0
        %2811 = vmatmul.mubr.f32.gmra.mrb[0].mxu0 %v2573
        %v2812 = vpop.f32.mrb[0].mxu0
        %v2813 = vadd.f32 0.0, %v2812
        %v2814 = vpop.f32.mrb[0].mxu0
        %2815 = vmatprep.mubr.f32.mxu0 0.0
        %2816 = vmatmul.mubr.f32.gmra.mrb[0].mxu0 %v2574
        %v2817 = vpop.f32.mrb[0].mxu0
        %v2818 = vadd.f32 0.0, %v2817
        %v2819 = vpop.f32.mrb[0].mxu0
        %2820 = vmatprep.mubr.f32.mxu0 0.0
        %2821 = vmatmul.mubr.f32.gmra.mrb[0].mxu0 %v2575
        %v2822 = vpop.f32.mrb[0].mxu0
        %v2823 = vadd.f32 0.0, %v2822
        %v2824 = vpop.f32.mrb[0].mxu0
        %2825 = vmatprep.mubr.f32.mxu0 0.0
        %2826 = vmatmul.mubr.f32.gmra.mrb[0].mxu0 %v2576
        %v2827 = vpop.f32.mrb[0].mxu0
        %v2828 = vadd.f32 0.0, %v2827
        %v2829 = vpop.f32.mrb[0].mxu0
        %2830 = vmatprep.mubr.f32.mxu0 0.0
        %2831 = vmatmul.mubr.f32.gmra.mrb[0].mxu0 %v2577
        %v2832 = vpop.f32.mrb[0].mxu0
        %v2833 = vadd.f32 0.0, %v2832
        %v2834 = vpop.f32.mrb[0].mxu0
        %2835 = vmatprep.mubr.f32.mxu0 0.0
        %2836 = vmatmul.mubr.f32.gmra.mrb[0].mxu0 %v2578
        %v2837 = vpop.f32.mrb[0].mxu0
        %v2838 = vadd.f32 0.0, %v2837
        %v2839 = vpop.f32.mrb[0].mxu0
        %2840 = vdwg.mxu0
        %v2841 = vld [vmem:[#allocation2] sm:$0xff]
        %v2842 = vld [vmem:[#allocation2 + $0x8] sm:$0xff]
        %v2843 = vld [vmem:[#allocation2 + $0x10] sm:$0xff]
        %v2844 = vld [vmem:[#allocation2 + $0x18] sm:$0xff]
        %v2845 = vld [vmem:[#allocation2 + $0x20] sm:$0xff]
        %v2846 = vld [vmem:[#allocation2 + $0x28] sm:$0xff]
        %v2847 = vld [vmem:[#allocation2 + $0x30] sm:$0xff]
        %v2848 = vld [vmem:[#allocation2 + $0x38] sm:$0xff]
        %v2849 = vld [vmem:[#allocation2 + $0x40] sm:$0xff]
        %v2850 = vld [vmem:[#allocation2 + $0x48] sm:$0xff]
        %v2851 = vld [vmem:[#allocation2 + $0x50] sm:$0xff]
        %v2852 = vld [vmem:[#allocation2 + $0x58] sm:$0xff]
        %v2853 = vld [vmem:[#allocation2 + $0x60] sm:$0xff]
        %v2854 = vld [vmem:[#allocation2 + $0x68] sm:$0xff]
        %v2855 = vld [vmem:[#allocation2 + $0x70] sm:$0xff]
        %v2856 = vld [vmem:[#allocation2 + $0x78] sm:$0xff]
        %v2857 = vld [vmem:[#allocation2 + $0x80] sm:$0xff]
        %v2858 = vld [vmem:[#allocation2 + $0x88] sm:$0xff]
        %v2859 = vld [vmem:[#allocation2 + $0x90] sm:$0xff]
        %v2860 = vld [vmem:[#allocation2 + $0x98] sm:$0xff]
        %v2861 = vld [vmem:[#allocation2 + $0xa0] sm:$0xff]
        %v2862 = vld [vmem:[#allocation2 + $0xa8] sm:$0xff]
        %v2863 = vld [vmem:[#allocation2 + $0xb0] sm:$0xff]
        %v2864 = vld [vmem:[#allocation2 + $0xb8] sm:$0xff]
        %v2865 = vld [vmem:[#allocation2 + $0xc0] sm:$0xff]
        %v2866 = vld [vmem:[#allocation2 + $0xc8] sm:$0xff]
        %v2867 = vld [vmem:[#allocation2 + $0xd0] sm:$0xff]
        %v2868 = vld [vmem:[#allocation2 + $0xd8] sm:$0xff]
        %v2869 = vld [vmem:[#allocation2 + $0xe0] sm:$0xff]
        %v2870 = vld [vmem:[#allocation2 + $0xe8] sm:$0xff]
        %v2871 = vld [vmem:[#allocation2 + $0xf0] sm:$0xff]
        %v2872 = vld [vmem:[#allocation2 + $0xf8] sm:$0xff]
        %v2873 = vld [vmem:[#allocation2 + $0x100] sm:$0xff]
        %v2874 = vld [vmem:[#allocation2 + $0x108] sm:$0xff]
        %v2875 = vld [vmem:[#allocation2 + $0x110] sm:$0xff]
        %v2876 = vld [vmem:[#allocation2 + $0x118] sm:$0xff]
        %v2877 = vadd.f32 %v2841, %v2663
        %v2878 = vadd.f32 %v2842, %v2668
        %v2879 = vadd.f32 %v2843, %v2673
        %v2880 = vadd.f32 %v2844, %v2678
        %v2881 = vadd.f32 %v2845, %v2683
        %v2882 = vadd.f32 %v2846, %v2688
        %v2883 = vadd.f32 %v2847, %v2693
        %v2884 = vadd.f32 %v2848, %v2698
        %v2885 = vadd.f32 %v2849, %v2703
        %v2886 = vadd.f32 %v2850, %v2708
        %v2887 = vadd.f32 %v2851, %v2713
        %v2888 = vadd.f32 %v2852, %v2718
        %v2889 = vadd.f32 %v2853, %v2723
        %v2890 = vadd.f32 %v2854, %v2728
        %v2891 = vadd.f32 %v2855, %v2733
        %v2892 = vadd.f32 %v2856, %v2738
        %v2893 = vadd.f32 %v2857, %v2743
        %v2894 = vadd.f32 %v2858, %v2748
        %v2895 = vadd.f32 %v2859, %v2753
        %v2896 = vadd.f32 %v2860, %v2758
        %v2897 = vadd.f32 %v2861, %v2763
        %v2898 = vadd.f32 %v2862, %v2768
        %v2899 = vadd.f32 %v2863, %v2773
        %v2900 = vadd.f32 %v2864, %v2778
        %v2901 = vadd.f32 %v2865, %v2783
        %v2902 = vadd.f32 %v2866, %v2788
        %v2903 = vadd.f32 %v2867, %v2793
        %v2904 = vadd.f32 %v2868, %v2798
        %v2905 = vadd.f32 %v2869, %v2803
        %v2906 = vadd.f32 %v2870, %v2808
        %v2907 = vadd.f32 %v2871, %v2813
        %v2908 = vadd.f32 %v2872, %v2818
        %v2909 = vadd.f32 %v2873, %v2823
        %v2910 = vadd.f32 %v2874, %v2828
        %v2911 = vadd.f32 %v2875, %v2833
        %v2912 = vadd.f32 %v2876, %v2838
        %2913 = vst [vmem:[#allocation2] sm:$0xff] %v2877
        %2914 = vst [vmem:[#allocation2 + $0x8] sm:$0xff] %v2878
        %2915 = vst [vmem:[#allocation2 + $0x10] sm:$0xff] %v2879
        %2916 = vst [vmem:[#allocation2 + $0x18] sm:$0xff] %v2880
        %2917 = vst [vmem:[#allocation2 + $0x20] sm:$0xff] %v2881
        %2918 = vst [vmem:[#allocation2 + $0x28] sm:$0xff] %v2882
        %2919 = vst [vmem:[#allocation2 + $0x30] sm:$0xff] %v2883
        %2920 = vst [vmem:[#allocation2 + $0x38] sm:$0xff] %v2884
        %2921 = vst [vmem:[#allocation2 + $0x40] sm:$0xff] %v2885
        %2922 = vst [vmem:[#allocation2 + $0x48] sm:$0xff] %v2886
        %2923 = vst [vmem:[#allocation2 + $0x50] sm:$0xff] %v2887
        %2924 = vst [vmem:[#allocation2 + $0x58] sm:$0xff] %v2888
        %2925 = vst [vmem:[#allocation2 + $0x60] sm:$0xff] %v2889
        %2926 = vst [vmem:[#allocation2 + $0x68] sm:$0xff] %v2890
        %2927 = vst [vmem:[#allocation2 + $0x70] sm:$0xff] %v2891
        %2928 = vst [vmem:[#allocation2 + $0x78] sm:$0xff] %v2892
        %2929 = vst [vmem:[#allocation2 + $0x80] sm:$0xff] %v2893
        %2930 = vst [vmem:[#allocation2 + $0x88] sm:$0xff] %v2894
        %2931 = vst [vmem:[#allocation2 + $0x90] sm:$0xff] %v2895
        %2932 = vst [vmem:[#allocation2 + $0x98] sm:$0xff] %v2896
        %2933 = vst [vmem:[#allocation2 + $0xa0] sm:$0xff] %v2897
        %2934 = vst [vmem:[#allocation2 + $0xa8] sm:$0xff] %v2898
        %2935 = vst [vmem:[#allocation2 + $0xb0] sm:$0xff] %v2899
        %2936 = vst [vmem:[#allocation2 + $0xb8] sm:$0xff] %v2900
        %2937 = vst [vmem:[#allocation2 + $0xc0] sm:$0xff] %v2901
        %2938 = vst [vmem:[#allocation2 + $0xc8] sm:$0xff] %v2902
        %2939 = vst [vmem:[#allocation2 + $0xd0] sm:$0xff] %v2903
        %2940 = vst [vmem:[#allocation2 + $0xd8] sm:$0xff] %v2904
        %2941 = vst [vmem:[#allocation2 + $0xe0] sm:$0xff] %v2905
        %2942 = vst [vmem:[#allocation2 + $0xe8] sm:$0xff] %v2906
        %2943 = vst [vmem:[#allocation2 + $0xf0] sm:$0xff] %v2907
        %2944 = vst [vmem:[#allocation2 + $0xf8] sm:$0xff] %v2908
        %2945 = vst [vmem:[#allocation2 + $0x100] sm:$0xff] %v2909
        %2946 = vst [vmem:[#allocation2 + $0x108] sm:$0xff] %v2910
        %2947 = vst [vmem:[#allocation2 + $0x110] sm:$0xff] %v2911
        %2948 = vst [vmem:[#allocation2 + $0x118] sm:$0xff] %v2912
        %v2949 = vld [vmem:[%s179 + $0x25] sm:$0xff]
        %v2950 = vld [vmem:[%s179 + $0x2d] sm:$0xff]
        %v2951 = vld [vmem:[%s179 + $0x35] sm:$0xff]
        %v2952 = vld [vmem:[%s179 + $0x3d] sm:$0xff]
        %v2953 = vld [vmem:[%s179 + $0x45] sm:$0xff]
        %v2954 = vld [vmem:[%s179 + $0x4d] sm:$0xff]
        %v2955 = vld [vmem:[%s179 + $0x55] sm:$0xff]
        %v2956 = vld [vmem:[%s179 + $0x5d] sm:$0xff]
        %v2957 = vld [vmem:[%s179 + $0x65] sm:$0xff]
        %v2958 = vld [vmem:[%s179 + $0x6d] sm:$0xff]
        %v2959 = vld [vmem:[%s179 + $0x75] sm:$0xff]
        %v2960 = vld [vmem:[%s179 + $0x7d] sm:$0xff]
        %v2961 = vld [vmem:[%s179 + $0x85] sm:$0xff]
        %v2962 = vld [vmem:[%s179 + $0x8d] sm:$0xff]
        %v2963 = vld [vmem:[%s179 + $0x95] sm:$0xff]
        %v2964 = vld [vmem:[%s179 + $0x9d] sm:$0xff]
        %v2965 = vld [vmem:[%s179 + $0xa5] sm:$0xff]
        %v2966 = vld [vmem:[%s179 + $0xad] sm:$0xff]
        %v2967 = vld [vmem:[%s179 + $0xb5] sm:$0xff]
        %v2968 = vld [vmem:[%s179 + $0xbd] sm:$0xff]
        %v2969 = vld [vmem:[%s179 + $0xc5] sm:$0xff]
        %v2970 = vld [vmem:[%s179 + $0xcd] sm:$0xff]
        %v2971 = vld [vmem:[%s179 + $0xd5] sm:$0xff]
        %v2972 = vld [vmem:[%s179 + $0xdd] sm:$0xff]
        %v2973 = vld [vmem:[%s179 + $0xe5] sm:$0xff]
        %v2974 = vld [vmem:[%s179 + $0xed] sm:$0xff]
        %v2975 = vld [vmem:[%s179 + $0xf5] sm:$0xff]
        %v2976 = vld [vmem:[%s179 + $0xfd] sm:$0xff]
        %v2977 = vld [vmem:[%s179 + $0x105] sm:$0xff]
        %v2978 = vld [vmem:[%s179 + $0x10d] sm:$0xff]
        %v2979 = vld [vmem:[%s179 + $0x115] sm:$0xff]
        %v2980 = vld [vmem:[%s179 + $0x11d] sm:$0xff]
        %v2981 = vld [vmem:[%s179 + $0x125] sm:$0xff]
        %v2982 = vld [vmem:[%s179 + $0x12d] sm:$0xff]
        %v2983 = vld [vmem:[%s179 + $0x135] sm:$0xff]
        %v2984 = vld [vmem:[%s179 + $0x13d] sm:$0xff]
        %s2985 = scalar_lea.vmem %s1, 896
        %v2986 = vld [vmem:[%s2985] sm:$0xff]
        %v2987 = vld [vmem:[%s2985 + $0x8] sm:$0xff]
        %v2988 = vld [vmem:[%s2985 + $0x10] sm:$0xff]
        %v2989 = vld [vmem:[%s2985 + $0x18] sm:$0xff]
        %v2990 = vld [vmem:[%s2985 + $0x20] sm:$0xff]
        %v2991 = vld [vmem:[%s2985 + $0x28] sm:$0xff]
        %v2992 = vld [vmem:[%s2985 + $0x30] sm:$0xff]
        %v2993 = vld [vmem:[%s2985 + $0x38] sm:$0xff]
        %v2994 = vld [vmem:[%s2985 + $0x40] sm:$0xff]
        %v2995 = vld [vmem:[%s2985 + $0x48] sm:$0xff]
        %v2996 = vld [vmem:[%s2985 + $0x50] sm:$0xff]
        %v2997 = vld [vmem:[%s2985 + $0x58] sm:$0xff]
        %v2998 = vld [vmem:[%s2985 + $0x60] sm:$0xff]
        %v2999 = vld [vmem:[%s2985 + $0x68] sm:$0xff]
        %v3000 = vld [vmem:[%s2985 + $0x70] sm:$0xff]
        %v3001 = vld [vmem:[%s2985 + $0x78] sm:$0xff]
        %3002 = vmatprep.subr.mxu0 0.0
        %3003 = vmatpush1.msra.mxu0 %v2986
        %3004 = vmatprep.subr.mxu0 0.0
        %3005 = vmatpush1.msra.mxu0 %v2987
        %3006 = vmatprep.subr.mxu0 0.0
        %3007 = vmatpush1.msra.mxu0 %v2988
        %3008 = vmatprep.subr.mxu0 0.0
        %3009 = vmatpush1.msra.mxu0 %v2989
        %3010 = vmatprep.subr.mxu0 0.0
        %3011 = vmatpush1.msra.mxu0 %v2990
        %3012 = vmatprep.subr.mxu0 0.0
        %3013 = vmatpush1.msra.mxu0 %v2991
        %3014 = vmatprep.subr.mxu0 0.0
        %3015 = vmatpush1.msra.mxu0 %v2992
        %3016 = vmatprep.subr.mxu0 0.0
        %3017 = vmatpush1.msra.mxu0 %v2993
        %3018 = vmatprep.subr.mxu0 0.0
        %3019 = vmatpush1.msra.mxu0 %v2994
        %3020 = vmatprep.subr.mxu0 0.0
        %3021 = vmatpush1.msra.mxu0 %v2995
        %3022 = vmatprep.subr.mxu0 0.0
        %3023 = vmatpush1.msra.mxu0 %v2996
        %3024 = vmatprep.subr.mxu0 0.0
        %3025 = vmatpush1.msra.mxu0 %v2997
        %3026 = vmatprep.subr.mxu0 0.0
        %3027 = vmatpush1.msra.mxu0 %v2998
        %3028 = vmatprep.subr.mxu0 0.0
        %3029 = vmatpush1.msra.mxu0 %v2999
        %3030 = vmatprep.subr.mxu0 0.0
        %3031 = vmatpush1.msra.mxu0 %v3000
        %3032 = vmatprep.subr.mxu0 0.0
        %3033 = vmatpush1.msra.mxu0 %v3001
        %3034 = vmatprep.subr.mxu0 0.0
        %3035 = vmatpush1.msra.mxu0 0.0
        %3036 = vmatprep.subr.mxu0 0.0
        %3037 = vmatpush1.msra.mxu0 0.0
        %3038 = vmatprep.subr.mxu0 0.0
        %3039 = vmatpush1.msra.mxu0 0.0
        %3040 = vmatprep.subr.mxu0 0.0
        %3041 = vmatpush1.msra.mxu0 0.0
        %3042 = vmatprep.subr.mxu0 0.0
        %3043 = vmatpush1.msra.mxu0 0.0
        %3044 = vmatprep.subr.mxu0 0.0
        %3045 = vmatpush1.msra.mxu0 0.0
        %3046 = vmatprep.subr.mxu0 0.0
        %3047 = vmatpush1.msra.mxu0 0.0
        %3048 = vmatprep.subr.mxu0 0.0
        %3049 = vmatpush1.msra.mxu0 0.0
        %3050 = vmatprep.subr.mxu0 0.0
        %3051 = vmatpush1.msra.mxu0 0.0
        %3052 = vmatprep.subr.mxu0 0.0
        %3053 = vmatpush1.msra.mxu0 0.0
        %3054 = vmatprep.subr.mxu0 0.0
        %3055 = vmatpush1.msra.mxu0 0.0
        %3056 = vmatprep.subr.mxu0 0.0
        %3057 = vmatpush1.msra.mxu0 0.0
        %3058 = vmatprep.subr.mxu0 0.0
        %3059 = vmatpush1.msra.mxu0 0.0
        %3060 = vmatprep.subr.mxu0 0.0
        %3061 = vmatpush1.msra.mxu0 0.0
        %3062 = vmatprep.subr.mxu0 0.0
        %3063 = vmatpush1.msra.mxu0 0.0
        %3064 = vmatprep.subr.mxu0 0.0
        %3065 = vmatpush1.msra.mxu0 0.0
        %3066 = vmatprep.mubr.f32.mxu0 0.0
        %3067 = vmatmul.mubr.f32.gmra.mrb[0].mxu0 %v2949
        %v3068 = vpop.f32.mrb[0].mxu0
        %v3069 = vadd.f32 0.0, %v3068
        %v3070 = vpop.f32.mrb[0].mxu0
        %3071 = vmatprep.mubr.f32.mxu0 0.0
        %3072 = vmatmul.mubr.f32.gmra.mrb[0].mxu0 %v2950
        %v3073 = vpop.f32.mrb[0].mxu0
        %v3074 = vadd.f32 0.0, %v3073
        %v3075 = vpop.f32.mrb[0].mxu0
        %3076 = vmatprep.mubr.f32.mxu0 0.0
        %3077 = vmatmul.mubr.f32.gmra.mrb[0].mxu0 %v2951
        %v3078 = vpop.f32.mrb[0].mxu0
        %v3079 = vadd.f32 0.0, %v3078
        %v3080 = vpop.f32.mrb[0].mxu0
        %3081 = vmatprep.mubr.f32.mxu0 0.0
        %3082 = vmatmul.mubr.f32.gmra.mrb[0].mxu0 %v2952
        %v3083 = vpop.f32.mrb[0].mxu0
        %v3084 = vadd.f32 0.0, %v3083
        %v3085 = vpop.f32.mrb[0].mxu0
        %3086 = vmatprep.mubr.f32.mxu0 0.0
        %3087 = vmatmul.mubr.f32.gmra.mrb[0].mxu0 %v2953
        %v3088 = vpop.f32.mrb[0].mxu0
        %v3089 = vadd.f32 0.0, %v3088
        %v3090 = vpop.f32.mrb[0].mxu0
        %3091 = vmatprep.mubr.f32.mxu0 0.0
        %3092 = vmatmul.mubr.f32.gmra.mrb[0].mxu0 %v2954
        %v3093 = vpop.f32.mrb[0].mxu0
        %v3094 = vadd.f32 0.0, %v3093
        %v3095 = vpop.f32.mrb[0].mxu0
        %3096 = vmatprep.mubr.f32.mxu0 0.0
        %3097 = vmatmul.mubr.f32.gmra.mrb[0].mxu0 %v2955
        %v3098 = vpop.f32.mrb[0].mxu0
        %v3099 = vadd.f32 0.0, %v3098
        %v3100 = vpop.f32.mrb[0].mxu0
        %3101 = vmatprep.mubr.f32.mxu0 0.0
        %3102 = vmatmul.mubr.f32.gmra.mrb[0].mxu0 %v2956
        %v3103 = vpop.f32.mrb[0].mxu0
        %v3104 = vadd.f32 0.0, %v3103
        %v3105 = vpop.f32.mrb[0].mxu0
        %3106 = vmatprep.mubr.f32.mxu0 0.0
        %3107 = vmatmul.mubr.f32.gmra.mrb[0].mxu0 %v2957
        %v3108 = vpop.f32.mrb[0].mxu0
        %v3109 = vadd.f32 0.0, %v3108
        %v3110 = vpop.f32.mrb[0].mxu0
        %3111 = vmatprep.mubr.f32.mxu0 0.0
        %3112 = vmatmul.mubr.f32.gmra.mrb[0].mxu0 %v2958
        %v3113 = vpop.f32.mrb[0].mxu0
        %v3114 = vadd.f32 0.0, %v3113
        %v3115 = vpop.f32.mrb[0].mxu0
        %3116 = vmatprep.mubr.f32.mxu0 0.0
        %3117 = vmatmul.mubr.f32.gmra.mrb[0].mxu0 %v2959
        %v3118 = vpop.f32.mrb[0].mxu0
        %v3119 = vadd.f32 0.0, %v3118
        %v3120 = vpop.f32.mrb[0].mxu0
        %3121 = vmatprep.mubr.f32.mxu0 0.0
        %3122 = vmatmul.mubr.f32.gmra.mrb[0].mxu0 %v2960
        %v3123 = vpop.f32.mrb[0].mxu0
        %v3124 = vadd.f32 0.0, %v3123
        %v3125 = vpop.f32.mrb[0].mxu0
        %3126 = vmatprep.mubr.f32.mxu0 0.0
        %3127 = vmatmul.mubr.f32.gmra.mrb[0].mxu0 %v2961
        %v3128 = vpop.f32.mrb[0].mxu0
        %v3129 = vadd.f32 0.0, %v3128
        %v3130 = vpop.f32.mrb[0].mxu0
        %3131 = vmatprep.mubr.f32.mxu0 0.0
        %3132 = vmatmul.mubr.f32.gmra.mrb[0].mxu0 %v2962
        %v3133 = vpop.f32.mrb[0].mxu0
        %v3134 = vadd.f32 0.0, %v3133
        %v3135 = vpop.f32.mrb[0].mxu0
        %3136 = vmatprep.mubr.f32.mxu0 0.0
        %3137 = vmatmul.mubr.f32.gmra.mrb[0].mxu0 %v2963
        %v3138 = vpop.f32.mrb[0].mxu0
        %v3139 = vadd.f32 0.0, %v3138
        %v3140 = vpop.f32.mrb[0].mxu0
        %3141 = vmatprep.mubr.f32.mxu0 0.0
        %3142 = vmatmul.mubr.f32.gmra.mrb[0].mxu0 %v2964
        %v3143 = vpop.f32.mrb[0].mxu0
        %v3144 = vadd.f32 0.0, %v3143
        %v3145 = vpop.f32.mrb[0].mxu0
        %3146 = vmatprep.mubr.f32.mxu0 0.0
        %3147 = vmatmul.mubr.f32.gmra.mrb[0].mxu0 %v2965
        %v3148 = vpop.f32.mrb[0].mxu0
        %v3149 = vadd.f32 0.0, %v3148
        %v3150 = vpop.f32.mrb[0].mxu0
        %3151 = vmatprep.mubr.f32.mxu0 0.0
        %3152 = vmatmul.mubr.f32.gmra.mrb[0].mxu0 %v2966
        %v3153 = vpop.f32.mrb[0].mxu0
        %v3154 = vadd.f32 0.0, %v3153
        %v3155 = vpop.f32.mrb[0].mxu0
        %3156 = vmatprep.mubr.f32.mxu0 0.0
        %3157 = vmatmul.mubr.f32.gmra.mrb[0].mxu0 %v2967
        %v3158 = vpop.f32.mrb[0].mxu0
        %v3159 = vadd.f32 0.0, %v3158
        %v3160 = vpop.f32.mrb[0].mxu0
        %3161 = vmatprep.mubr.f32.mxu0 0.0
        %3162 = vmatmul.mubr.f32.gmra.mrb[0].mxu0 %v2968
        %v3163 = vpop.f32.mrb[0].mxu0
        %v3164 = vadd.f32 0.0, %v3163
        %v3165 = vpop.f32.mrb[0].mxu0
        %3166 = vmatprep.mubr.f32.mxu0 0.0
        %3167 = vmatmul.mubr.f32.gmra.mrb[0].mxu0 %v2969
        %v3168 = vpop.f32.mrb[0].mxu0
        %v3169 = vadd.f32 0.0, %v3168
        %v3170 = vpop.f32.mrb[0].mxu0
        %3171 = vmatprep.mubr.f32.mxu0 0.0
        %3172 = vmatmul.mubr.f32.gmra.mrb[0].mxu0 %v2970
        %v3173 = vpop.f32.mrb[0].mxu0
        %v3174 = vadd.f32 0.0, %v3173
        %v3175 = vpop.f32.mrb[0].mxu0
        %3176 = vmatprep.mubr.f32.mxu0 0.0
        %3177 = vmatmul.mubr.f32.gmra.mrb[0].mxu0 %v2971
        %v3178 = vpop.f32.mrb[0].mxu0
        %v3179 = vadd.f32 0.0, %v3178
        %v3180 = vpop.f32.mrb[0].mxu0
        %3181 = vmatprep.mubr.f32.mxu0 0.0
        %3182 = vmatmul.mubr.f32.gmra.mrb[0].mxu0 %v2972
        %v3183 = vpop.f32.mrb[0].mxu0
        %v3184 = vadd.f32 0.0, %v3183
        %v3185 = vpop.f32.mrb[0].mxu0
        %3186 = vmatprep.mubr.f32.mxu0 0.0
        %3187 = vmatmul.mubr.f32.gmra.mrb[0].mxu0 %v2973
        %v3188 = vpop.f32.mrb[0].mxu0
        %v3189 = vadd.f32 0.0, %v3188
        %v3190 = vpop.f32.mrb[0].mxu0
        %3191 = vmatprep.mubr.f32.mxu0 0.0
        %3192 = vmatmul.mubr.f32.gmra.mrb[0].mxu0 %v2974
        %v3193 = vpop.f32.mrb[0].mxu0
        %v3194 = vadd.f32 0.0, %v3193
        %v3195 = vpop.f32.mrb[0].mxu0
        %3196 = vmatprep.mubr.f32.mxu0 0.0
        %3197 = vmatmul.mubr.f32.gmra.mrb[0].mxu0 %v2975
        %v3198 = vpop.f32.mrb[0].mxu0
        %v3199 = vadd.f32 0.0, %v3198
        %v3200 = vpop.f32.mrb[0].mxu0
        %3201 = vmatprep.mubr.f32.mxu0 0.0
        %3202 = vmatmul.mubr.f32.gmra.mrb[0].mxu0 %v2976
        %v3203 = vpop.f32.mrb[0].mxu0
        %v3204 = vadd.f32 0.0, %v3203
        %v3205 = vpop.f32.mrb[0].mxu0
        %3206 = vmatprep.mubr.f32.mxu0 0.0
        %3207 = vmatmul.mubr.f32.gmra.mrb[0].mxu0 %v2977
        %v3208 = vpop.f32.mrb[0].mxu0
        %v3209 = vadd.f32 0.0, %v3208
        %v3210 = vpop.f32.mrb[0].mxu0
        %3211 = vmatprep.mubr.f32.mxu0 0.0
        %3212 = vmatmul.mubr.f32.gmra.mrb[0].mxu0 %v2978
        %v3213 = vpop.f32.mrb[0].mxu0
        %v3214 = vadd.f32 0.0, %v3213
        %v3215 = vpop.f32.mrb[0].mxu0
        %3216 = vmatprep.mubr.f32.mxu0 0.0
        %3217 = vmatmul.mubr.f32.gmra.mrb[0].mxu0 %v2979
        %v3218 = vpop.f32.mrb[0].mxu0
        %v3219 = vadd.f32 0.0, %v3218
        %v3220 = vpop.f32.mrb[0].mxu0
        %3221 = vmatprep.mubr.f32.mxu0 0.0
        %3222 = vmatmul.mubr.f32.gmra.mrb[0].mxu0 %v2980
        %v3223 = vpop.f32.mrb[0].mxu0
        %v3224 = vadd.f32 0.0, %v3223
        %v3225 = vpop.f32.mrb[0].mxu0
        %3226 = vmatprep.mubr.f32.mxu0 0.0
        %3227 = vmatmul.mubr.f32.gmra.mrb[0].mxu0 %v2981
        %v3228 = vpop.f32.mrb[0].mxu0
        %v3229 = vadd.f32 0.0, %v3228
        %v3230 = vpop.f32.mrb[0].mxu0
        %3231 = vmatprep.mubr.f32.mxu0 0.0
        %3232 = vmatmul.mubr.f32.gmra.mrb[0].mxu0 %v2982
        %v3233 = vpop.f32.mrb[0].mxu0
        %v3234 = vadd.f32 0.0, %v3233
        %v3235 = vpop.f32.mrb[0].mxu0
        %3236 = vmatprep.mubr.f32.mxu0 0.0
        %3237 = vmatmul.mubr.f32.gmra.mrb[0].mxu0 %v2983
        %v3238 = vpop.f32.mrb[0].mxu0
        %v3239 = vadd.f32 0.0, %v3238
        %v3240 = vpop.f32.mrb[0].mxu0
        %3241 = vmatprep.mubr.f32.mxu0 0.0
        %3242 = vmatmul.mubr.f32.gmra.mrb[0].mxu0 %v2984
        %v3243 = vpop.f32.mrb[0].mxu0
        %v3244 = vadd.f32 0.0, %v3243
        %v3245 = vpop.f32.mrb[0].mxu0
        %3246 = vdwg.mxu0
        %v3247 = vld [vmem:[#allocation2] sm:$0xff]
        %v3248 = vld [vmem:[#allocation2 + $0x8] sm:$0xff]
        %v3249 = vld [vmem:[#allocation2 + $0x10] sm:$0xff]
        %v3250 = vld [vmem:[#allocation2 + $0x18] sm:$0xff]
        %v3251 = vld [vmem:[#allocation2 + $0x20] sm:$0xff]
        %v3252 = vld [vmem:[#allocation2 + $0x28] sm:$0xff]
        %v3253 = vld [vmem:[#allocation2 + $0x30] sm:$0xff]
        %v3254 = vld [vmem:[#allocation2 + $0x38] sm:$0xff]
        %v3255 = vld [vmem:[#allocation2 + $0x40] sm:$0xff]
        %v3256 = vld [vmem:[#allocation2 + $0x48] sm:$0xff]
        %v3257 = vld [vmem:[#allocation2 + $0x50] sm:$0xff]
        %v3258 = vld [vmem:[#allocation2 + $0x58] sm:$0xff]
        %v3259 = vld [vmem:[#allocation2 + $0x60] sm:$0xff]
        %v3260 = vld [vmem:[#allocation2 + $0x68] sm:$0xff]
        %v3261 = vld [vmem:[#allocation2 + $0x70] sm:$0xff]
        %v3262 = vld [vmem:[#allocation2 + $0x78] sm:$0xff]
        %v3263 = vld [vmem:[#allocation2 + $0x80] sm:$0xff]
        %v3264 = vld [vmem:[#allocation2 + $0x88] sm:$0xff]
        %v3265 = vld [vmem:[#allocation2 + $0x90] sm:$0xff]
        %v3266 = vld [vmem:[#allocation2 + $0x98] sm:$0xff]
        %v3267 = vld [vmem:[#allocation2 + $0xa0] sm:$0xff]
        %v3268 = vld [vmem:[#allocation2 + $0xa8] sm:$0xff]
        %v3269 = vld [vmem:[#allocation2 + $0xb0] sm:$0xff]
        %v3270 = vld [vmem:[#allocation2 + $0xb8] sm:$0xff]
        %v3271 = vld [vmem:[#allocation2 + $0xc0] sm:$0xff]
        %v3272 = vld [vmem:[#allocation2 + $0xc8] sm:$0xff]
        %v3273 = vld [vmem:[#allocation2 + $0xd0] sm:$0xff]
        %v3274 = vld [vmem:[#allocation2 + $0xd8] sm:$0xff]
        %v3275 = vld [vmem:[#allocation2 + $0xe0] sm:$0xff]
        %v3276 = vld [vmem:[#allocation2 + $0xe8] sm:$0xff]
        %v3277 = vld [vmem:[#allocation2 + $0xf0] sm:$0xff]
        %v3278 = vld [vmem:[#allocation2 + $0xf8] sm:$0xff]
        %v3279 = vld [vmem:[#allocation2 + $0x100] sm:$0xff]
        %v3280 = vld [vmem:[#allocation2 + $0x108] sm:$0xff]
        %v3281 = vld [vmem:[#allocation2 + $0x110] sm:$0xff]
        %v3282 = vld [vmem:[#allocation2 + $0x118] sm:$0xff]
        %v3283 = vadd.f32 %v3247, %v3069
        %v3284 = vadd.f32 %v3248, %v3074
        %v3285 = vadd.f32 %v3249, %v3079
        %v3286 = vadd.f32 %v3250, %v3084
        %v3287 = vadd.f32 %v3251, %v3089
        %v3288 = vadd.f32 %v3252, %v3094
        %v3289 = vadd.f32 %v3253, %v3099
        %v3290 = vadd.f32 %v3254, %v3104
        %v3291 = vadd.f32 %v3255, %v3109
        %v3292 = vadd.f32 %v3256, %v3114
        %v3293 = vadd.f32 %v3257, %v3119
        %v3294 = vadd.f32 %v3258, %v3124
        %v3295 = vadd.f32 %v3259, %v3129
        %v3296 = vadd.f32 %v3260, %v3134
        %v3297 = vadd.f32 %v3261, %v3139
        %v3298 = vadd.f32 %v3262, %v3144
        %v3299 = vadd.f32 %v3263, %v3149
        %v3300 = vadd.f32 %v3264, %v3154
        %v3301 = vadd.f32 %v3265, %v3159
        %v3302 = vadd.f32 %v3266, %v3164
        %v3303 = vadd.f32 %v3267, %v3169
        %v3304 = vadd.f32 %v3268, %v3174
        %v3305 = vadd.f32 %v3269, %v3179
        %v3306 = vadd.f32 %v3270, %v3184
        %v3307 = vadd.f32 %v3271, %v3189
        %v3308 = vadd.f32 %v3272, %v3194
        %v3309 = vadd.f32 %v3273, %v3199
        %v3310 = vadd.f32 %v3274, %v3204
        %v3311 = vadd.f32 %v3275, %v3209
        %v3312 = vadd.f32 %v3276, %v3214
        %v3313 = vadd.f32 %v3277, %v3219
        %v3314 = vadd.f32 %v3278, %v3224
        %v3315 = vadd.f32 %v3279, %v3229
        %v3316 = vadd.f32 %v3280, %v3234
        %v3317 = vadd.f32 %v3281, %v3239
        %v3318 = vadd.f32 %v3282, %v3244
        %3319 = vst [vmem:[#allocation2] sm:$0xff] %v3283
        %3320 = vst [vmem:[#allocation2 + $0x8] sm:$0xff] %v3284
        %3321 = vst [vmem:[#allocation2 + $0x10] sm:$0xff] %v3285
        %3322 = vst [vmem:[#allocation2 + $0x18] sm:$0xff] %v3286
        %3323 = vst [vmem:[#allocation2 + $0x20] sm:$0xff] %v3287
        %3324 = vst [vmem:[#allocation2 + $0x28] sm:$0xff] %v3288
        %3325 = vst [vmem:[#allocation2 + $0x30] sm:$0xff] %v3289
        %3326 = vst [vmem:[#allocation2 + $0x38] sm:$0xff] %v3290
        %3327 = vst [vmem:[#allocation2 + $0x40] sm:$0xff] %v3291
        %3328 = vst [vmem:[#allocation2 + $0x48] sm:$0xff] %v3292
        %3329 = vst [vmem:[#allocation2 + $0x50] sm:$0xff] %v3293
        %3330 = vst [vmem:[#allocation2 + $0x58] sm:$0xff] %v3294
        %3331 = vst [vmem:[#allocation2 + $0x60] sm:$0xff] %v3295
        %3332 = vst [vmem:[#allocation2 + $0x68] sm:$0xff] %v3296
        %3333 = vst [vmem:[#allocation2 + $0x70] sm:$0xff] %v3297
        %3334 = vst [vmem:[#allocation2 + $0x78] sm:$0xff] %v3298
        %3335 = vst [vmem:[#allocation2 + $0x80] sm:$0xff] %v3299
        %3336 = vst [vmem:[#allocation2 + $0x88] sm:$0xff] %v3300
        %3337 = vst [vmem:[#allocation2 + $0x90] sm:$0xff] %v3301
        %3338 = vst [vmem:[#allocation2 + $0x98] sm:$0xff] %v3302
        %3339 = vst [vmem:[#allocation2 + $0xa0] sm:$0xff] %v3303
        %3340 = vst [vmem:[#allocation2 + $0xa8] sm:$0xff] %v3304
        %3341 = vst [vmem:[#allocation2 + $0xb0] sm:$0xff] %v3305
        %3342 = vst [vmem:[#allocation2 + $0xb8] sm:$0xff] %v3306
        %3343 = vst [vmem:[#allocation2 + $0xc0] sm:$0xff] %v3307
        %3344 = vst [vmem:[#allocation2 + $0xc8] sm:$0xff] %v3308
        %3345 = vst [vmem:[#allocation2 + $0xd0] sm:$0xff] %v3309
        %3346 = vst [vmem:[#allocation2 + $0xd8] sm:$0xff] %v3310
        %3347 = vst [vmem:[#allocation2 + $0xe0] sm:$0xff] %v3311
        %3348 = vst [vmem:[#allocation2 + $0xe8] sm:$0xff] %v3312
        %3349 = vst [vmem:[#allocation2 + $0xf0] sm:$0xff] %v3313
        %3350 = vst [vmem:[#allocation2 + $0xf8] sm:$0xff] %v3314
        %3351 = vst [vmem:[#allocation2 + $0x100] sm:$0xff] %v3315
        %3352 = vst [vmem:[#allocation2 + $0x108] sm:$0xff] %v3316
        %3353 = vst [vmem:[#allocation2 + $0x110] sm:$0xff] %v3317
        %3354 = vst [vmem:[#allocation2 + $0x118] sm:$0xff] %v3318
        %v3355 = vld [vmem:[%s179 + $0x26] sm:$0xff]
        %v3356 = vld [vmem:[%s179 + $0x2e] sm:$0xff]
        %v3357 = vld [vmem:[%s179 + $0x36] sm:$0xff]
        %v3358 = vld [vmem:[%s179 + $0x3e] sm:$0xff]
        %v3359 = vld [vmem:[%s179 + $0x46] sm:$0xff]
        %v3360 = vld [vmem:[%s179 + $0x4e] sm:$0xff]
        %v3361 = vld [vmem:[%s179 + $0x56] sm:$0xff]
        %v3362 = vld [vmem:[%s179 + $0x5e] sm:$0xff]
        %v3363 = vld [vmem:[%s179 + $0x66] sm:$0xff]
        %v3364 = vld [vmem:[%s179 + $0x6e] sm:$0xff]
        %v3365 = vld [vmem:[%s179 + $0x76] sm:$0xff]
        %v3366 = vld [vmem:[%s179 + $0x7e] sm:$0xff]
        %v3367 = vld [vmem:[%s179 + $0x86] sm:$0xff]
        %v3368 = vld [vmem:[%s179 + $0x8e] sm:$0xff]
        %v3369 = vld [vmem:[%s179 + $0x96] sm:$0xff]
        %v3370 = vld [vmem:[%s179 + $0x9e] sm:$0xff]
        %v3371 = vld [vmem:[%s179 + $0xa6] sm:$0xff]
        %v3372 = vld [vmem:[%s179 + $0xae] sm:$0xff]
        %v3373 = vld [vmem:[%s179 + $0xb6] sm:$0xff]
        %v3374 = vld [vmem:[%s179 + $0xbe] sm:$0xff]
        %v3375 = vld [vmem:[%s179 + $0xc6] sm:$0xff]
        %v3376 = vld [vmem:[%s179 + $0xce] sm:$0xff]
        %v3377 = vld [vmem:[%s179 + $0xd6] sm:$0xff]
        %v3378 = vld [vmem:[%s179 + $0xde] sm:$0xff]
        %v3379 = vld [vmem:[%s179 + $0xe6] sm:$0xff]
        %v3380 = vld [vmem:[%s179 + $0xee] sm:$0xff]
        %v3381 = vld [vmem:[%s179 + $0xf6] sm:$0xff]
        %v3382 = vld [vmem:[%s179 + $0xfe] sm:$0xff]
        %v3383 = vld [vmem:[%s179 + $0x106] sm:$0xff]
        %v3384 = vld [vmem:[%s179 + $0x10e] sm:$0xff]
        %v3385 = vld [vmem:[%s179 + $0x116] sm:$0xff]
        %v3386 = vld [vmem:[%s179 + $0x11e] sm:$0xff]
        %v3387 = vld [vmem:[%s179 + $0x126] sm:$0xff]
        %v3388 = vld [vmem:[%s179 + $0x12e] sm:$0xff]
        %v3389 = vld [vmem:[%s179 + $0x136] sm:$0xff]
        %v3390 = vld [vmem:[%s179 + $0x13e] sm:$0xff]
        %s3391 = scalar_lea.vmem %s1, 1024
        %v3392 = vld [vmem:[%s3391] sm:$0xff]
        %v3393 = vld [vmem:[%s3391 + $0x8] sm:$0xff]
        %v3394 = vld [vmem:[%s3391 + $0x10] sm:$0xff]
        %v3395 = vld [vmem:[%s3391 + $0x18] sm:$0xff]
        %v3396 = vld [vmem:[%s3391 + $0x20] sm:$0xff]
        %v3397 = vld [vmem:[%s3391 + $0x28] sm:$0xff]
        %v3398 = vld [vmem:[%s3391 + $0x30] sm:$0xff]
        %v3399 = vld [vmem:[%s3391 + $0x38] sm:$0xff]
        %v3400 = vld [vmem:[%s3391 + $0x40] sm:$0xff]
        %v3401 = vld [vmem:[%s3391 + $0x48] sm:$0xff]
        %v3402 = vld [vmem:[%s3391 + $0x50] sm:$0xff]
        %v3403 = vld [vmem:[%s3391 + $0x58] sm:$0xff]
        %v3404 = vld [vmem:[%s3391 + $0x60] sm:$0xff]
        %v3405 = vld [vmem:[%s3391 + $0x68] sm:$0xff]
        %v3406 = vld [vmem:[%s3391 + $0x70] sm:$0xff]
        %v3407 = vld [vmem:[%s3391 + $0x78] sm:$0xff]
        %3408 = vmatprep.subr.mxu0 0.0
        %3409 = vmatpush1.msra.mxu0 %v3392
        %3410 = vmatprep.subr.mxu0 0.0
        %3411 = vmatpush1.msra.mxu0 %v3393
        %3412 = vmatprep.subr.mxu0 0.0
        %3413 = vmatpush1.msra.mxu0 %v3394
        %3414 = vmatprep.subr.mxu0 0.0
        %3415 = vmatpush1.msra.mxu0 %v3395
        %3416 = vmatprep.subr.mxu0 0.0
        %3417 = vmatpush1.msra.mxu0 %v3396
        %3418 = vmatprep.subr.mxu0 0.0
        %3419 = vmatpush1.msra.mxu0 %v3397
        %3420 = vmatprep.subr.mxu0 0.0
        %3421 = vmatpush1.msra.mxu0 %v3398
        %3422 = vmatprep.subr.mxu0 0.0
        %3423 = vmatpush1.msra.mxu0 %v3399
        %3424 = vmatprep.subr.mxu0 0.0
        %3425 = vmatpush1.msra.mxu0 %v3400
        %3426 = vmatprep.subr.mxu0 0.0
        %3427 = vmatpush1.msra.mxu0 %v3401
        %3428 = vmatprep.subr.mxu0 0.0
        %3429 = vmatpush1.msra.mxu0 %v3402
        %3430 = vmatprep.subr.mxu0 0.0
        %3431 = vmatpush1.msra.mxu0 %v3403
        %3432 = vmatprep.subr.mxu0 0.0
        %3433 = vmatpush1.msra.mxu0 %v3404
        %3434 = vmatprep.subr.mxu0 0.0
        %3435 = vmatpush1.msra.mxu0 %v3405
        %3436 = vmatprep.subr.mxu0 0.0
        %3437 = vmatpush1.msra.mxu0 %v3406
        %3438 = vmatprep.subr.mxu0 0.0
        %3439 = vmatpush1.msra.mxu0 %v3407
        %3440 = vmatprep.subr.mxu0 0.0
        %3441 = vmatpush1.msra.mxu0 0.0
        %3442 = vmatprep.subr.mxu0 0.0
        %3443 = vmatpush1.msra.mxu0 0.0
        %3444 = vmatprep.subr.mxu0 0.0
        %3445 = vmatpush1.msra.mxu0 0.0
        %3446 = vmatprep.subr.mxu0 0.0
        %3447 = vmatpush1.msra.mxu0 0.0
        %3448 = vmatprep.subr.mxu0 0.0
        %3449 = vmatpush1.msra.mxu0 0.0
        %3450 = vmatprep.subr.mxu0 0.0
        %3451 = vmatpush1.msra.mxu0 0.0
        %3452 = vmatprep.subr.mxu0 0.0
        %3453 = vmatpush1.msra.mxu0 0.0
        %3454 = vmatprep.subr.mxu0 0.0
        %3455 = vmatpush1.msra.mxu0 0.0
        %3456 = vmatprep.subr.mxu0 0.0
        %3457 = vmatpush1.msra.mxu0 0.0
        %3458 = vmatprep.subr.mxu0 0.0
        %3459 = vmatpush1.msra.mxu0 0.0
        %3460 = vmatprep.subr.mxu0 0.0
        %3461 = vmatpush1.msra.mxu0 0.0
        %3462 = vmatprep.subr.mxu0 0.0
        %3463 = vmatpush1.msra.mxu0 0.0
        %3464 = vmatprep.subr.mxu0 0.0
        %3465 = vmatpush1.msra.mxu0 0.0
        %3466 = vmatprep.subr.mxu0 0.0
        %3467 = vmatpush1.msra.mxu0 0.0
        %3468 = vmatprep.subr.mxu0 0.0
        %3469 = vmatpush1.msra.mxu0 0.0
        %3470 = vmatprep.subr.mxu0 0.0
        %3471 = vmatpush1.msra.mxu0 0.0
        %3472 = vmatprep.mubr.f32.mxu0 0.0
        %3473 = vmatmul.mubr.f32.gmra.mrb[0].mxu0 %v3355
        %v3474 = vpop.f32.mrb[0].mxu0
        %v3475 = vadd.f32 0.0, %v3474
        %v3476 = vpop.f32.mrb[0].mxu0
        %3477 = vmatprep.mubr.f32.mxu0 0.0
        %3478 = vmatmul.mubr.f32.gmra.mrb[0].mxu0 %v3356
        %v3479 = vpop.f32.mrb[0].mxu0
        %v3480 = vadd.f32 0.0, %v3479
        %v3481 = vpop.f32.mrb[0].mxu0
        %3482 = vmatprep.mubr.f32.mxu0 0.0
        %3483 = vmatmul.mubr.f32.gmra.mrb[0].mxu0 %v3357
        %v3484 = vpop.f32.mrb[0].mxu0
        %v3485 = vadd.f32 0.0, %v3484
        %v3486 = vpop.f32.mrb[0].mxu0
        %3487 = vmatprep.mubr.f32.mxu0 0.0
        %3488 = vmatmul.mubr.f32.gmra.mrb[0].mxu0 %v3358
        %v3489 = vpop.f32.mrb[0].mxu0
        %v3490 = vadd.f32 0.0, %v3489
        %v3491 = vpop.f32.mrb[0].mxu0
        %3492 = vmatprep.mubr.f32.mxu0 0.0
        %3493 = vmatmul.mubr.f32.gmra.mrb[0].mxu0 %v3359
        %v3494 = vpop.f32.mrb[0].mxu0
        %v3495 = vadd.f32 0.0, %v3494
        %v3496 = vpop.f32.mrb[0].mxu0
        %3497 = vmatprep.mubr.f32.mxu0 0.0
        %3498 = vmatmul.mubr.f32.gmra.mrb[0].mxu0 %v3360
        %v3499 = vpop.f32.mrb[0].mxu0
        %v3500 = vadd.f32 0.0, %v3499
        %v3501 = vpop.f32.mrb[0].mxu0
        %3502 = vmatprep.mubr.f32.mxu0 0.0
        %3503 = vmatmul.mubr.f32.gmra.mrb[0].mxu0 %v3361
        %v3504 = vpop.f32.mrb[0].mxu0
        %v3505 = vadd.f32 0.0, %v3504
        %v3506 = vpop.f32.mrb[0].mxu0
        %3507 = vmatprep.mubr.f32.mxu0 0.0
        %3508 = vmatmul.mubr.f32.gmra.mrb[0].mxu0 %v3362
        %v3509 = vpop.f32.mrb[0].mxu0
        %v3510 = vadd.f32 0.0, %v3509
        %v3511 = vpop.f32.mrb[0].mxu0
        %3512 = vmatprep.mubr.f32.mxu0 0.0
        %3513 = vmatmul.mubr.f32.gmra.mrb[0].mxu0 %v3363
        %v3514 = vpop.f32.mrb[0].mxu0
        %v3515 = vadd.f32 0.0, %v3514
        %v3516 = vpop.f32.mrb[0].mxu0
        %3517 = vmatprep.mubr.f32.mxu0 0.0
        %3518 = vmatmul.mubr.f32.gmra.mrb[0].mxu0 %v3364
        %v3519 = vpop.f32.mrb[0].mxu0
        %v3520 = vadd.f32 0.0, %v3519
        %v3521 = vpop.f32.mrb[0].mxu0
        %3522 = vmatprep.mubr.f32.mxu0 0.0
        %3523 = vmatmul.mubr.f32.gmra.mrb[0].mxu0 %v3365
        %v3524 = vpop.f32.mrb[0].mxu0
        %v3525 = vadd.f32 0.0, %v3524
        %v3526 = vpop.f32.mrb[0].mxu0
        %3527 = vmatprep.mubr.f32.mxu0 0.0
        %3528 = vmatmul.mubr.f32.gmra.mrb[0].mxu0 %v3366
        %v3529 = vpop.f32.mrb[0].mxu0
        %v3530 = vadd.f32 0.0, %v3529
        %v3531 = vpop.f32.mrb[0].mxu0
        %3532 = vmatprep.mubr.f32.mxu0 0.0
        %3533 = vmatmul.mubr.f32.gmra.mrb[0].mxu0 %v3367
        %v3534 = vpop.f32.mrb[0].mxu0
        %v3535 = vadd.f32 0.0, %v3534
        %v3536 = vpop.f32.mrb[0].mxu0
        %3537 = vmatprep.mubr.f32.mxu0 0.0
        %3538 = vmatmul.mubr.f32.gmra.mrb[0].mxu0 %v3368
        %v3539 = vpop.f32.mrb[0].mxu0
        %v3540 = vadd.f32 0.0, %v3539
        %v3541 = vpop.f32.mrb[0].mxu0
        %3542 = vmatprep.mubr.f32.mxu0 0.0
        %3543 = vmatmul.mubr.f32.gmra.mrb[0].mxu0 %v3369
        %v3544 = vpop.f32.mrb[0].mxu0
        %v3545 = vadd.f32 0.0, %v3544
        %v3546 = vpop.f32.mrb[0].mxu0
        %3547 = vmatprep.mubr.f32.mxu0 0.0
        %3548 = vmatmul.mubr.f32.gmra.mrb[0].mxu0 %v3370
        %v3549 = vpop.f32.mrb[0].mxu0
        %v3550 = vadd.f32 0.0, %v3549
        %v3551 = vpop.f32.mrb[0].mxu0
        %3552 = vmatprep.mubr.f32.mxu0 0.0
        %3553 = vmatmul.mubr.f32.gmra.mrb[0].mxu0 %v3371
        %v3554 = vpop.f32.mrb[0].mxu0
        %v3555 = vadd.f32 0.0, %v3554
        %v3556 = vpop.f32.mrb[0].mxu0
        %3557 = vmatprep.mubr.f32.mxu0 0.0
        %3558 = vmatmul.mubr.f32.gmra.mrb[0].mxu0 %v3372
        %v3559 = vpop.f32.mrb[0].mxu0
        %v3560 = vadd.f32 0.0, %v3559
        %v3561 = vpop.f32.mrb[0].mxu0
        %3562 = vmatprep.mubr.f32.mxu0 0.0
        %3563 = vmatmul.mubr.f32.gmra.mrb[0].mxu0 %v3373
        %v3564 = vpop.f32.mrb[0].mxu0
        %v3565 = vadd.f32 0.0, %v3564
        %v3566 = vpop.f32.mrb[0].mxu0
        %3567 = vmatprep.mubr.f32.mxu0 0.0
        %3568 = vmatmul.mubr.f32.gmra.mrb[0].mxu0 %v3374
        %v3569 = vpop.f32.mrb[0].mxu0
        %v3570 = vadd.f32 0.0, %v3569
        %v3571 = vpop.f32.mrb[0].mxu0
        %3572 = vmatprep.mubr.f32.mxu0 0.0
        %3573 = vmatmul.mubr.f32.gmra.mrb[0].mxu0 %v3375
        %v3574 = vpop.f32.mrb[0].mxu0
        %v3575 = vadd.f32 0.0, %v3574
        %v3576 = vpop.f32.mrb[0].mxu0
        %3577 = vmatprep.mubr.f32.mxu0 0.0
        %3578 = vmatmul.mubr.f32.gmra.mrb[0].mxu0 %v3376
        %v3579 = vpop.f32.mrb[0].mxu0
        %v3580 = vadd.f32 0.0, %v3579
        %v3581 = vpop.f32.mrb[0].mxu0
        %3582 = vmatprep.mubr.f32.mxu0 0.0
        %3583 = vmatmul.mubr.f32.gmra.mrb[0].mxu0 %v3377
        %v3584 = vpop.f32.mrb[0].mxu0
        %v3585 = vadd.f32 0.0, %v3584
        %v3586 = vpop.f32.mrb[0].mxu0
        %3587 = vmatprep.mubr.f32.mxu0 0.0
        %3588 = vmatmul.mubr.f32.gmra.mrb[0].mxu0 %v3378
        %v3589 = vpop.f32.mrb[0].mxu0
        %v3590 = vadd.f32 0.0, %v3589
        %v3591 = vpop.f32.mrb[0].mxu0
        %3592 = vmatprep.mubr.f32.mxu0 0.0
        %3593 = vmatmul.mubr.f32.gmra.mrb[0].mxu0 %v3379
        %v3594 = vpop.f32.mrb[0].mxu0
        %v3595 = vadd.f32 0.0, %v3594
        %v3596 = vpop.f32.mrb[0].mxu0
        %3597 = vmatprep.mubr.f32.mxu0 0.0
        %3598 = vmatmul.mubr.f32.gmra.mrb[0].mxu0 %v3380
        %v3599 = vpop.f32.mrb[0].mxu0
        %v3600 = vadd.f32 0.0, %v3599
        %v3601 = vpop.f32.mrb[0].mxu0
        %3602 = vmatprep.mubr.f32.mxu0 0.0
        %3603 = vmatmul.mubr.f32.gmra.mrb[0].mxu0 %v3381
        %v3604 = vpop.f32.mrb[0].mxu0
        %v3605 = vadd.f32 0.0, %v3604
        %v3606 = vpop.f32.mrb[0].mxu0
        %3607 = vmatprep.mubr.f32.mxu0 0.0
        %3608 = vmatmul.mubr.f32.gmra.mrb[0].mxu0 %v3382
        %v3609 = vpop.f32.mrb[0].mxu0
        %v3610 = vadd.f32 0.0, %v3609
        %v3611 = vpop.f32.mrb[0].mxu0
        %3612 = vmatprep.mubr.f32.mxu0 0.0
        %3613 = vmatmul.mubr.f32.gmra.mrb[0].mxu0 %v3383
        %v3614 = vpop.f32.mrb[0].mxu0
        %v3615 = vadd.f32 0.0, %v3614
        %v3616 = vpop.f32.mrb[0].mxu0
        %3617 = vmatprep.mubr.f32.mxu0 0.0
        %3618 = vmatmul.mubr.f32.gmra.mrb[0].mxu0 %v3384
        %v3619 = vpop.f32.mrb[0].mxu0
        %v3620 = vadd.f32 0.0, %v3619
        %v3621 = vpop.f32.mrb[0].mxu0
        %3622 = vmatprep.mubr.f32.mxu0 0.0
        %3623 = vmatmul.mubr.f32.gmra.mrb[0].mxu0 %v3385
        %v3624 = vpop.f32.mrb[0].mxu0
        %v3625 = vadd.f32 0.0, %v3624
        %v3626 = vpop.f32.mrb[0].mxu0
        %3627 = vmatprep.mubr.f32.mxu0 0.0
        %3628 = vmatmul.mubr.f32.gmra.mrb[0].mxu0 %v3386
        %v3629 = vpop.f32.mrb[0].mxu0
        %v3630 = vadd.f32 0.0, %v3629
        %v3631 = vpop.f32.mrb[0].mxu0
        %3632 = vmatprep.mubr.f32.mxu0 0.0
        %3633 = vmatmul.mubr.f32.gmra.mrb[0].mxu0 %v3387
        %v3634 = vpop.f32.mrb[0].mxu0
        %v3635 = vadd.f32 0.0, %v3634
        %v3636 = vpop.f32.mrb[0].mxu0
        %3637 = vmatprep.mubr.f32.mxu0 0.0
        %3638 = vmatmul.mubr.f32.gmra.mrb[0].mxu0 %v3388
        %v3639 = vpop.f32.mrb[0].mxu0
        %v3640 = vadd.f32 0.0, %v3639
        %v3641 = vpop.f32.mrb[0].mxu0
        %3642 = vmatprep.mubr.f32.mxu0 0.0
        %3643 = vmatmul.mubr.f32.gmra.mrb[0].mxu0 %v3389
        %v3644 = vpop.f32.mrb[0].mxu0
        %v3645 = vadd.f32 0.0, %v3644
        %v3646 = vpop.f32.mrb[0].mxu0
        %3647 = vmatprep.mubr.f32.mxu0 0.0
        %3648 = vmatmul.mubr.f32.gmra.mrb[0].mxu0 %v3390
        %v3649 = vpop.f32.mrb[0].mxu0
        %v3650 = vadd.f32 0.0, %v3649
        %v3651 = vpop.f32.mrb[0].mxu0
        %3652 = vdwg.mxu0
        %v3653 = vld [vmem:[#allocation2] sm:$0xff]
        %v3654 = vld [vmem:[#allocation2 + $0x8] sm:$0xff]
        %v3655 = vld [vmem:[#allocation2 + $0x10] sm:$0xff]
        %v3656 = vld [vmem:[#allocation2 + $0x18] sm:$0xff]
        %v3657 = vld [vmem:[#allocation2 + $0x20] sm:$0xff]
        %v3658 = vld [vmem:[#allocation2 + $0x28] sm:$0xff]
        %v3659 = vld [vmem:[#allocation2 + $0x30] sm:$0xff]
        %v3660 = vld [vmem:[#allocation2 + $0x38] sm:$0xff]
        %v3661 = vld [vmem:[#allocation2 + $0x40] sm:$0xff]
        %v3662 = vld [vmem:[#allocation2 + $0x48] sm:$0xff]
        %v3663 = vld [vmem:[#allocation2 + $0x50] sm:$0xff]
        %v3664 = vld [vmem:[#allocation2 + $0x58] sm:$0xff]
        %v3665 = vld [vmem:[#allocation2 + $0x60] sm:$0xff]
        %v3666 = vld [vmem:[#allocation2 + $0x68] sm:$0xff]
        %v3667 = vld [vmem:[#allocation2 + $0x70] sm:$0xff]
        %v3668 = vld [vmem:[#allocation2 + $0x78] sm:$0xff]
        %v3669 = vld [vmem:[#allocation2 + $0x80] sm:$0xff]
        %v3670 = vld [vmem:[#allocation2 + $0x88] sm:$0xff]
        %v3671 = vld [vmem:[#allocation2 + $0x90] sm:$0xff]
        %v3672 = vld [vmem:[#allocation2 + $0x98] sm:$0xff]
        %v3673 = vld [vmem:[#allocation2 + $0xa0] sm:$0xff]
        %v3674 = vld [vmem:[#allocation2 + $0xa8] sm:$0xff]
        %v3675 = vld [vmem:[#allocation2 + $0xb0] sm:$0xff]
        %v3676 = vld [vmem:[#allocation2 + $0xb8] sm:$0xff]
        %v3677 = vld [vmem:[#allocation2 + $0xc0] sm:$0xff]
        %v3678 = vld [vmem:[#allocation2 + $0xc8] sm:$0xff]
        %v3679 = vld [vmem:[#allocation2 + $0xd0] sm:$0xff]
        %v3680 = vld [vmem:[#allocation2 + $0xd8] sm:$0xff]
        %v3681 = vld [vmem:[#allocation2 + $0xe0] sm:$0xff]
        %v3682 = vld [vmem:[#allocation2 + $0xe8] sm:$0xff]
        %v3683 = vld [vmem:[#allocation2 + $0xf0] sm:$0xff]
        %v3684 = vld [vmem:[#allocation2 + $0xf8] sm:$0xff]
        %v3685 = vld [vmem:[#allocation2 + $0x100] sm:$0xff]
        %v3686 = vld [vmem:[#allocation2 + $0x108] sm:$0xff]
        %v3687 = vld [vmem:[#allocation2 + $0x110] sm:$0xff]
        %v3688 = vld [vmem:[#allocation2 + $0x118] sm:$0xff]
        %v3689 = vadd.f32 %v3653, %v3475
        %v3690 = vadd.f32 %v3654, %v3480
        %v3691 = vadd.f32 %v3655, %v3485
        %v3692 = vadd.f32 %v3656, %v3490
        %v3693 = vadd.f32 %v3657, %v3495
        %v3694 = vadd.f32 %v3658, %v3500
        %v3695 = vadd.f32 %v3659, %v3505
        %v3696 = vadd.f32 %v3660, %v3510
        %v3697 = vadd.f32 %v3661, %v3515
        %v3698 = vadd.f32 %v3662, %v3520
        %v3699 = vadd.f32 %v3663, %v3525
        %v3700 = vadd.f32 %v3664, %v3530
        %v3701 = vadd.f32 %v3665, %v3535
        %v3702 = vadd.f32 %v3666, %v3540
        %v3703 = vadd.f32 %v3667, %v3545
        %v3704 = vadd.f32 %v3668, %v3550
        %v3705 = vadd.f32 %v3669, %v3555
        %v3706 = vadd.f32 %v3670, %v3560
        %v3707 = vadd.f32 %v3671, %v3565
        %v3708 = vadd.f32 %v3672, %v3570
        %v3709 = vadd.f32 %v3673, %v3575
        %v3710 = vadd.f32 %v3674, %v3580
        %v3711 = vadd.f32 %v3675, %v3585
        %v3712 = vadd.f32 %v3676, %v3590
        %v3713 = vadd.f32 %v3677, %v3595
        %v3714 = vadd.f32 %v3678, %v3600
        %v3715 = vadd.f32 %v3679, %v3605
        %v3716 = vadd.f32 %v3680, %v3610
        %v3717 = vadd.f32 %v3681, %v3615
        %v3718 = vadd.f32 %v3682, %v3620
        %v3719 = vadd.f32 %v3683, %v3625
        %v3720 = vadd.f32 %v3684, %v3630
        %v3721 = vadd.f32 %v3685, %v3635
        %v3722 = vadd.f32 %v3686, %v3640
        %v3723 = vadd.f32 %v3687, %v3645
        %v3724 = vadd.f32 %v3688, %v3650
        %3725 = vst [vmem:[#allocation2] sm:$0xff] %v3689
        %3726 = vst [vmem:[#allocation2 + $0x8] sm:$0xff] %v3690
        %3727 = vst [vmem:[#allocation2 + $0x10] sm:$0xff] %v3691
        %3728 = vst [vmem:[#allocation2 + $0x18] sm:$0xff] %v3692
        %3729 = vst [vmem:[#allocation2 + $0x20] sm:$0xff] %v3693
        %3730 = vst [vmem:[#allocation2 + $0x28] sm:$0xff] %v3694
        %3731 = vst [vmem:[#allocation2 + $0x30] sm:$0xff] %v3695
        %3732 = vst [vmem:[#allocation2 + $0x38] sm:$0xff] %v3696
        %3733 = vst [vmem:[#allocation2 + $0x40] sm:$0xff] %v3697
        %3734 = vst [vmem:[#allocation2 + $0x48] sm:$0xff] %v3698
        %3735 = vst [vmem:[#allocation2 + $0x50] sm:$0xff] %v3699
        %3736 = vst [vmem:[#allocation2 + $0x58] sm:$0xff] %v3700
        %3737 = vst [vmem:[#allocation2 + $0x60] sm:$0xff] %v3701
        %3738 = vst [vmem:[#allocation2 + $0x68] sm:$0xff] %v3702
        %3739 = vst [vmem:[#allocation2 + $0x70] sm:$0xff] %v3703
        %3740 = vst [vmem:[#allocation2 + $0x78] sm:$0xff] %v3704
        %3741 = vst [vmem:[#allocation2 + $0x80] sm:$0xff] %v3705
        %3742 = vst [vmem:[#allocation2 + $0x88] sm:$0xff] %v3706
        %3743 = vst [vmem:[#allocation2 + $0x90] sm:$0xff] %v3707
        %3744 = vst [vmem:[#allocation2 + $0x98] sm:$0xff] %v3708
        %3745 = vst [vmem:[#allocation2 + $0xa0] sm:$0xff] %v3709
        %3746 = vst [vmem:[#allocation2 + $0xa8] sm:$0xff] %v3710
        %3747 = vst [vmem:[#allocation2 + $0xb0] sm:$0xff] %v3711
        %3748 = vst [vmem:[#allocation2 + $0xb8] sm:$0xff] %v3712
        %3749 = vst [vmem:[#allocation2 + $0xc0] sm:$0xff] %v3713
        %3750 = vst [vmem:[#allocation2 + $0xc8] sm:$0xff] %v3714
        %3751 = vst [vmem:[#allocation2 + $0xd0] sm:$0xff] %v3715
        %3752 = vst [vmem:[#allocation2 + $0xd8] sm:$0xff] %v3716
        %3753 = vst [vmem:[#allocation2 + $0xe0] sm:$0xff] %v3717
        %3754 = vst [vmem:[#allocation2 + $0xe8] sm:$0xff] %v3718
        %3755 = vst [vmem:[#allocation2 + $0xf0] sm:$0xff] %v3719
        %3756 = vst [vmem:[#allocation2 + $0xf8] sm:$0xff] %v3720
        %3757 = vst [vmem:[#allocation2 + $0x100] sm:$0xff] %v3721
        %3758 = vst [vmem:[#allocation2 + $0x108] sm:$0xff] %v3722
        %3759 = vst [vmem:[#allocation2 + $0x110] sm:$0xff] %v3723
        %3760 = vst [vmem:[#allocation2 + $0x118] sm:$0xff] %v3724
        %v3761 = vld [vmem:[#allocation2] sm:$0xff]
        %v3762 = vld [vmem:[#allocation2 + $0x8] sm:$0xff]
        %v3763 = vld [vmem:[#allocation2 + $0x10] sm:$0xff]
        %v3764 = vld [vmem:[#allocation2 + $0x18] sm:$0xff]
        %v3765 = vld [vmem:[#allocation2 + $0x20] sm:$0xff]
        %v3766 = vld [vmem:[#allocation2 + $0x28] sm:$0xff]
        %v3767 = vld [vmem:[#allocation2 + $0x30] sm:$0xff]
        %v3768 = vld [vmem:[#allocation2 + $0x38] sm:$0xff]
        %v3769 = vld [vmem:[#allocation2 + $0x40] sm:$0xff]
        %v3770 = vld [vmem:[#allocation2 + $0x48] sm:$0xff]
        %v3771 = vld [vmem:[#allocation2 + $0x50] sm:$0xff]
        %v3772 = vld [vmem:[#allocation2 + $0x58] sm:$0xff]
        %v3773 = vld [vmem:[#allocation2 + $0x60] sm:$0xff]
        %v3774 = vld [vmem:[#allocation2 + $0x68] sm:$0xff]
        %v3775 = vld [vmem:[#allocation2 + $0x70] sm:$0xff]
        %v3776 = vld [vmem:[#allocation2 + $0x78] sm:$0xff]
        %v3777 = vld [vmem:[#allocation2 + $0x80] sm:$0xff]
        %v3778 = vld [vmem:[#allocation2 + $0x88] sm:$0xff]
        %v3779 = vld [vmem:[#allocation2 + $0x90] sm:$0xff]
        %v3780 = vld [vmem:[#allocation2 + $0x98] sm:$0xff]
        %v3781 = vld [vmem:[#allocation2 + $0xa0] sm:$0xff]
        %v3782 = vld [vmem:[#allocation2 + $0xa8] sm:$0xff]
        %v3783 = vld [vmem:[#allocation2 + $0xb0] sm:$0xff]
        %v3784 = vld [vmem:[#allocation2 + $0xb8] sm:$0xff]
        %v3785 = vld [vmem:[#allocation2 + $0xc0] sm:$0xff]
        %v3786 = vld [vmem:[#allocation2 + $0xc8] sm:$0xff]
        %v3787 = vld [vmem:[#allocation2 + $0xd0] sm:$0xff]
        %v3788 = vld [vmem:[#allocation2 + $0xd8] sm:$0xff]
        %v3789 = vld [vmem:[#allocation2 + $0xe0] sm:$0xff]
        %v3790 = vld [vmem:[#allocation2 + $0xe8] sm:$0xff]
        %v3791 = vld [vmem:[#allocation2 + $0xf0] sm:$0xff]
        %v3792 = vld [vmem:[#allocation2 + $0xf8] sm:$0xff]
        %v3793 = vld [vmem:[#allocation2 + $0x100] sm:$0xff]
        %v3794 = vld [vmem:[#allocation2 + $0x108] sm:$0xff]
        %v3795 = vld [vmem:[#allocation2 + $0x110] sm:$0xff]
        %v3796 = vld [vmem:[#allocation2 + $0x118] sm:$0xff]
        %3797 = vst [vmem:[%s167] sm:$0xff] %v3761
        %3798 = vst [vmem:[%s167 + $0x8] sm:$0xff] %v3762
        %3799 = vst [vmem:[%s167 + $0x10] sm:$0xff] %v3763
        %3800 = vst [vmem:[%s167 + $0x18] sm:$0xff] %v3764
        %3801 = vst [vmem:[%s167 + $0x20] sm:$0xff] %v3765
        %3802 = vst [vmem:[%s167 + $0x28] sm:$0xff] %v3766
        %3803 = vst [vmem:[%s167 + $0x30] sm:$0xff] %v3767
        %3804 = vst [vmem:[%s167 + $0x38] sm:$0xff] %v3768
        %3805 = vst [vmem:[%s167 + $0x40] sm:$0xff] %v3769
        %3806 = vst [vmem:[%s167 + $0x48] sm:$0xff] %v3770
        %3807 = vst [vmem:[%s167 + $0x50] sm:$0xff] %v3771
        %3808 = vst [vmem:[%s167 + $0x58] sm:$0xff] %v3772
        %3809 = vst [vmem:[%s167 + $0x60] sm:$0xff] %v3773
        %3810 = vst [vmem:[%s167 + $0x68] sm:$0xff] %v3774
        %3811 = vst [vmem:[%s167 + $0x70] sm:$0xff] %v3775
        %3812 = vst [vmem:[%s167 + $0x78] sm:$0xff] %v3776
        %3813 = vst [vmem:[%s167 + $0x80] sm:$0xff] %v3777
        %3814 = vst [vmem:[%s167 + $0x88] sm:$0xff] %v3778
        %3815 = vst [vmem:[%s167 + $0x90] sm:$0xff] %v3779
        %3816 = vst [vmem:[%s167 + $0x98] sm:$0xff] %v3780
        %3817 = vst [vmem:[%s167 + $0xa0] sm:$0xff] %v3781
        %3818 = vst [vmem:[%s167 + $0xa8] sm:$0xff] %v3782
        %3819 = vst [vmem:[%s167 + $0xb0] sm:$0xff] %v3783
        %3820 = vst [vmem:[%s167 + $0xb8] sm:$0xff] %v3784
        %3821 = vst [vmem:[%s167 + $0xc0] sm:$0xff] %v3785
        %3822 = vst [vmem:[%s167 + $0xc8] sm:$0xff] %v3786
        %3823 = vst [vmem:[%s167 + $0xd0] sm:$0xff] %v3787
        %3824 = vst [vmem:[%s167 + $0xd8] sm:$0xff] %v3788
        %3825 = vst [vmem:[%s167 + $0xe0] sm:$0xff] %v3789
        %3826 = vst [vmem:[%s167 + $0xe8] sm:$0xff] %v3790
        %3827 = vst [vmem:[%s167 + $0xf0] sm:$0xff] %v3791
        %3828 = vst [vmem:[%s167 + $0xf8] sm:$0xff] %v3792
        %3829 = vst [vmem:[%s167 + $0x100] sm:$0xff] %v3793
        %3830 = vst [vmem:[%s167 + $0x108] sm:$0xff] %v3794
        %3831 = vst [vmem:[%s167 + $0x110] sm:$0xff] %v3795
        %3832 = vst [vmem:[%s167 + $0x118] sm:$0xff] %v3796
        %v3833 = vlaneseq
        %v3834 = vshrl.u32 %v3833, 7
        %v3835 = vadd.s32 %v3834, 8
        %v3836 = vadd.s32 %v3834, 16
        %v3837 = vadd.s32 %v3834, 24
        %v3838 = vadd.s32 %v3834, 32
        %v3839 = vadd.s32 %v3834, 40
        %v3840 = vadd.s32 %v3834, 48
        %v3841 = vadd.s32 %v3834, 56
        %v3842 = vadd.s32 %v3834, 64
        %v3843 = vadd.s32 %v3834, 72
        %v3844 = vadd.s32 %v3834, 80
        %v3845 = vadd.s32 %v3834, 88
        %v3846 = vadd.s32 %v3834, 96
        %v3847 = vadd.s32 %v3834, 104
        %v3848 = vadd.s32 %v3834, 112
        %v3849 = vadd.s32 %v3834, 120
        %v3850 = vadd.s32 %v3834, 128
        %v3851 = vadd.s32 %v3834, 136
        %v3852 = vadd.s32 %v3834, 144
        %v3853 = vadd.s32 %v3834, 152
        %v3854 = vadd.s32 %v3834, 160
        %v3855 = vadd.s32 %v3834, 168
        %v3856 = vadd.s32 %v3834, 176
        %v3857 = vadd.s32 %v3834, 184
        %v3858 = vadd.s32 %v3834, 192
        %v3859 = vadd.s32 %v3834, 200
        %v3860 = vadd.s32 %v3834, 208
        %v3861 = vadd.s32 %v3834, 216
        %v3862 = vadd.s32 %v3834, 224
        %v3863 = vadd.s32 %v3834, 232
        %v3864 = vadd.s32 %v3834, 240
        %v3865 = vadd.s32 %v3834, 248
        %v3866 = vadd.s32 %v3834, 256
        %v3867 = vadd.s32 %v3834, 264
        %v3868 = vadd.s32 %v3834, 272
        %v3869 = vadd.s32 %v3834, 280
        %vm3870 = vcmp.lt.s32.totalorder %v3834, 0
        %v3871 = vsub.s32 0, %v3834
        %v3872 = vsel %vm3870, %v3871, %v3834
        %v3873 = vmul.u32.u64.compose %v3872, 3817748708
        %v3874 = vextract.low.u32 %v3873
        %v3875 = vextract.high.u32 %v3873
        %v3876 = vshrl.u32 %v3875, 4
        %v3877 = vmul.u32 %v3876, 18
        %v3878 = vsub.s32 %v3872, %v3877
        %v3879 = vsub.s32 0, %v3878
        %v3880 = vsel %vm3870, %v3879, %v3878
        %vm3881 = vcmp.lt.s32.totalorder %v3835, 0
        %v3882 = vsub.s32 0, %v3835
        %v3883 = vsel %vm3881, %v3882, %v3835
        %v3884 = vmul.u32.u64.compose %v3883, 3817748708
        %v3885 = vextract.low.u32 %v3884
        %v3886 = vextract.high.u32 %v3884
        %v3887 = vshrl.u32 %v3886, 4
        %v3888 = vmul.u32 %v3887, 18
        %v3889 = vsub.s32 %v3883, %v3888
        %v3890 = vsub.s32 0, %v3889
        %v3891 = vsel %vm3881, %v3890, %v3889
        %vm3892 = vcmp.lt.s32.totalorder %v3836, 0
        %v3893 = vsub.s32 0, %v3836
        %v3894 = vsel %vm3892, %v3893, %v3836
        %v3895 = vmul.u32.u64.compose %v3894, 3817748708
        %v3896 = vextract.low.u32 %v3895
        %v3897 = vextract.high.u32 %v3895
        %v3898 = vshrl.u32 %v3897, 4
        %v3899 = vmul.u32 %v3898, 18
        %v3900 = vsub.s32 %v3894, %v3899
        %v3901 = vsub.s32 0, %v3900
        %v3902 = vsel %vm3892, %v3901, %v3900
        %vm3903 = vcmp.lt.s32.totalorder %v3837, 0
        %v3904 = vsub.s32 0, %v3837
        %v3905 = vsel %vm3903, %v3904, %v3837
        %v3906 = vmul.u32.u64.compose %v3905, 3817748708
        %v3907 = vextract.low.u32 %v3906
        %v3908 = vextract.high.u32 %v3906
        %v3909 = vshrl.u32 %v3908, 4
        %v3910 = vmul.u32 %v3909, 18
        %v3911 = vsub.s32 %v3905, %v3910
        %v3912 = vsub.s32 0, %v3911
        %v3913 = vsel %vm3903, %v3912, %v3911
        %vm3914 = vcmp.lt.s32.totalorder %v3838, 0
        %v3915 = vsub.s32 0, %v3838
        %v3916 = vsel %vm3914, %v3915, %v3838
        %v3917 = vmul.u32.u64.compose %v3916, 3817748708
        %v3918 = vextract.low.u32 %v3917
        %v3919 = vextract.high.u32 %v3917
        %v3920 = vshrl.u32 %v3919, 4
        %v3921 = vmul.u32 %v3920, 18
        %v3922 = vsub.s32 %v3916, %v3921
        %v3923 = vsub.s32 0, %v3922
        %v3924 = vsel %vm3914, %v3923, %v3922
        %vm3925 = vcmp.lt.s32.totalorder %v3839, 0
        %v3926 = vsub.s32 0, %v3839
        %v3927 = vsel %vm3925, %v3926, %v3839
        %v3928 = vmul.u32.u64.compose %v3927, 3817748708
        %v3929 = vextract.low.u32 %v3928
        %v3930 = vextract.high.u32 %v3928
        %v3931 = vshrl.u32 %v3930, 4
        %v3932 = vmul.u32 %v3931, 18
        %v3933 = vsub.s32 %v3927, %v3932
        %v3934 = vsub.s32 0, %v3933
        %v3935 = vsel %vm3925, %v3934, %v3933
        %vm3936 = vcmp.lt.s32.totalorder %v3840, 0
        %v3937 = vsub.s32 0, %v3840
        %v3938 = vsel %vm3936, %v3937, %v3840
        %v3939 = vmul.u32.u64.compose %v3938, 3817748708
        %v3940 = vextract.low.u32 %v3939
        %v3941 = vextract.high.u32 %v3939
        %v3942 = vshrl.u32 %v3941, 4
        %v3943 = vmul.u32 %v3942, 18
        %v3944 = vsub.s32 %v3938, %v3943
        %v3945 = vsub.s32 0, %v3944
        %v3946 = vsel %vm3936, %v3945, %v3944
        %vm3947 = vcmp.lt.s32.totalorder %v3841, 0
        %v3948 = vsub.s32 0, %v3841
        %v3949 = vsel %vm3947, %v3948, %v3841
        %v3950 = vmul.u32.u64.compose %v3949, 3817748708
        %v3951 = vextract.low.u32 %v3950
        %v3952 = vextract.high.u32 %v3950
        %v3953 = vshrl.u32 %v3952, 4
        %v3954 = vmul.u32 %v3953, 18
        %v3955 = vsub.s32 %v3949, %v3954
        %v3956 = vsub.s32 0, %v3955
        %v3957 = vsel %vm3947, %v3956, %v3955
        %vm3958 = vcmp.lt.s32.totalorder %v3842, 0
        %v3959 = vsub.s32 0, %v3842
        %v3960 = vsel %vm3958, %v3959, %v3842
        %v3961 = vmul.u32.u64.compose %v3960, 3817748708
        %v3962 = vextract.low.u32 %v3961
        %v3963 = vextract.high.u32 %v3961
        %v3964 = vshrl.u32 %v3963, 4
        %v3965 = vmul.u32 %v3964, 18
        %v3966 = vsub.s32 %v3960, %v3965
        %v3967 = vsub.s32 0, %v3966
        %v3968 = vsel %vm3958, %v3967, %v3966
        %vm3969 = vcmp.lt.s32.totalorder %v3843, 0
        %v3970 = vsub.s32 0, %v3843
        %v3971 = vsel %vm3969, %v3970, %v3843
        %v3972 = vmul.u32.u64.compose %v3971, 3817748708
        %v3973 = vextract.low.u32 %v3972
        %v3974 = vextract.high.u32 %v3972
        %v3975 = vshrl.u32 %v3974, 4
        %v3976 = vmul.u32 %v3975, 18
        %v3977 = vsub.s32 %v3971, %v3976
        %v3978 = vsub.s32 0, %v3977
        %v3979 = vsel %vm3969, %v3978, %v3977
        %vm3980 = vcmp.lt.s32.totalorder %v3844, 0
        %v3981 = vsub.s32 0, %v3844
        %v3982 = vsel %vm3980, %v3981, %v3844
        %v3983 = vmul.u32.u64.compose %v3982, 3817748708
        %v3984 = vextract.low.u32 %v3983
        %v3985 = vextract.high.u32 %v3983
        %v3986 = vshrl.u32 %v3985, 4
        %v3987 = vmul.u32 %v3986, 18
        %v3988 = vsub.s32 %v3982, %v3987
        %v3989 = vsub.s32 0, %v3988
        %v3990 = vsel %vm3980, %v3989, %v3988
        %vm3991 = vcmp.lt.s32.totalorder %v3845, 0
        %v3992 = vsub.s32 0, %v3845
        %v3993 = vsel %vm3991, %v3992, %v3845
        %v3994 = vmul.u32.u64.compose %v3993, 3817748708
        %v3995 = vextract.low.u32 %v3994
        %v3996 = vextract.high.u32 %v3994
        %v3997 = vshrl.u32 %v3996, 4
        %v3998 = vmul.u32 %v3997, 18
        %v3999 = vsub.s32 %v3993, %v3998
        %v4000 = vsub.s32 0, %v3999
        %v4001 = vsel %vm3991, %v4000, %v3999
        %vm4002 = vcmp.lt.s32.totalorder %v3846, 0
        %v4003 = vsub.s32 0, %v3846
        %v4004 = vsel %vm4002, %v4003, %v3846
        %v4005 = vmul.u32.u64.compose %v4004, 3817748708
        %v4006 = vextract.low.u32 %v4005
        %v4007 = vextract.high.u32 %v4005
        %v4008 = vshrl.u32 %v4007, 4
        %v4009 = vmul.u32 %v4008, 18
        %v4010 = vsub.s32 %v4004, %v4009
        %v4011 = vsub.s32 0, %v4010
        %v4012 = vsel %vm4002, %v4011, %v4010
        %vm4013 = vcmp.lt.s32.totalorder %v3847, 0
        %v4014 = vsub.s32 0, %v3847
        %v4015 = vsel %vm4013, %v4014, %v3847
        %v4016 = vmul.u32.u64.compose %v4015, 3817748708
        %v4017 = vextract.low.u32 %v4016
        %v4018 = vextract.high.u32 %v4016
        %v4019 = vshrl.u32 %v4018, 4
        %v4020 = vmul.u32 %v4019, 18
        %v4021 = vsub.s32 %v4015, %v4020
        %v4022 = vsub.s32 0, %v4021
        %v4023 = vsel %vm4013, %v4022, %v4021
        %vm4024 = vcmp.lt.s32.totalorder %v3848, 0
        %v4025 = vsub.s32 0, %v3848
        %v4026 = vsel %vm4024, %v4025, %v3848
        %v4027 = vmul.u32.u64.compose %v4026, 3817748708
        %v4028 = vextract.low.u32 %v4027
        %v4029 = vextract.high.u32 %v4027
        %v4030 = vshrl.u32 %v4029, 4
        %v4031 = vmul.u32 %v4030, 18
        %v4032 = vsub.s32 %v4026, %v4031
        %v4033 = vsub.s32 0, %v4032
        %v4034 = vsel %vm4024, %v4033, %v4032
        %vm4035 = vcmp.lt.s32.totalorder %v3849, 0
        %v4036 = vsub.s32 0, %v3849
        %v4037 = vsel %vm4035, %v4036, %v3849
        %v4038 = vmul.u32.u64.compose %v4037, 3817748708
        %v4039 = vextract.low.u32 %v4038
        %v4040 = vextract.high.u32 %v4038
        %v4041 = vshrl.u32 %v4040, 4
        %v4042 = vmul.u32 %v4041, 18
        %v4043 = vsub.s32 %v4037, %v4042
        %v4044 = vsub.s32 0, %v4043
        %v4045 = vsel %vm4035, %v4044, %v4043
        %vm4046 = vcmp.lt.s32.totalorder %v3850, 0
        %v4047 = vsub.s32 0, %v3850
        %v4048 = vsel %vm4046, %v4047, %v3850
        %v4049 = vmul.u32.u64.compose %v4048, 3817748708
        %v4050 = vextract.low.u32 %v4049
        %v4051 = vextract.high.u32 %v4049
        %v4052 = vshrl.u32 %v4051, 4
        %v4053 = vmul.u32 %v4052, 18
        %v4054 = vsub.s32 %v4048, %v4053
        %v4055 = vsub.s32 0, %v4054
        %v4056 = vsel %vm4046, %v4055, %v4054
        %vm4057 = vcmp.lt.s32.totalorder %v3851, 0
        %v4058 = vsub.s32 0, %v3851
        %v4059 = vsel %vm4057, %v4058, %v3851
        %v4060 = vmul.u32.u64.compose %v4059, 3817748708
        %v4061 = vextract.low.u32 %v4060
        %v4062 = vextract.high.u32 %v4060
        %v4063 = vshrl.u32 %v4062, 4
        %v4064 = vmul.u32 %v4063, 18
        %v4065 = vsub.s32 %v4059, %v4064
        %v4066 = vsub.s32 0, %v4065
        %v4067 = vsel %vm4057, %v4066, %v4065
        %vm4068 = vcmp.lt.s32.totalorder %v3852, 0
        %v4069 = vsub.s32 0, %v3852
        %v4070 = vsel %vm4068, %v4069, %v3852
        %v4071 = vmul.u32.u64.compose %v4070, 3817748708
        %v4072 = vextract.low.u32 %v4071
        %v4073 = vextract.high.u32 %v4071
        %v4074 = vshrl.u32 %v4073, 4
        %v4075 = vmul.u32 %v4074, 18
        %v4076 = vsub.s32 %v4070, %v4075
        %v4077 = vsub.s32 0, %v4076
        %v4078 = vsel %vm4068, %v4077, %v4076
        %vm4079 = vcmp.lt.s32.totalorder %v3853, 0
        %v4080 = vsub.s32 0, %v3853
        %v4081 = vsel %vm4079, %v4080, %v3853
        %v4082 = vmul.u32.u64.compose %v4081, 3817748708
        %v4083 = vextract.low.u32 %v4082
        %v4084 = vextract.high.u32 %v4082
        %v4085 = vshrl.u32 %v4084, 4
        %v4086 = vmul.u32 %v4085, 18
        %v4087 = vsub.s32 %v4081, %v4086
        %v4088 = vsub.s32 0, %v4087
        %v4089 = vsel %vm4079, %v4088, %v4087
        %vm4090 = vcmp.lt.s32.totalorder %v3854, 0
        %v4091 = vsub.s32 0, %v3854
        %v4092 = vsel %vm4090, %v4091, %v3854
        %v4093 = vmul.u32.u64.compose %v4092, 3817748708
        %v4094 = vextract.low.u32 %v4093
        %v4095 = vextract.high.u32 %v4093
        %v4096 = vshrl.u32 %v4095, 4
        %v4097 = vmul.u32 %v4096, 18
        %v4098 = vsub.s32 %v4092, %v4097
        %v4099 = vsub.s32 0, %v4098
        %v4100 = vsel %vm4090, %v4099, %v4098
        %vm4101 = vcmp.lt.s32.totalorder %v3855, 0
        %v4102 = vsub.s32 0, %v3855
        %v4103 = vsel %vm4101, %v4102, %v3855
        %v4104 = vmul.u32.u64.compose %v4103, 3817748708
        %v4105 = vextract.low.u32 %v4104
        %v4106 = vextract.high.u32 %v4104
        %v4107 = vshrl.u32 %v4106, 4
        %v4108 = vmul.u32 %v4107, 18
        %v4109 = vsub.s32 %v4103, %v4108
        %v4110 = vsub.s32 0, %v4109
        %v4111 = vsel %vm4101, %v4110, %v4109
        %vm4112 = vcmp.lt.s32.totalorder %v3856, 0
        %v4113 = vsub.s32 0, %v3856
        %v4114 = vsel %vm4112, %v4113, %v3856
        %v4115 = vmul.u32.u64.compose %v4114, 3817748708
        %v4116 = vextract.low.u32 %v4115
        %v4117 = vextract.high.u32 %v4115
        %v4118 = vshrl.u32 %v4117, 4
        %v4119 = vmul.u32 %v4118, 18
        %v4120 = vsub.s32 %v4114, %v4119
        %v4121 = vsub.s32 0, %v4120
        %v4122 = vsel %vm4112, %v4121, %v4120
        %vm4123 = vcmp.lt.s32.totalorder %v3857, 0
        %v4124 = vsub.s32 0, %v3857
        %v4125 = vsel %vm4123, %v4124, %v3857
        %v4126 = vmul.u32.u64.compose %v4125, 3817748708
        %v4127 = vextract.low.u32 %v4126
        %v4128 = vextract.high.u32 %v4126
        %v4129 = vshrl.u32 %v4128, 4
        %v4130 = vmul.u32 %v4129, 18
        %v4131 = vsub.s32 %v4125, %v4130
        %v4132 = vsub.s32 0, %v4131
        %v4133 = vsel %vm4123, %v4132, %v4131
        %vm4134 = vcmp.lt.s32.totalorder %v3858, 0
        %v4135 = vsub.s32 0, %v3858
        %v4136 = vsel %vm4134, %v4135, %v3858
        %v4137 = vmul.u32.u64.compose %v4136, 3817748708
        %v4138 = vextract.low.u32 %v4137
        %v4139 = vextract.high.u32 %v4137
        %v4140 = vshrl.u32 %v4139, 4
        %v4141 = vmul.u32 %v4140, 18
        %v4142 = vsub.s32 %v4136, %v4141
        %v4143 = vsub.s32 0, %v4142
        %v4144 = vsel %vm4134, %v4143, %v4142
        %vm4145 = vcmp.lt.s32.totalorder %v3859, 0
        %v4146 = vsub.s32 0, %v3859
        %v4147 = vsel %vm4145, %v4146, %v3859
        %v4148 = vmul.u32.u64.compose %v4147, 3817748708
        %v4149 = vextract.low.u32 %v4148
        %v4150 = vextract.high.u32 %v4148
        %v4151 = vshrl.u32 %v4150, 4
        %v4152 = vmul.u32 %v4151, 18
        %v4153 = vsub.s32 %v4147, %v4152
        %v4154 = vsub.s32 0, %v4153
        %v4155 = vsel %vm4145, %v4154, %v4153
        %vm4156 = vcmp.lt.s32.totalorder %v3860, 0
        %v4157 = vsub.s32 0, %v3860
        %v4158 = vsel %vm4156, %v4157, %v3860
        %v4159 = vmul.u32.u64.compose %v4158, 3817748708
        %v4160 = vextract.low.u32 %v4159
        %v4161 = vextract.high.u32 %v4159
        %v4162 = vshrl.u32 %v4161, 4
        %v4163 = vmul.u32 %v4162, 18
        %v4164 = vsub.s32 %v4158, %v4163
        %v4165 = vsub.s32 0, %v4164
        %v4166 = vsel %vm4156, %v4165, %v4164
        %vm4167 = vcmp.lt.s32.totalorder %v3861, 0
        %v4168 = vsub.s32 0, %v3861
        %v4169 = vsel %vm4167, %v4168, %v3861
        %v4170 = vmul.u32.u64.compose %v4169, 3817748708
        %v4171 = vextract.low.u32 %v4170
        %v4172 = vextract.high.u32 %v4170
        %v4173 = vshrl.u32 %v4172, 4
        %v4174 = vmul.u32 %v4173, 18
        %v4175 = vsub.s32 %v4169, %v4174
        %v4176 = vsub.s32 0, %v4175
        %v4177 = vsel %vm4167, %v4176, %v4175
        %vm4178 = vcmp.lt.s32.totalorder %v3862, 0
        %v4179 = vsub.s32 0, %v3862
        %v4180 = vsel %vm4178, %v4179, %v3862
        %v4181 = vmul.u32.u64.compose %v4180, 3817748708
        %v4182 = vextract.low.u32 %v4181
        %v4183 = vextract.high.u32 %v4181
        %v4184 = vshrl.u32 %v4183, 4
        %v4185 = vmul.u32 %v4184, 18
        %v4186 = vsub.s32 %v4180, %v4185
        %v4187 = vsub.s32 0, %v4186
        %v4188 = vsel %vm4178, %v4187, %v4186
        %vm4189 = vcmp.lt.s32.totalorder %v3863, 0
        %v4190 = vsub.s32 0, %v3863
        %v4191 = vsel %vm4189, %v4190, %v3863
        %v4192 = vmul.u32.u64.compose %v4191, 3817748708
        %v4193 = vextract.low.u32 %v4192
        %v4194 = vextract.high.u32 %v4192
        %v4195 = vshrl.u32 %v4194, 4
        %v4196 = vmul.u32 %v4195, 18
        %v4197 = vsub.s32 %v4191, %v4196
        %v4198 = vsub.s32 0, %v4197
        %v4199 = vsel %vm4189, %v4198, %v4197
        %vm4200 = vcmp.lt.s32.totalorder %v3864, 0
        %v4201 = vsub.s32 0, %v3864
        %v4202 = vsel %vm4200, %v4201, %v3864
        %v4203 = vmul.u32.u64.compose %v4202, 3817748708
        %v4204 = vextract.low.u32 %v4203
        %v4205 = vextract.high.u32 %v4203
        %v4206 = vshrl.u32 %v4205, 4
        %v4207 = vmul.u32 %v4206, 18
        %v4208 = vsub.s32 %v4202, %v4207
        %v4209 = vsub.s32 0, %v4208
        %v4210 = vsel %vm4200, %v4209, %v4208
        %vm4211 = vcmp.lt.s32.totalorder %v3865, 0
        %v4212 = vsub.s32 0, %v3865
        %v4213 = vsel %vm4211, %v4212, %v3865
        %v4214 = vmul.u32.u64.compose %v4213, 3817748708
        %v4215 = vextract.low.u32 %v4214
        %v4216 = vextract.high.u32 %v4214
        %v4217 = vshrl.u32 %v4216, 4
        %v4218 = vmul.u32 %v4217, 18
        %v4219 = vsub.s32 %v4213, %v4218
        %v4220 = vsub.s32 0, %v4219
        %v4221 = vsel %vm4211, %v4220, %v4219
        %vm4222 = vcmp.lt.s32.totalorder %v3866, 0
        %v4223 = vsub.s32 0, %v3866
        %v4224 = vsel %vm4222, %v4223, %v3866
        %v4225 = vmul.u32.u64.compose %v4224, 3817748708
        %v4226 = vextract.low.u32 %v4225
        %v4227 = vextract.high.u32 %v4225
        %v4228 = vshrl.u32 %v4227, 4
        %v4229 = vmul.u32 %v4228, 18
        %v4230 = vsub.s32 %v4224, %v4229
        %v4231 = vsub.s32 0, %v4230
        %v4232 = vsel %vm4222, %v4231, %v4230
        %vm4233 = vcmp.lt.s32.totalorder %v3867, 0
        %v4234 = vsub.s32 0, %v3867
        %v4235 = vsel %vm4233, %v4234, %v3867
        %v4236 = vmul.u32.u64.compose %v4235, 3817748708
        %v4237 = vextract.low.u32 %v4236
        %v4238 = vextract.high.u32 %v4236
        %v4239 = vshrl.u32 %v4238, 4
        %v4240 = vmul.u32 %v4239, 18
        %v4241 = vsub.s32 %v4235, %v4240
        %v4242 = vsub.s32 0, %v4241
        %v4243 = vsel %vm4233, %v4242, %v4241
        %vm4244 = vcmp.lt.s32.totalorder %v3868, 0
        %v4245 = vsub.s32 0, %v3868
        %v4246 = vsel %vm4244, %v4245, %v3868
        %v4247 = vmul.u32.u64.compose %v4246, 3817748708
        %v4248 = vextract.low.u32 %v4247
        %v4249 = vextract.high.u32 %v4247
        %v4250 = vshrl.u32 %v4249, 4
        %v4251 = vmul.u32 %v4250, 18
        %v4252 = vsub.s32 %v4246, %v4251
        %v4253 = vsub.s32 0, %v4252
        %v4254 = vsel %vm4244, %v4253, %v4252
        %vm4255 = vcmp.lt.s32.totalorder %v3869, 0
        %v4256 = vsub.s32 0, %v3869
        %v4257 = vsel %vm4255, %v4256, %v3869
        %v4258 = vmul.u32.u64.compose %v4257, 3817748708
        %v4259 = vextract.low.u32 %v4258
        %v4260 = vextract.high.u32 %v4258
        %v4261 = vshrl.u32 %v4260, 4
        %v4262 = vmul.u32 %v4261, 18
        %v4263 = vsub.s32 %v4257, %v4262
        %v4264 = vsub.s32 0, %v4263
        %v4265 = vsel %vm4255, %v4264, %v4263
        %vm4266 = vcmp.ne.s32.totalorder %v3880, 0
        %vm4267 = vcmp.ne.s32.totalorder %v3891, 0
        %vm4268 = vcmp.ne.s32.totalorder %v3902, 0
        %vm4269 = vcmp.ne.s32.totalorder %v3913, 0
        %vm4270 = vcmp.ne.s32.totalorder %v3924, 0
        %vm4271 = vcmp.ne.s32.totalorder %v3935, 0
        %vm4272 = vcmp.ne.s32.totalorder %v3946, 0
        %vm4273 = vcmp.ne.s32.totalorder %v3957, 0
        %vm4274 = vcmp.ne.s32.totalorder %v3968, 0
        %vm4275 = vcmp.ne.s32.totalorder %v3979, 0
        %vm4276 = vcmp.ne.s32.totalorder %v3990, 0
        %vm4277 = vcmp.ne.s32.totalorder %v4001, 0
        %vm4278 = vcmp.ne.s32.totalorder %v4012, 0
        %vm4279 = vcmp.ne.s32.totalorder %v4023, 0
        %vm4280 = vcmp.ne.s32.totalorder %v4034, 0
        %vm4281 = vcmp.ne.s32.totalorder %v4045, 0
        %vm4282 = vcmp.ne.s32.totalorder %v4056, 0
        %vm4283 = vcmp.ne.s32.totalorder %v4067, 0
        %vm4284 = vcmp.ne.s32.totalorder %v4078, 0
        %vm4285 = vcmp.ne.s32.totalorder %v4089, 0
        %vm4286 = vcmp.ne.s32.totalorder %v4100, 0
        %vm4287 = vcmp.ne.s32.totalorder %v4111, 0
        %vm4288 = vcmp.ne.s32.totalorder %v4122, 0
        %vm4289 = vcmp.ne.s32.totalorder %v4133, 0
        %vm4290 = vcmp.ne.s32.totalorder %v4144, 0
        %vm4291 = vcmp.ne.s32.totalorder %v4155, 0
        %vm4292 = vcmp.ne.s32.totalorder %v4166, 0
        %vm4293 = vcmp.ne.s32.totalorder %v4177, 0
        %vm4294 = vcmp.ne.s32.totalorder %v4188, 0
        %vm4295 = vcmp.ne.s32.totalorder %v4199, 0
        %vm4296 = vcmp.ne.s32.totalorder %v4210, 0
        %vm4297 = vcmp.ne.s32.totalorder %v4221, 0
        %vm4298 = vcmp.ne.s32.totalorder %v4232, 0
        %vm4299 = vcmp.ne.s32.totalorder %v4243, 0
        %vm4300 = vcmp.ne.s32.totalorder %v4254, 0
        %vm4301 = vcmp.ne.s32.totalorder %v4265, 0
        %vm4302 = vcmp.lt.s32.totalorder %v3880, 0
        %vm4303 = vcmp.lt.s32.totalorder %v3891, 0
        %vm4304 = vcmp.lt.s32.totalorder %v3902, 0
        %vm4305 = vcmp.lt.s32.totalorder %v3913, 0
        %vm4306 = vcmp.lt.s32.totalorder %v3924, 0
        %vm4307 = vcmp.lt.s32.totalorder %v3935, 0
        %vm4308 = vcmp.lt.s32.totalorder %v3946, 0
        %vm4309 = vcmp.lt.s32.totalorder %v3957, 0
        %vm4310 = vcmp.lt.s32.totalorder %v3968, 0
        %vm4311 = vcmp.lt.s32.totalorder %v3979, 0
        %vm4312 = vcmp.lt.s32.totalorder %v3990, 0
        %vm4313 = vcmp.lt.s32.totalorder %v4001, 0
        %vm4314 = vcmp.lt.s32.totalorder %v4012, 0
        %vm4315 = vcmp.lt.s32.totalorder %v4023, 0
        %vm4316 = vcmp.lt.s32.totalorder %v4034, 0
        %vm4317 = vcmp.lt.s32.totalorder %v4045, 0
        %vm4318 = vcmp.lt.s32.totalorder %v4056, 0
        %vm4319 = vcmp.lt.s32.totalorder %v4067, 0
        %vm4320 = vcmp.lt.s32.totalorder %v4078, 0
        %vm4321 = vcmp.lt.s32.totalorder %v4089, 0
        %vm4322 = vcmp.lt.s32.totalorder %v4100, 0
        %vm4323 = vcmp.lt.s32.totalorder %v4111, 0
        %vm4324 = vcmp.lt.s32.totalorder %v4122, 0
        %vm4325 = vcmp.lt.s32.totalorder %v4133, 0
        %vm4326 = vcmp.lt.s32.totalorder %v4144, 0
        %vm4327 = vcmp.lt.s32.totalorder %v4155, 0
        %vm4328 = vcmp.lt.s32.totalorder %v4166, 0
        %vm4329 = vcmp.lt.s32.totalorder %v4177, 0
        %vm4330 = vcmp.lt.s32.totalorder %v4188, 0
        %vm4331 = vcmp.lt.s32.totalorder %v4199, 0
        %vm4332 = vcmp.lt.s32.totalorder %v4210, 0
        %vm4333 = vcmp.lt.s32.totalorder %v4221, 0
        %vm4334 = vcmp.lt.s32.totalorder %v4232, 0
        %vm4335 = vcmp.lt.s32.totalorder %v4243, 0
        %vm4336 = vcmp.lt.s32.totalorder %v4254, 0
        %vm4337 = vcmp.lt.s32.totalorder %v4265, 0
        %vm4338 = vmand %vm4302, %vm4266
        %vm4339 = vmand %vm4303, %vm4267
        %vm4340 = vmand %vm4304, %vm4268
        %vm4341 = vmand %vm4305, %vm4269
        %vm4342 = vmand %vm4306, %vm4270
        %vm4343 = vmand %vm4307, %vm4271
        %vm4344 = vmand %vm4308, %vm4272
        %vm4345 = vmand %vm4309, %vm4273
        %vm4346 = vmand %vm4310, %vm4274
        %vm4347 = vmand %vm4311, %vm4275
        %vm4348 = vmand %vm4312, %vm4276
        %vm4349 = vmand %vm4313, %vm4277
        %vm4350 = vmand %vm4314, %vm4278
        %vm4351 = vmand %vm4315, %vm4279
        %vm4352 = vmand %vm4316, %vm4280
        %vm4353 = vmand %vm4317, %vm4281
        %vm4354 = vmand %vm4318, %vm4282
        %vm4355 = vmand %vm4319, %vm4283
        %vm4356 = vmand %vm4320, %vm4284
        %vm4357 = vmand %vm4321, %vm4285
        %vm4358 = vmand %vm4322, %vm4286
        %vm4359 = vmand %vm4323, %vm4287
        %vm4360 = vmand %vm4324, %vm4288
        %vm4361 = vmand %vm4325, %vm4289
        %vm4362 = vmand %vm4326, %vm4290
        %vm4363 = vmand %vm4327, %vm4291
        %vm4364 = vmand %vm4328, %vm4292
        %vm4365 = vmand %vm4329, %vm4293
        %vm4366 = vmand %vm4330, %vm4294
        %vm4367 = vmand %vm4331, %vm4295
        %vm4368 = vmand %vm4332, %vm4296
        %vm4369 = vmand %vm4333, %vm4297
        %vm4370 = vmand %vm4334, %vm4298
        %vm4371 = vmand %vm4335, %vm4299
        %vm4372 = vmand %vm4336, %vm4300
        %vm4373 = vmand %vm4337, %vm4301
        %v4374 = vadd.s32 %v3880, 18
        %v4375 = vadd.s32 %v3891, 18
        %v4376 = vadd.s32 %v3902, 18
        %v4377 = vadd.s32 %v3913, 18
        %v4378 = vadd.s32 %v3924, 18
        %v4379 = vadd.s32 %v3935, 18
        %v4380 = vadd.s32 %v3946, 18
        %v4381 = vadd.s32 %v3957, 18
        %v4382 = vadd.s32 %v3968, 18
        %v4383 = vadd.s32 %v3979, 18
        %v4384 = vadd.s32 %v3990, 18
        %v4385 = vadd.s32 %v4001, 18
        %v4386 = vadd.s32 %v4012, 18
        %v4387 = vadd.s32 %v4023, 18
        %v4388 = vadd.s32 %v4034, 18
        %v4389 = vadd.s32 %v4045, 18
        %v4390 = vadd.s32 %v4056, 18
        %v4391 = vadd.s32 %v4067, 18
        %v4392 = vadd.s32 %v4078, 18
        %v4393 = vadd.s32 %v4089, 18
        %v4394 = vadd.s32 %v4100, 18
        %v4395 = vadd.s32 %v4111, 18
        %v4396 = vadd.s32 %v4122, 18
        %v4397 = vadd.s32 %v4133, 18
        %v4398 = vadd.s32 %v4144, 18
        %v4399 = vadd.s32 %v4155, 18
        %v4400 = vadd.s32 %v4166, 18
        %v4401 = vadd.s32 %v4177, 18
        %v4402 = vadd.s32 %v4188, 18
        %v4403 = vadd.s32 %v4199, 18
        %v4404 = vadd.s32 %v4210, 18
        %v4405 = vadd.s32 %v4221, 18
        %v4406 = vadd.s32 %v4232, 18
        %v4407 = vadd.s32 %v4243, 18
        %v4408 = vadd.s32 %v4254, 18
        %v4409 = vadd.s32 %v4265, 18
        %v4410 = vsel %vm4338, %v4374, %v3880
        %v4411 = vsel %vm4339, %v4375, %v3891
        %v4412 = vsel %vm4340, %v4376, %v3902
        %v4413 = vsel %vm4341, %v4377, %v3913
        %v4414 = vsel %vm4342, %v4378, %v3924
        %v4415 = vsel %vm4343, %v4379, %v3935
        %v4416 = vsel %vm4344, %v4380, %v3946
        %v4417 = vsel %vm4345, %v4381, %v3957
        %v4418 = vsel %vm4346, %v4382, %v3968
        %v4419 = vsel %vm4347, %v4383, %v3979
        %v4420 = vsel %vm4348, %v4384, %v3990
        %v4421 = vsel %vm4349, %v4385, %v4001
        %v4422 = vsel %vm4350, %v4386, %v4012
        %v4423 = vsel %vm4351, %v4387, %v4023
        %v4424 = vsel %vm4352, %v4388, %v4034
        %v4425 = vsel %vm4353, %v4389, %v4045
        %v4426 = vsel %vm4354, %v4390, %v4056
        %v4427 = vsel %vm4355, %v4391, %v4067
        %v4428 = vsel %vm4356, %v4392, %v4078
        %v4429 = vsel %vm4357, %v4393, %v4089
        %v4430 = vsel %vm4358, %v4394, %v4100
        %v4431 = vsel %vm4359, %v4395, %v4111
        %v4432 = vsel %vm4360, %v4396, %v4122
        %v4433 = vsel %vm4361, %v4397, %v4133
        %v4434 = vsel %vm4362, %v4398, %v4144
        %v4435 = vsel %vm4363, %v4399, %v4155
        %v4436 = vsel %vm4364, %v4400, %v4166
        %v4437 = vsel %vm4365, %v4401, %v4177
        %v4438 = vsel %vm4366, %v4402, %v4188
        %v4439 = vsel %vm4367, %v4403, %v4199
        %v4440 = vsel %vm4368, %v4404, %v4210
        %v4441 = vsel %vm4369, %v4405, %v4221
        %v4442 = vsel %vm4370, %v4406, %v4232
        %v4443 = vsel %vm4371, %v4407, %v4243
        %v4444 = vsel %vm4372, %v4408, %v4254
        %v4445 = vsel %vm4373, %v4409, %v4265
        %vm4446 = vcmp.lt.s32.totalorder %v4410, 16
        %vm4447 = vcmp.lt.s32.totalorder %v4411, 16
        %vm4448 = vcmp.lt.s32.totalorder %v4412, 16
        %vm4449 = vcmp.lt.s32.totalorder %v4413, 16
        %vm4450 = vcmp.lt.s32.totalorder %v4414, 16
        %vm4451 = vcmp.lt.s32.totalorder %v4415, 16
        %vm4452 = vcmp.lt.s32.totalorder %v4416, 16
        %vm4453 = vcmp.lt.s32.totalorder %v4417, 16
        %vm4454 = vcmp.lt.s32.totalorder %v4418, 16
        %vm4455 = vcmp.lt.s32.totalorder %v4419, 16
        %vm4456 = vcmp.lt.s32.totalorder %v4420, 16
        %vm4457 = vcmp.lt.s32.totalorder %v4421, 16
        %vm4458 = vcmp.lt.s32.totalorder %v4422, 16
        %vm4459 = vcmp.lt.s32.totalorder %v4423, 16
        %vm4460 = vcmp.lt.s32.totalorder %v4424, 16
        %vm4461 = vcmp.lt.s32.totalorder %v4425, 16
        %vm4462 = vcmp.lt.s32.totalorder %v4426, 16
        %vm4463 = vcmp.lt.s32.totalorder %v4427, 16
        %vm4464 = vcmp.lt.s32.totalorder %v4428, 16
        %vm4465 = vcmp.lt.s32.totalorder %v4429, 16
        %vm4466 = vcmp.lt.s32.totalorder %v4430, 16
        %vm4467 = vcmp.lt.s32.totalorder %v4431, 16
        %vm4468 = vcmp.lt.s32.totalorder %v4432, 16
        %vm4469 = vcmp.lt.s32.totalorder %v4433, 16
        %vm4470 = vcmp.lt.s32.totalorder %v4434, 16
        %vm4471 = vcmp.lt.s32.totalorder %v4435, 16
        %vm4472 = vcmp.lt.s32.totalorder %v4436, 16
        %vm4473 = vcmp.lt.s32.totalorder %v4437, 16
        %vm4474 = vcmp.lt.s32.totalorder %v4438, 16
        %vm4475 = vcmp.lt.s32.totalorder %v4439, 16
        %vm4476 = vcmp.lt.s32.totalorder %v4440, 16
        %vm4477 = vcmp.lt.s32.totalorder %v4441, 16
        %vm4478 = vcmp.lt.s32.totalorder %v4442, 16
        %vm4479 = vcmp.lt.s32.totalorder %v4443, 16
        %vm4480 = vcmp.lt.s32.totalorder %v4444, 16
        %vm4481 = vcmp.lt.s32.totalorder %v4445, 16
        %v4482 = vsel %vm4446, %v3761, 0.0
        %v4483 = vsel %vm4447, %v3762, 0.0
        %v4484 = vsel %vm4448, %v3763, 0.0
        %v4485 = vsel %vm4449, %v3764, 0.0
        %v4486 = vsel %vm4450, %v3765, 0.0
        %v4487 = vsel %vm4451, %v3766, 0.0
        %v4488 = vsel %vm4452, %v3767, 0.0
        %v4489 = vsel %vm4453, %v3768, 0.0
        %v4490 = vsel %vm4454, %v3769, 0.0
        %v4491 = vsel %vm4455, %v3770, 0.0
        %v4492 = vsel %vm4456, %v3771, 0.0
        %v4493 = vsel %vm4457, %v3772, 0.0
        %v4494 = vsel %vm4458, %v3773, 0.0
        %v4495 = vsel %vm4459, %v3774, 0.0
        %v4496 = vsel %vm4460, %v3775, 0.0
        %v4497 = vsel %vm4461, %v3776, 0.0
        %v4498 = vsel %vm4462, %v3777, 0.0
        %v4499 = vsel %vm4463, %v3778, 0.0
        %v4500 = vsel %vm4464, %v3779, 0.0
        %v4501 = vsel %vm4465, %v3780, 0.0
        %v4502 = vsel %vm4466, %v3781, 0.0
        %v4503 = vsel %vm4467, %v3782, 0.0
        %v4504 = vsel %vm4468, %v3783, 0.0
        %v4505 = vsel %vm4469, %v3784, 0.0
        %v4506 = vsel %vm4470, %v3785, 0.0
        %v4507 = vsel %vm4471, %v3786, 0.0
        %v4508 = vsel %vm4472, %v3787, 0.0
        %v4509 = vsel %vm4473, %v3788, 0.0
        %v4510 = vsel %vm4474, %v3789, 0.0
        %v4511 = vsel %vm4475, %v3790, 0.0
        %v4512 = vsel %vm4476, %v3791, 0.0
        %v4513 = vsel %vm4477, %v3792, 0.0
        %v4514 = vsel %vm4478, %v3793, 0.0
        %v4515 = vsel %vm4479, %v3794, 0.0
        %v4516 = vsel %vm4480, %v3795, 0.0
        %v4517 = vsel %vm4481, %v3796, 0.0
        %v4518 = vadd.f32 %v4482, %v4483
        %v4519 = vadd.f32 %v4518, %v4484
        %v4520 = vadd.f32 %v4519, %v4485
        %v4521 = vadd.f32 %v4520, %v4486
        %v4522 = vadd.f32 %v4521, %v4487
        %v4523 = vadd.f32 %v4522, %v4488
        %v4524 = vadd.f32 %v4523, %v4489
        %v4525 = vadd.f32 %v4524, %v4490
        %v4526 = vadd.f32 %v4525, %v4491
        %v4527 = vadd.f32 %v4526, %v4492
        %v4528 = vadd.f32 %v4527, %v4493
        %v4529 = vadd.f32 %v4528, %v4494
        %v4530 = vadd.f32 %v4529, %v4495
        %v4531 = vadd.f32 %v4530, %v4496
        %v4532 = vadd.f32 %v4531, %v4497
        %v4533 = vadd.f32 %v4532, %v4498
        %v4534 = vadd.f32 %v4533, %v4499
        %v4535 = vadd.f32 %v4534, %v4500
        %v4536 = vadd.f32 %v4535, %v4501
        %v4537 = vadd.f32 %v4536, %v4502
        %v4538 = vadd.f32 %v4537, %v4503
        %v4539 = vadd.f32 %v4538, %v4504
        %v4540 = vadd.f32 %v4539, %v4505
        %v4541 = vadd.f32 %v4540, %v4506
        %v4542 = vadd.f32 %v4541, %v4507
        %v4543 = vadd.f32 %v4542, %v4508
        %v4544 = vadd.f32 %v4543, %v4509
        %v4545 = vadd.f32 %v4544, %v4510
        %v4546 = vadd.f32 %v4545, %v4511
        %v4547 = vadd.f32 %v4546, %v4512
        %v4548 = vadd.f32 %v4547, %v4513
        %v4549 = vadd.f32 %v4548, %v4514
        %v4550 = vadd.f32 %v4549, %v4515
        %v4551 = vadd.f32 %v4550, %v4516
        %v4552 = vadd.f32 %v4551, %v4517
        %v4553 = vrot.slane %v4552, 4
        %v4554 = vadd.f32 %v4552, %v4553
        %v4555 = vrot.slane %v4554, 2
        %v4556 = vadd.f32 %v4554, %v4555
        %v4557 = vrot.slane %v4556, 1
        %v4558 = vadd.f32 %v4556, %v4557
        %v4559 = vmul.f32 %v4482, %v3761
        %v4560 = vmul.f32 %v4483, %v3762
        %v4561 = vmul.f32 %v4484, %v3763
        %v4562 = vmul.f32 %v4485, %v3764
        %v4563 = vmul.f32 %v4486, %v3765
        %v4564 = vmul.f32 %v4487, %v3766
        %v4565 = vmul.f32 %v4488, %v3767
        %v4566 = vmul.f32 %v4489, %v3768
        %v4567 = vmul.f32 %v4490, %v3769
        %v4568 = vmul.f32 %v4491, %v3770
        %v4569 = vmul.f32 %v4492, %v3771
        %v4570 = vmul.f32 %v4493, %v3772
        %v4571 = vmul.f32 %v4494, %v3773
        %v4572 = vmul.f32 %v4495, %v3774
        %v4573 = vmul.f32 %v4496, %v3775
        %v4574 = vmul.f32 %v4497, %v3776
        %v4575 = vmul.f32 %v4498, %v3777
        %v4576 = vmul.f32 %v4499, %v3778
        %v4577 = vmul.f32 %v4500, %v3779
        %v4578 = vmul.f32 %v4501, %v3780
        %v4579 = vmul.f32 %v4502, %v3781
        %v4580 = vmul.f32 %v4503, %v3782
        %v4581 = vmul.f32 %v4504, %v3783
        %v4582 = vmul.f32 %v4505, %v3784
        %v4583 = vmul.f32 %v4506, %v3785
        %v4584 = vmul.f32 %v4507, %v3786
        %v4585 = vmul.f32 %v4508, %v3787
        %v4586 = vmul.f32 %v4509, %v3788
        %v4587 = vmul.f32 %v4510, %v3789
        %v4588 = vmul.f32 %v4511, %v3790
        %v4589 = vmul.f32 %v4512, %v3791
        %v4590 = vmul.f32 %v4513, %v3792
        %v4591 = vmul.f32 %v4514, %v3793
        %v4592 = vmul.f32 %v4515, %v3794
        %v4593 = vmul.f32 %v4516, %v3795
        %v4594 = vmul.f32 %v4517, %v3796
        %v4595 = vadd.f32 %v4559, %v4560
        %v4596 = vadd.f32 %v4595, %v4561
        %v4597 = vadd.f32 %v4596, %v4562
        %v4598 = vadd.f32 %v4597, %v4563
        %v4599 = vadd.f32 %v4598, %v4564
        %v4600 = vadd.f32 %v4599, %v4565
        %v4601 = vadd.f32 %v4600, %v4566
        %v4602 = vadd.f32 %v4601, %v4567
        %v4603 = vadd.f32 %v4602, %v4568
        %v4604 = vadd.f32 %v4603, %v4569
        %v4605 = vadd.f32 %v4604, %v4570
        %v4606 = vadd.f32 %v4605, %v4571
        %v4607 = vadd.f32 %v4606, %v4572
        %v4608 = vadd.f32 %v4607, %v4573
        %v4609 = vadd.f32 %v4608, %v4574
        %v4610 = vadd.f32 %v4609, %v4575
        %v4611 = vadd.f32 %v4610, %v4576
        %v4612 = vadd.f32 %v4611, %v4577
        %v4613 = vadd.f32 %v4612, %v4578
        %v4614 = vadd.f32 %v4613, %v4579
        %v4615 = vadd.f32 %v4614, %v4580
        %v4616 = vadd.f32 %v4615, %v4581
        %v4617 = vadd.f32 %v4616, %v4582
        %v4618 = vadd.f32 %v4617, %v4583
        %v4619 = vadd.f32 %v4618, %v4584
        %v4620 = vadd.f32 %v4619, %v4585
        %v4621 = vadd.f32 %v4620, %v4586
        %v4622 = vadd.f32 %v4621, %v4587
        %v4623 = vadd.f32 %v4622, %v4588
        %v4624 = vadd.f32 %v4623, %v4589
        %v4625 = vadd.f32 %v4624, %v4590
        %v4626 = vadd.f32 %v4625, %v4591
        %v4627 = vadd.f32 %v4626, %v4592
        %v4628 = vadd.f32 %v4627, %v4593
        %v4629 = vadd.f32 %v4628, %v4594
        %v4630 = vrot.slane %v4629, 4
        %v4631 = vadd.f32 %v4629, %v4630
        %v4632 = vrot.slane %v4631, 2
        %v4633 = vadd.f32 %v4631, %v4632
        %v4634 = vrot.slane %v4633, 1
        %v4635 = vadd.f32 %v4633, %v4634
        %vm4636 = vcmask 1040384
        %v4637 = vsel %vm4636, %v4558, %v4635
        %4638 = vst [vmem:[%s174] sm:$0x3] %v4637
        %s4639 = sand.u32 %s76, 1
        %s4640 = scalar_lea.sflag [#allocation4], %s4639
        %s4641 = sand.u32 %s76, 1
        %s4642 = smul.addr %s4641, 288
        %s4643 = scalar_lea.vmem [#allocation3], %s4642
        %s4644 = sand.u32 %s102, 1
        %s4645 = scalar_lea.sflag [#allocation6], %s4644
        %s4646 = sand.u32 %s102, 1
        %s4647 = smul.addr %s4646, 2
        %s4648 = scalar_lea.vmem [#allocation5], %s4647
        // Predicated region
        $region29: #{tpu_custom_call.1} parent=27 // pred_check
          %p4649 = pneg %p86
        $region30: #{tpu_custom_call.1} parent=27 // pred_check_branch
          %4651 = sbr.rel (%p4649) target = $region32
        $region31: #{tpu_custom_call.1} parent=27 // pred_region
          %s4653 = ssub.s32 4608, 4608
          %4654 = vsyncadd %s4640, %s4653
          %s4655 = smul.addr %s21, 36
          %s4656 = smul.addr %s4655, 128
          %s4657 = scalar_lea.hbm %s2, %s4656
          %s4658 = sshll.u32 %s4643, 4
          %s4659 = int_to_ptr.vmem [resolvable:$true] %s4658
          %4664 = dma.vmem_to_hbm [thread:$0]  %s4659, 4608, %s4657, %s4640, 128, 128, 8
        $region32: #{tpu_custom_call.1} parent=27 // pred_fallthru
          _
        // Predicated region
        $region33: #{tpu_custom_call.1} parent=27 // pred_check
          %p4665 = pneg %p112
        $region34: #{tpu_custom_call.1} parent=27 // pred_check_branch
          %4667 = sbr.rel (%p4665) target = $region36
        $region35: #{tpu_custom_call.1} parent=27 // pred_region
          %s4669 = ssub.s32 32, 32
          %4670 = vsyncadd %s4645, %s4669
          %s4671 = smul.addr %s21, 32
          %s4672 = scalar_lea.hbm %s3, %s4671
          %s4674 = sshll.u32 %s4648, 4
          %s4675 = int_to_ptr.vmem [resolvable:$true] %s4674
          %4677 = dma.vmem_to_hbm [thread:$0]  %s4675, 32, %s4672, %s4645
        $region36: #{tpu_custom_call.1} parent=27 // pred_fallthru
          _
      $region28: #{tpu_custom_call.1} parent=5 // pred_fallthru
        _
      %p4678 = scmp.le.s32.totalorder 2, %s16
      // Predicated region
      $region37: #{tpu_custom_call.1} parent=5 // pred_check
        %p4679 = pneg %p4678
      $region38: #{tpu_custom_call.1} parent=5 // pred_check_branch
        %4681 = sbr.rel (%p4679) target = $region40
      $region39: #{tpu_custom_call.1} parent=5 // pred_region
        %s4682 = ssub.s32 %s16, 2
        // Predicated region
        $region41: #{tpu_custom_call.1} parent=39 // pred_check
          %p4683 = pneg %p92
        $region42: #{tpu_custom_call.1} parent=39 // pred_check_branch
          %4685 = sbr.rel (%p4683) target = $region44
        $region43: #{tpu_custom_call.1} parent=39 // pred_region
          %s4686 = sand.u32 %s77, 1
          %s4687 = scalar_lea.sflag [#allocation4], %s4686
          %s4688 = sand.u32 %s77, 1
          %s4689 = smul.addr %s4688, 288
          %s4690 = scalar_lea.vmem [#allocation3], %s4689
          %4691 = dma.done %s4687, 4608
        $region44: #{tpu_custom_call.1} parent=39 // pred_fallthru
          _
        // Predicated region
        $region45: #{tpu_custom_call.1} parent=39 // pred_check
          %p4692 = pneg %p118
        $region46: #{tpu_custom_call.1} parent=39 // pred_check_branch
          %4694 = sbr.rel (%p4692) target = $region48
        $region47: #{tpu_custom_call.1} parent=39 // pred_region
          %s4695 = sand.u32 %s103, 1
          %s4696 = scalar_lea.sflag [#allocation6], %s4695
          %s4697 = sand.u32 %s103, 1
          %s4698 = smul.addr %s4697, 2
          %s4699 = scalar_lea.vmem [#allocation5], %s4698
          %4700 = dma.done %s4696, 32
        $region48: #{tpu_custom_call.1} parent=39 // pred_fallthru
          _
      $region40: #{tpu_custom_call.1} parent=5 // pred_fallthru
        _
    $region6: #{tpu_custom_call.1} parent=1 // loop_footer
      %s20 = sadd.s32 1, %s16
    $region7: #{tpu_custom_call.1} parent=1 // loop_footer_branch
      %15 = sbr.rel target = $region3
    $region8: #{tpu_custom_call.1} parent=1 // loop_exit
      _
    %4701 = vsyncpa [#allocation4], 1
    %s4702 = scalar_lea.sflag [#allocation4], 1
    %4703 = vsyncpa %s4702, 1
    %4704 = vsyncpa [#allocation6], 1
    %s4705 = scalar_lea.sflag [#allocation6], 1
    %4706 = vsyncpa %s4705, 1

</llo_original>
